<compile_context>
chip_gen: v6e
topology: v6e:2x2x1
jax: 0.10.0
libtpu: 0.0.40
codegen_flags: <defaults>
</compile_context>

<pallas_src>
import jax
import jax.numpy as jnp
from jax.experimental import pallas as pl
from jax.experimental.pallas import tpu as pltpu

LATENT_DIM = 20
NUM_CLASSES = 10
IMG_DIM = 28 * 28                    # 784
HIDDEN = 400

ENC_IN = IMG_DIM + NUM_CLASSES       # 794
ENC_IN_PAD = 896                     # 7 * 128 (padded encoder K)
HID_PAD = 512                        # 4 * 128 (padded hidden width)
HEAD_PAD = 256                       # mu -> lanes [0,128), logvar -> [128,256)
DEC_IN_PAD = 128                     # z -> lanes [0,20), one_hot(y) -> [20,30)
IMG_PAD = 896                        # 7 * 128 (padded recon width)

MAX_TB = 512                         # batch-tile cap (rows), multiple of 8


def _round_up(n, m):
    return ((n + m - 1) // m) * m


def _choose_tile(B):
    """Pick a batch tile: large (amortize grid-step overhead) but >=2 tiles
    when possible so v7x's two TensorCores both get work."""
    half = -(-B // 2)                                  # ceil(B/2)
    tb = min(MAX_TB, _round_up(max(half, 8), 8))
    b_pad = _round_up(B, tb)
    return tb, b_pad


def cvae_kernel(
    xin_ref,    # (TB, 896)  bf16 : [x_flat | one_hot(y) | zeros]
    mix_ref,    # (TB, 128)  bf16 : [eps | one_hot(y) | zeros]
    w1e_ref,    # (896, 512) bf16 : encoder fc1 weight (zero padded)
    b1e_ref,    # (1, 512)   f32
    whd_ref,    # (512, 256) bf16 : fused mu/logvar head weight
    bhd_ref,    # (1, 256)   f32
    w1d_ref,    # (128, 512) bf16 : decoder fc1 weight (rows 0:30 real)
    b1d_ref,    # (1, 512)   f32
    w2d_ref,    # (512, 896) bf16 : decoder fc2 weight
    b2d_ref,    # (1, 896)   f32
    recon_ref,  # out (TB, 896) bf16
    mulv_ref,   # out (TB, 256) f32  (mu in lanes 0:20, logvar in 128:148)
):
    f32 = jnp.float32
    bf16 = jnp.bfloat16

    # ---- Encoder fc1 + ReLU (K = 896, N = 512, all 128-aligned) ----
    h = jnp.dot(xin_ref[...], w1e_ref[...],
                preferred_element_type=f32) + b1e_ref[...]
    h = jnp.maximum(h, 0.0)

    # ---- Fused mu / logvar head: one matmul, lane-dense output ----
    mulv = jnp.dot(h.astype(bf16), whd_ref[...],
                   preferred_element_type=f32) + bhd_ref[...]
    mulv_ref[...] = mulv

    mu_pad = mulv[:, :128]      # mu in lanes 0:20, zeros elsewhere
    lv_pad = mulv[:, 128:]      # logvar in lanes 0:20, zeros elsewhere

    # ---- Reparameterize (and build the decoder fc1 input for free) ----
    # mix carries eps in lanes [0,20) and one_hot(y) in lanes [20,30); padded
    # mu/logvar lanes are exactly zero (pack_params invariant), so:
    #   z_pad = [ mu + eps*exp(0.5*logvar) | one_hot(y) | zeros ]
    z_pad = mu_pad + mix_ref[...].astype(f32) * jnp.exp(0.5 * lv_pad)

    # ---- Decoder fc1 + ReLU (single matmul, K = 128) ----
    hd = jnp.dot(z_pad.astype(bf16), w1d_ref[...],
                 preferred_element_type=f32) + b1d_ref[...]
    hd = jnp.maximum(hd, 0.0)

    # ---- Decoder fc2 + sigmoid (N = 896, lane-dense bf16 store) ----
    logits = jnp.dot(hd.astype(bf16), w2d_ref[...],
                     preferred_element_type=f32) + b2d_ref[...]
    recon_ref[...] = jax.nn.sigmoid(logits).astype(bf16)


def pack_params(params):
    """Pad to 128-aligned shapes, fuse mu/logvar heads, cast weights to bf16.

    INVARIANT: all padding lanes/rows must be exactly zero; the in-kernel
    reparameterization relies on exp(0.5*0)=1 and mu_pad=0 in lanes >= 20.
    """
    f32, bf16 = jnp.float32, jnp.bfloat16

    w1e = jnp.zeros((ENC_IN_PAD, HID_PAD), f32)
    w1e = w1e.at[:ENC_IN, :HIDDEN].set(params["enc_w1"]).astype(bf16)
    b1e = jnp.zeros((1, HID_PAD), f32).at[:, :HIDDEN].set(params["enc_b1"])

    whd = jnp.zeros((HID_PAD, HEAD_PAD), f32)
    whd = whd.at[:HIDDEN, :LATENT_DIM].set(params["enc_wmu"])
    whd = whd.at[:HIDDEN, 128:128 + LATENT_DIM].set(params["enc_wlv"])
    whd = whd.astype(bf16)
    bhd = jnp.zeros((1, HEAD_PAD), f32)
    bhd = bhd.at[:, :LATENT_DIM].set(params["enc_bmu"])
    bhd = bhd.at[:, 128:128 + LATENT_DIM].set(params["enc_blv"])

    w1d = jnp.zeros((DEC_IN_PAD, HID_PAD), f32)
    w1d = w1d.at[:LATENT_DIM + NUM_CLASSES, :HIDDEN].set(params["dec_w1"])
    w1d = w1d.astype(bf16)
    b1d = jnp.zeros((1, HID_PAD), f32).at[:, :HIDDEN].set(params["dec_b1"])

    w2d = jnp.zeros((HID_PAD, IMG_PAD), f32)
    w2d = w2d.at[:HIDDEN, :IMG_DIM].set(params["dec_w2"]).astype(bf16)
    b2d = jnp.zeros((1, IMG_PAD), f32).at[:, :IMG_DIM].set(params["dec_b2"])

    return dict(w1e=w1e, b1e=b1e, whd=whd, bhd=bhd,
                w1d=w1d, b1d=b1d, w2d=w2d, b2d=b2d)


@jax.jit
def cvae_forward(x, y, packed, eps):
    """x: (B,1,28,28) f32, y: (B,) int32, eps: (B, latent_dim) f32."""
    f32, bf16 = jnp.float32, jnp.bfloat16
    B = x.shape[0]
    TB, B_pad = _choose_tile(B)
    num_tiles = B_pad // TB

    x_flat = x.reshape(B, IMG_DIM).astype(f32)
    y1h = jax.nn.one_hot(y, NUM_CLASSES, dtype=f32)

    # Padded encoder input slab in bf16: [x_flat | one_hot(y) | zeros]
    # (bf16 halves the largest input's HBM traffic; the dot consumed bf16
    # anyway, so numerics are unchanged.)
    # TODO(synk): for very large batches the padded-slab round trip could be
    # avoided entirely by passing x_flat (K=784) plus a small K=128
    # "class-lift" matmul; skipped to keep the kernel simple.
    xin = jnp.concatenate([x_flat, y1h], axis=1).astype(bf16)
    xin = jnp.pad(xin, ((0, B_pad - B), (0, ENC_IN_PAD - ENC_IN)))

    # Reparam/decoder slab in bf16: [eps | one_hot(y) | zeros]  (B_pad, 128)
    mix = jnp.concatenate([eps.astype(f32), y1h], axis=1).astype(bf16)
    mix = jnp.pad(mix, ((0, B_pad - B),
                        (0, DEC_IN_PAD - (LATENT_DIM + NUM_CLASSES))))

    batch_map = lambda i: (i, 0)
    const_map = lambda i: (0, 0)            # weights stay VMEM-resident

    # Advisory cost estimate so XLA overlaps slab construction / slicing.
    flops = 2 * B_pad * (ENC_IN_PAD * HID_PAD + HID_PAD * HEAD_PAD
                         + DEC_IN_PAD * HID_PAD + HID_PAD * IMG_PAD)
    transcendentals = B_pad * (DEC_IN_PAD + IMG_PAD)        # exp + sigmoid
    weight_bytes = 2 * (ENC_IN_PAD * HID_PAD + HID_PAD * HEAD_PAD
                        + DEC_IN_PAD * HID_PAD + HID_PAD * IMG_PAD)
    bias_bytes = 4 * (HID_PAD + HEAD_PAD + HID_PAD + IMG_PAD)
    act_bytes = B_pad * (2 * ENC_IN_PAD + 2 * DEC_IN_PAD      # bf16 inputs
                         + 2 * IMG_PAD + 4 * HEAD_PAD)        # outputs
    cost = pl.CostEstimate(flops=flops, transcendentals=transcendentals,
                           bytes_accessed=weight_bytes + bias_bytes + act_bytes)

    recon_pad, mulv = pl.pallas_call(
        cvae_kernel,
        out_shape=(
            jax.ShapeDtypeStruct((B_pad, IMG_PAD), bf16),
            jax.ShapeDtypeStruct((B_pad, HEAD_PAD), f32),
        ),
        grid=(num_tiles,),
        in_specs=[
            pl.BlockSpec((TB, ENC_IN_PAD), batch_map),
            pl.BlockSpec((TB, DEC_IN_PAD), batch_map),
            pl.BlockSpec((ENC_IN_PAD, HID_PAD), const_map),
            pl.BlockSpec((1, HID_PAD), const_map),
            pl.BlockSpec((HID_PAD, HEAD_PAD), const_map),
            pl.BlockSpec((1, HEAD_PAD), const_map),
            pl.BlockSpec((DEC_IN_PAD, HID_PAD), const_map),
            pl.BlockSpec((1, HID_PAD), const_map),
            pl.BlockSpec((HID_PAD, IMG_PAD), const_map),
            pl.BlockSpec((1, IMG_PAD), const_map),
        ],
        out_specs=[
            pl.BlockSpec((TB, IMG_PAD), batch_map),
            pl.BlockSpec((TB, HEAD_PAD), batch_map),
        ],
        compiler_params=pltpu.CompilerParams(
            dimension_semantics=("parallel",),
            vmem_limit_bytes=32 * 1024 * 1024),
        cost_estimate=cost,
    )(xin, mix,
      packed["w1e"], packed["b1e"], packed["whd"], packed["bhd"],
      packed["w1d"], packed["b1d"], packed["w2d"], packed["b2d"])

    recon = recon_pad[:B, :IMG_DIM].astype(f32).reshape(B, 1, 28, 28)
    mu = mulv[:B, :LATENT_DIM]
    logvar = mulv[:B, 128:128 + LATENT_DIM]
    return recon, mu, logvar


def init_params(key):
    """Synthetic parameters matching the PyTorch module shapes.

    Weights are stored transposed relative to torch (in_features, out_features)
    so the kernel computes x @ W + b directly.
    """
    ks = jax.random.split(key, 7)

    def lin(k, fan_in, fan_out):
        bound = 1.0 / jnp.sqrt(fan_in)
        w = jax.random.uniform(k, (fan_in, fan_out), jnp.float32, -bound, bound)
        b = jnp.zeros((1, fan_out), jnp.float32) + 0.01
        return w, b

    enc_w1, enc_b1 = lin(ks[0], ENC_IN, HIDDEN)                       # 794->400
    enc_wmu, enc_bmu = lin(ks[1], HIDDEN, LATENT_DIM)                 # 400->20
    enc_wlv, enc_blv = lin(ks[2], HIDDEN, LATENT_DIM)                 # 400->20
    dec_w1, dec_b1 = lin(ks[3], LATENT_DIM + NUM_CLASSES, HIDDEN)     # 30->400
    dec_w2, dec_b2 = lin(ks[4], HIDDEN, IMG_DIM)                      # 400->784

    return dict(
        enc_w1=enc_w1, enc_b1=enc_b1,
        enc_wmu=enc_wmu, enc_bmu=enc_bmu,
        enc_wlv=enc_wlv, enc_blv=enc_blv,
        dec_w1=dec_w1, dec_b1=dec_b1,
        dec_w2=dec_w2, dec_b2=dec_b2,
    )


def reference_forward(x, y, params, eps):
    """Pure-JAX reference with the same bf16-weight / f32-accumulate precision."""
    f32, bf16 = jnp.float32, jnp.bfloat16

    def mm(a, w):
        return jnp.dot(a.astype(bf16), w.astype(bf16),
                       preferred_element_type=f32)

    B = x.shape[0]
    x_flat = x.reshape(B, IMG_DIM).astype(f32)
    y1h = jax.nn.one_hot(y, NUM_CLASSES, dtype=f32)
    xin = jnp.concatenate([x_flat, y1h], axis=1)
    h = jax.nn.relu(mm(xin, params["enc_w1"]) + params["enc_b1"])
    mu = mm(h, params["enc_wmu"]) + params["enc_bmu"]
    logvar = mm(h, params["enc_wlv"]) + params["enc_blv"]
    z = mu + eps * jnp.exp(0.5 * logvar)
    zin = jnp.concatenate([z, y1h], axis=1)
    hd = jax.nn.relu(mm(zin, params["dec_w1"]) + params["dec_b1"])
    recon = jax.nn.sigmoid(mm(hd, params["dec_w2"]) + params["dec_b2"])
    return recon.reshape(B, 1, 28, 28), mu, logvar


if __name__ == "__main__":
    key = jax.random.PRNGKey(0)
    k_param, k_x, k_y, k_eps = jax.random.split(key, 4)

    B = 4
    params = init_params(k_param)
    packed = pack_params(params)
    x = jax.random.uniform(k_x, (B, 1, 28, 28), jnp.float32)       # NCHW
    y = jax.random.randint(k_y, (B,), 0, NUM_CLASSES, jnp.int32)
    # TODO(synk): eps sampled outside the kernel (matches torch.randn_like
    # semantics deterministically); could move to pltpu.prng_* if desired.
    eps = jax.random.normal(k_eps, (B, LATENT_DIM), jnp.float32)

    recon, mu, logvar = cvae_forward(x, y, packed, eps)
    jax.block_until_ready((recon, mu, logvar))

    # Sanity check against a precision-matched pure-JAX reference.
    r_ref, mu_ref, lv_ref = reference_forward(x, y, params, eps)
    assert recon.shape == (B, 1, 28, 28)
    assert mu.shape == (B, LATENT_DIM) and logvar.shape == (B, LATENT_DIM)
    # recon stored in bf16 -> slightly looser tolerance than mu/logvar (f32).
    assert jnp.allclose(recon, r_ref, atol=1e-2, rtol=1e-2)
    assert jnp.allclose(mu, mu_ref, atol=5e-3, rtol=5e-3)
    assert jnp.allclose(logvar, lv_ref, atol=5e-3, rtol=5e-3)

    print("KERNEL_OK")
</pallas_src>

<mosaic_0001>
module attributes {stable_mosaic.version = 11 : i64} {
  func.func @cvae_kernel(%arg0: i32, %arg1: memref<8x896xbf16, #tpu.memory_space<vmem>>, %arg2: memref<8x128xbf16, #tpu.memory_space<vmem>>, %arg3: memref<896x512xbf16, #tpu.memory_space<vmem>>, %arg4: memref<1x512xf32, #tpu.memory_space<vmem>>, %arg5: memref<512x256xbf16, #tpu.memory_space<vmem>>, %arg6: memref<1x256xf32, #tpu.memory_space<vmem>>, %arg7: memref<128x512xbf16, #tpu.memory_space<vmem>>, %arg8: memref<1x512xf32, #tpu.memory_space<vmem>>, %arg9: memref<512x896xbf16, #tpu.memory_space<vmem>>, %arg10: memref<1x896xf32, #tpu.memory_space<vmem>>, %arg11: memref<8x896xbf16, #tpu.memory_space<vmem>>, %arg12: memref<8x256xf32, #tpu.memory_space<vmem>>) attributes {dimension_semantics = [#tpu.dimension_semantics<parallel>], iteration_bounds = array<i64: 1>, scalar_prefetch = 0 : i64, scratch_operands = 0 : i64, tpu.core_type = #tpu.core_type<tc>, window_params = [{transform_indices = @transform_0, window_bounds = array<i64: 8, 896>}, {transform_indices = @transform_1, window_bounds = array<i64: 8, 128>}, {pipeline_mode = #tpu.pipeline_mode<synchronous>, transform_indices = @transform_2, window_bounds = array<i64: 896, 512>}, {pipeline_mode = #tpu.pipeline_mode<synchronous>, transform_indices = @transform_3, window_bounds = array<i64: 1, 512>}, {pipeline_mode = #tpu.pipeline_mode<synchronous>, transform_indices = @transform_4, window_bounds = array<i64: 512, 256>}, {pipeline_mode = #tpu.pipeline_mode<synchronous>, transform_indices = @transform_5, window_bounds = array<i64: 1, 256>}, {pipeline_mode = #tpu.pipeline_mode<synchronous>, transform_indices = @transform_6, window_bounds = array<i64: 128, 512>}, {pipeline_mode = #tpu.pipeline_mode<synchronous>, transform_indices = @transform_7, window_bounds = array<i64: 1, 512>}, {pipeline_mode = #tpu.pipeline_mode<synchronous>, transform_indices = @transform_8, window_bounds = array<i64: 512, 896>}, {pipeline_mode = #tpu.pipeline_mode<synchronous>, transform_indices = @transform_9, window_bounds = array<i64: 1, 896>}, {transform_indices = @transform_10, window_bounds = array<i64: 8, 896>}, {transform_indices = @transform_11, window_bounds = array<i64: 8, 256>}]} {
    %c0 = arith.constant 0 : index
    %c0_0 = arith.constant 0 : index
    %0 = vector.load %arg1[%c0, %c0_0] : memref<8x896xbf16, #tpu.memory_space<vmem>>, vector<8x896xbf16>
    %c0_1 = arith.constant 0 : index
    %c0_2 = arith.constant 0 : index
    %1 = vector.load %arg3[%c0_1, %c0_2] : memref<896x512xbf16, #tpu.memory_space<vmem>>, vector<896x512xbf16>
    %cst = arith.constant dense<0.000000e+00> : vector<8x512xf32>
    %2 = tpu.matmul %0, %1, %cst {dimension_numbers = #tpu.dot_dimension_numbers<[1], [0], [0], [1], [0, 0, 1, 1], [], []>} : vector<8x896xbf16>, vector<896x512xbf16>, vector<8x512xf32> -> vector<8x512xf32>
    %c0_3 = arith.constant 0 : index
    %c0_4 = arith.constant 0 : index
    %3 = vector.load %arg4[%c0_3, %c0_4] : memref<1x512xf32, #tpu.memory_space<vmem>>, vector<1x512xf32>
    %4 = vector.broadcast %3 : vector<1x512xf32> to vector<8x512xf32>
    %5 = arith.addf %2, %4 : vector<8x512xf32>
    %cst_5 = arith.constant 0.000000e+00 : f32
    %6 = vector.broadcast %cst_5 : f32 to vector<8x512xf32>
    %7 = arith.maximumf %5, %6 : vector<8x512xf32>
    %8 = arith.truncf %7 : vector<8x512xf32> to vector<8x512xbf16>
    %c0_6 = arith.constant 0 : index
    %c0_7 = arith.constant 0 : index
    %9 = vector.load %arg5[%c0_6, %c0_7] : memref<512x256xbf16, #tpu.memory_space<vmem>>, vector<512x256xbf16>
    %cst_8 = arith.constant dense<0.000000e+00> : vector<8x256xf32>
    %10 = tpu.matmul %8, %9, %cst_8 {dimension_numbers = #tpu.dot_dimension_numbers<[1], [0], [0], [1], [0, 0, 1, 1], [], []>} : vector<8x512xbf16>, vector<512x256xbf16>, vector<8x256xf32> -> vector<8x256xf32>
    %c0_9 = arith.constant 0 : index
    %c0_10 = arith.constant 0 : index
    %11 = vector.load %arg6[%c0_9, %c0_10] : memref<1x256xf32, #tpu.memory_space<vmem>>, vector<1x256xf32>
    %12 = vector.broadcast %11 : vector<1x256xf32> to vector<8x256xf32>
    %13 = arith.addf %10, %12 : vector<8x256xf32>
    %c0_11 = arith.constant 0 : index
    %c0_12 = arith.constant 0 : index
    %14 = vector.load %arg12[%c0_11, %c0_12] : memref<8x256xf32, #tpu.memory_space<vmem>>, vector<8x256xf32>
    tpu.vector_store %arg12[%c0_11, %c0_12], %13 {strides = array<i32>} : memref<8x256xf32, #tpu.memory_space<vmem>>, vector<8x256xf32>,
    %15 = vector.extract_strided_slice %13 {offsets = [0, 0], sizes = [8, 128], strides = [1, 1]} : vector<8x256xf32> to vector<8x128xf32>
    %16 = vector.extract_strided_slice %13 {offsets = [0, 128], sizes = [8, 128], strides = [1, 1]} : vector<8x256xf32> to vector<8x128xf32>
    %c0_13 = arith.constant 0 : index
    %c0_14 = arith.constant 0 : index
    %17 = vector.load %arg2[%c0_13, %c0_14] : memref<8x128xbf16, #tpu.memory_space<vmem>>, vector<8x128xbf16>
    %18 = arith.extf %17 : vector<8x128xbf16> to vector<8x128xf32>
    %cst_15 = arith.constant 5.000000e-01 : f32
    %19 = vector.broadcast %cst_15 : f32 to vector<8x128xf32>
    %20 = arith.mulf %19, %16 : vector<8x128xf32>
    %21 = math.exp %20 : vector<8x128xf32>
    %22 = arith.mulf %18, %21 : vector<8x128xf32>
    %23 = arith.addf %15, %22 : vector<8x128xf32>
    %24 = arith.truncf %23 : vector<8x128xf32> to vector<8x128xbf16>
    %c0_16 = arith.constant 0 : index
    %c0_17 = arith.constant 0 : index
    %25 = vector.load %arg7[%c0_16, %c0_17] : memref<128x512xbf16, #tpu.memory_space<vmem>>, vector<128x512xbf16>
    %cst_18 = arith.constant dense<0.000000e+00> : vector<8x512xf32>
    %26 = tpu.matmul %24, %25, %cst_18 {dimension_numbers = #tpu.dot_dimension_numbers<[1], [0], [0], [1], [0, 0, 1, 1], [], []>} : vector<8x128xbf16>, vector<128x512xbf16>, vector<8x512xf32> -> vector<8x512xf32>
    %c0_19 = arith.constant 0 : index
    %c0_20 = arith.constant 0 : index
    %27 = vector.load %arg8[%c0_19, %c0_20] : memref<1x512xf32, #tpu.memory_space<vmem>>, vector<1x512xf32>
    %28 = vector.broadcast %27 : vector<1x512xf32> to vector<8x512xf32>
    %29 = arith.addf %26, %28 : vector<8x512xf32>
    %cst_21 = arith.constant 0.000000e+00 : f32
    %30 = vector.broadcast %cst_21 : f32 to vector<8x512xf32>
    %31 = arith.maximumf %29, %30 : vector<8x512xf32>
    %32 = arith.truncf %31 : vector<8x512xf32> to vector<8x512xbf16>
    %c0_22 = arith.constant 0 : index
    %c0_23 = arith.constant 0 : index
    %33 = vector.load %arg9[%c0_22, %c0_23] : memref<512x896xbf16, #tpu.memory_space<vmem>>, vector<512x896xbf16>
    %cst_24 = arith.constant dense<0.000000e+00> : vector<8x896xf32>
    %34 = tpu.matmul %32, %33, %cst_24 {dimension_numbers = #tpu.dot_dimension_numbers<[1], [0], [0], [1], [0, 0, 1, 1], [], []>} : vector<8x512xbf16>, vector<512x896xbf16>, vector<8x896xf32> -> vector<8x896xf32>
    %c0_25 = arith.constant 0 : index
    %c0_26 = arith.constant 0 : index
    %35 = vector.load %arg10[%c0_25, %c0_26] : memref<1x896xf32, #tpu.memory_space<vmem>>, vector<1x896xf32>
    %36 = vector.broadcast %35 : vector<1x896xf32> to vector<8x896xf32>
    %37 = arith.addf %34, %36 : vector<8x896xf32>
    %38 = arith.negf %37 : vector<8x896xf32>
    %39 = math.exp %38 : vector<8x896xf32>
    %cst_27 = arith.constant 1.000000e+00 : f32
    %40 = vector.broadcast %cst_27 : f32 to vector<8x896xf32>
    %41 = arith.addf %40, %39 : vector<8x896xf32>
    %42 = arith.divf %40, %41 : vector<8x896xf32>
    %43 = arith.truncf %42 : vector<8x896xf32> to vector<8x896xbf16>
    %c0_28 = arith.constant 0 : index
    %c0_29 = arith.constant 0 : index
    %44 = vector.load %arg11[%c0_28, %c0_29] : memref<8x896xbf16, #tpu.memory_space<vmem>>, vector<8x896xbf16>
    tpu.vector_store %arg11[%c0_28, %c0_29], %43 {strides = array<i32>} : memref<8x896xbf16, #tpu.memory_space<vmem>>, vector<8x896xbf16>,
    return
  }
  func.func @transform_0(%arg0: i32) -> (i32, i32) {
    %c0_i32 = arith.constant 0 : i32
    %c0_i32_0 = arith.constant 0 : i32
    return %arg0, %c0_i32 : i32, i32
  }
  func.func @transform_1(%arg0: i32) -> (i32, i32) {
    %c0_i32 = arith.constant 0 : i32
    %c0_i32_0 = arith.constant 0 : i32
    return %arg0, %c0_i32 : i32, i32
  }
  func.func @transform_2(%arg0: i32) -> (i32, i32) {
    %c0_i32 = arith.constant 0 : i32
    %c0_i32_0 = arith.constant 0 : i32
    %c0_i32_1 = arith.constant 0 : i32
    return %c0_i32, %c0_i32_0 : i32, i32
  }
  func.func @transform_3(%arg0: i32) -> (i32, i32) {
    %c0_i32 = arith.constant 0 : i32
    %c0_i32_0 = arith.constant 0 : i32
    %c0_i32_1 = arith.constant 0 : i32
    return %c0_i32, %c0_i32_0 : i32, i32
  }
  func.func @transform_4(%arg0: i32) -> (i32, i32) {
    %c0_i32 = arith.constant 0 : i32
    %c0_i32_0 = arith.constant 0 : i32
    %c0_i32_1 = arith.constant 0 : i32
    return %c0_i32, %c0_i32_0 : i32, i32
  }
  func.func @transform_5(%arg0: i32) -> (i32, i32) {
    %c0_i32 = arith.constant 0 : i32
    %c0_i32_0 = arith.constant 0 : i32
    %c0_i32_1 = arith.constant 0 : i32
    return %c0_i32, %c0_i32_0 : i32, i32
  }
  func.func @transform_6(%arg0: i32) -> (i32, i32) {
    %c0_i32 = arith.constant 0 : i32
    %c0_i32_0 = arith.constant 0 : i32
    %c0_i32_1 = arith.constant 0 : i32
    return %c0_i32, %c0_i32_0 : i32, i32
  }
  func.func @transform_7(%arg0: i32) -> (i32, i32) {
    %c0_i32 = arith.constant 0 : i32
    %c0_i32_0 = arith.constant 0 : i32
    %c0_i32_1 = arith.constant 0 : i32
    return %c0_i32, %c0_i32_0 : i32, i32
  }
  func.func @transform_8(%arg0: i32) -> (i32, i32) {
    %c0_i32 = arith.constant 0 : i32
    %c0_i32_0 = arith.constant 0 : i32
    %c0_i32_1 = arith.constant 0 : i32
    return %c0_i32, %c0_i32_0 : i32, i32
  }
  func.func @transform_9(%arg0: i32) -> (i32, i32) {
    %c0_i32 = arith.constant 0 : i32
    %c0_i32_0 = arith.constant 0 : i32
    %c0_i32_1 = arith.constant 0 : i32
    return %c0_i32, %c0_i32_0 : i32, i32
  }
  func.func @transform_10(%arg0: i32) -> (i32, i32) {
    %c0_i32 = arith.constant 0 : i32
    %c0_i32_0 = arith.constant 0 : i32
    return %arg0, %c0_i32 : i32, i32
  }
  func.func @transform_11(%arg0: i32) -> (i32, i32) {
    %c0_i32 = arith.constant 0 : i32
    %c0_i32_0 = arith.constant 0 : i32
    return %arg0, %c0_i32 : i32, i32
  }
}

</mosaic_0001>

<llo_original>
// kernel: cvae_forward.1
$region0: #{cvae_forward.1}
  #allocation0 [shape = 'u32[]', space=smem, size = 0x4, offset = 0x4, fixed_abs, tag = 'smem constant byte address 0x4 - core index']
  #allocation1 [shape = 'u32[144,128]{1,0:T(1,128)}', space=vmem, size = 0x12000, scoped, tag = 'internal scratch']
  %s0 = inlined_call_operand.vmem [shape: bf16[8,896], index: 0, kind: input, shape index: {}]
  %s1 = inlined_call_operand.vmem [shape: bf16[8,128], index: 1, kind: input, shape index: {}]
  %s2 = inlined_call_operand.hbm [shape: bf16[896,512], index: 2, kind: input, shape index: {}]
  %s3 = inlined_call_operand.vmem [shape: f32[1,512], index: 3, kind: input, shape index: {}]
  %s4 = inlined_call_operand.hbm [shape: bf16[512,256], index: 4, kind: input, shape index: {}]
  %s5 = inlined_call_operand.vmem [shape: f32[1,256], index: 5, kind: input, shape index: {}]
  %s6 = inlined_call_operand.vmem [shape: bf16[128,512], index: 6, kind: input, shape index: {}]
  %s7 = inlined_call_operand.vmem [shape: f32[1,512], index: 7, kind: input, shape index: {}]
  %s8 = inlined_call_operand.hbm [shape: bf16[512,896], index: 8, kind: input, shape index: {}]
  %s9 = inlined_call_operand.vmem [shape: f32[1,896], index: 9, kind: input, shape index: {}]
  %s10 = inlined_call_operand.vmem [shape: bf16[8,896], index: 10, kind: output, shape index: {0}]
  %s11 = inlined_call_operand.vmem [shape: f32[8,256], index: 11, kind: output, shape index: {1}]
  %12 = xla_tuple %s10, %s11
  %s13 = sld [smem:[#allocation0]]
  $region70: #{cvae_forward.1} parent=0
    _
  %s15 = ssub.s32 1, %s13
  %s16 = scalar_select 0, %s15, %s13
  $region1: #{cvae_forward.1} parent=0
    #allocation2 [shape = 'u8[917504]{0}', space=vmem, size = 0xe0000, scoped, tag = 'input window, operand 2, single buffered']
    #allocation3 [shape = 's32[1]{0}', space=sflag, size = 0x4, scoped, tag = 'scoped memory for cvae_forward.1']
    #allocation4 [shape = 'u8[262144]{0}', space=vmem, size = 0x40000, scoped, tag = 'input window, operand 4, single buffered']
    #allocation5 [shape = 's32[1]{0}', space=sflag, size = 0x4, scoped, tag = 'scoped memory for cvae_forward.1']
    #allocation6 [shape = 'u8[917504]{0}', space=vmem, size = 0xe0000, scoped, tag = 'input window, operand 8, single buffered']
    %17 = vsyncpa [#allocation3], 0
    %18 = vsyncpa [#allocation5], 0
    // Predicated region
    $region2: #{cvae_forward.1} parent=1 // pred_check
      _
    $region3: #{cvae_forward.1} parent=1 // pred_check_branch
      %20 = sbr.rel (0) target = $region5
    $region4: #{cvae_forward.1} parent=1 // pred_region
      _
    $region5: #{cvae_forward.1} parent=1 // pred_fallthru
      _
    // Predicated region
    $region6: #{cvae_forward.1} parent=1 // pred_check
      _
    $region7: #{cvae_forward.1} parent=1 // pred_check_branch
      %22 = sbr.rel (0) target = $region9
    $region8: #{cvae_forward.1} parent=1 // pred_region
      _
    $region9: #{cvae_forward.1} parent=1 // pred_fallthru
      _
    // Predicated region
    $region10: #{cvae_forward.1} parent=1 // pred_check
      _
    $region11: #{cvae_forward.1} parent=1 // pred_check_branch
      %24 = sbr.rel (0) target = $region13
    $region12: #{cvae_forward.1} parent=1 // pred_region
      %s26 = ssub.s32 28672, 28672
      %27 = vsyncadd [#allocation3], %s26
      %s28 = sshll.u32 [#allocation2], 4
      %s29 = int_to_ptr.vmem [resolvable:$true] %s28
      %34 = dma.hbm_to_vmem [thread:$0]  %s2, 28672, %s29, [#allocation3], 256, 256, 16
    $region13: #{cvae_forward.1} parent=1 // pred_fallthru
      _
    // Predicated region
    $region14: #{cvae_forward.1} parent=1 // pred_check
      _
    $region15: #{cvae_forward.1} parent=1 // pred_check_branch
      %36 = sbr.rel (0) target = $region17
    $region16: #{cvae_forward.1} parent=1 // pred_region
      _
    $region17: #{cvae_forward.1} parent=1 // pred_fallthru
      _
    // Predicated region
    $region18: #{cvae_forward.1} parent=1 // pred_check
      _
    $region19: #{cvae_forward.1} parent=1 // pred_check_branch
      %38 = sbr.rel (0) target = $region21
    $region20: #{cvae_forward.1} parent=1 // pred_region
      %s40 = ssub.s32 8192, 8192
      %41 = vsyncadd [#allocation5], %s40
      %s42 = sshll.u32 [#allocation4], 4
      %s43 = int_to_ptr.vmem [resolvable:$true] %s42
      %48 = dma.hbm_to_vmem [thread:$0]  %s4, 8192, %s43, [#allocation5], 128, 128, 8
    $region21: #{cvae_forward.1} parent=1 // pred_fallthru
      _
    // Predicated region
    $region22: #{cvae_forward.1} parent=1 // pred_check
      _
    $region23: #{cvae_forward.1} parent=1 // pred_check_branch
      %50 = sbr.rel (0) target = $region25
    $region24: #{cvae_forward.1} parent=1 // pred_region
      _
    $region25: #{cvae_forward.1} parent=1 // pred_fallthru
      _
    // Predicated region
    $region26: #{cvae_forward.1} parent=1 // pred_check
      _
    $region27: #{cvae_forward.1} parent=1 // pred_check_branch
      %52 = sbr.rel (0) target = $region29
    $region28: #{cvae_forward.1} parent=1 // pred_region
      _
    $region29: #{cvae_forward.1} parent=1 // pred_fallthru
      _
    // Predicated region
    $region30: #{cvae_forward.1} parent=1 // pred_check
      _
    $region31: #{cvae_forward.1} parent=1 // pred_check_branch
      %54 = sbr.rel (0) target = $region33
    $region32: #{cvae_forward.1} parent=1 // pred_region
      _
    $region33: #{cvae_forward.1} parent=1 // pred_fallthru
      _
    // Predicated region
    $region34: #{cvae_forward.1} parent=1 // pred_check
      _
    $region35: #{cvae_forward.1} parent=1 // pred_check_branch
      %56 = sbr.rel (0) target = $region37
    $region36: #{cvae_forward.1} parent=1 // pred_region
      %s58 = ssub.s32 28672, 28672
      %59 = vsyncadd [#allocation5], %s58
      %s60 = sshll.u32 [#allocation6], 4
      %s61 = int_to_ptr.vmem [resolvable:$true] %s60
      %66 = dma.hbm_to_vmem [thread:$0]  %s8, 28672, %s61, [#allocation5], 448, 448, 28
    $region37: #{cvae_forward.1} parent=1 // pred_fallthru
      _
    // Predicated region
    $region38: #{cvae_forward.1} parent=1 // pred_check
      _
    $region39: #{cvae_forward.1} parent=1 // pred_check_branch
      %68 = sbr.rel (0) target = $region41
    $region40: #{cvae_forward.1} parent=1 // pred_region
      _
    $region41: #{cvae_forward.1} parent=1 // pred_fallthru
      _
    // Predicated region
    $region42: #{cvae_forward.1} parent=1 // pred_check
      _
    $region43: #{cvae_forward.1} parent=1 // pred_check_branch
      %70 = sbr.rel (0) target = $region45
    $region44: #{cvae_forward.1} parent=1 // pred_region
      %71 = dma.done [#allocation3], 28672
    $region45: #{cvae_forward.1} parent=1 // pred_fallthru
      _
    // Predicated region
    $region46: #{cvae_forward.1} parent=1 // pred_check
      _
    $region47: #{cvae_forward.1} parent=1 // pred_check_branch
      %73 = sbr.rel (0) target = $region49
    $region48: #{cvae_forward.1} parent=1 // pred_region
      %74 = dma.done [#allocation5], 8192
    $region49: #{cvae_forward.1} parent=1 // pred_fallthru
      _
    // Predicated region
    $region50: #{cvae_forward.1} parent=1 // pred_check
      _
    $region51: #{cvae_forward.1} parent=1 // pred_check_branch
      %76 = sbr.rel (0) target = $region53
    $region52: #{cvae_forward.1} parent=1 // pred_region
      %77 = dma.done [#allocation5], 28672
    $region53: #{cvae_forward.1} parent=1 // pred_fallthru
      _
    %v79 = vld [vmem:[%s0] sm:$0xff]
    %v80 = vld [vmem:[%s0 + $0x8] sm:$0xff]
    %v81 = vld [vmem:[%s0 + $0x10] sm:$0xff]
    %v82 = vld [vmem:[%s0 + $0x18] sm:$0xf]
    %v83 = vld [vmem:[#allocation2] sm:$0xff]
    %v84 = vld [vmem:[#allocation2 + $0x8] sm:$0xff]
    %v85 = vld [vmem:[#allocation2 + $0x10] sm:$0xff]
    %v86 = vld [vmem:[#allocation2 + $0x18] sm:$0xff]
    %v87 = vld [vmem:[#allocation2 + $0x20] sm:$0xff]
    %v88 = vld [vmem:[#allocation2 + $0x28] sm:$0xff]
    %v89 = vld [vmem:[#allocation2 + $0x30] sm:$0xff]
    %v90 = vld [vmem:[#allocation2 + $0x38] sm:$0xff]
    %v91 = vld [vmem:[#allocation2 + $0x40] sm:$0xff]
    %v92 = vld [vmem:[#allocation2 + $0x48] sm:$0xff]
    %v93 = vld [vmem:[#allocation2 + $0x50] sm:$0xff]
    %v94 = vld [vmem:[#allocation2 + $0x58] sm:$0xff]
    %v95 = vld [vmem:[#allocation2 + $0x60] sm:$0xff]
    %v96 = vld [vmem:[#allocation2 + $0x68] sm:$0xff]
    %v97 = vld [vmem:[#allocation2 + $0x70] sm:$0xff]
    %v98 = vld [vmem:[#allocation2 + $0x78] sm:$0xff]
    %v99 = vld [vmem:[#allocation2 + $0x80] sm:$0xff]
    %v100 = vld [vmem:[#allocation2 + $0x88] sm:$0xff]
    %v101 = vld [vmem:[#allocation2 + $0x90] sm:$0xff]
    %v102 = vld [vmem:[#allocation2 + $0x98] sm:$0xff]
    %v103 = vld [vmem:[#allocation2 + $0xa0] sm:$0xff]
    %v104 = vld [vmem:[#allocation2 + $0xa8] sm:$0xff]
    %v105 = vld [vmem:[#allocation2 + $0xb0] sm:$0xff]
    %v106 = vld [vmem:[#allocation2 + $0xb8] sm:$0xff]
    %v107 = vld [vmem:[#allocation2 + $0xc0] sm:$0xff]
    %v108 = vld [vmem:[#allocation2 + $0xc8] sm:$0xff]
    %v109 = vld [vmem:[#allocation2 + $0xd0] sm:$0xff]
    %v110 = vld [vmem:[#allocation2 + $0xd8] sm:$0xff]
    %v111 = vld [vmem:[#allocation2 + $0xe0] sm:$0xff]
    %v112 = vld [vmem:[#allocation2 + $0xe8] sm:$0xff]
    %v113 = vld [vmem:[#allocation2 + $0xf0] sm:$0xff]
    %v114 = vld [vmem:[#allocation2 + $0xf8] sm:$0xff]
    %v115 = vld [vmem:[#allocation2 + $0x100] sm:$0xff]
    %v116 = vld [vmem:[#allocation2 + $0x108] sm:$0xff]
    %v117 = vld [vmem:[#allocation2 + $0x110] sm:$0xff]
    %v118 = vld [vmem:[#allocation2 + $0x118] sm:$0xff]
    %v119 = vld [vmem:[#allocation2 + $0x120] sm:$0xff]
    %v120 = vld [vmem:[#allocation2 + $0x128] sm:$0xff]
    %v121 = vld [vmem:[#allocation2 + $0x130] sm:$0xff]
    %v122 = vld [vmem:[#allocation2 + $0x138] sm:$0xff]
    %v123 = vld [vmem:[#allocation2 + $0x140] sm:$0xff]
    %v124 = vld [vmem:[#allocation2 + $0x148] sm:$0xff]
    %v125 = vld [vmem:[#allocation2 + $0x150] sm:$0xff]
    %v126 = vld [vmem:[#allocation2 + $0x158] sm:$0xff]
    %v127 = vld [vmem:[#allocation2 + $0x160] sm:$0xff]
    %v128 = vld [vmem:[#allocation2 + $0x168] sm:$0xff]
    %v129 = vld [vmem:[#allocation2 + $0x170] sm:$0xff]
    %v130 = vld [vmem:[#allocation2 + $0x178] sm:$0xff]
    %v131 = vld [vmem:[#allocation2 + $0x180] sm:$0xff]
    %v132 = vld [vmem:[#allocation2 + $0x188] sm:$0xff]
    %v133 = vld [vmem:[#allocation2 + $0x190] sm:$0xff]
    %v134 = vld [vmem:[#allocation2 + $0x198] sm:$0xff]
    %v135 = vld [vmem:[#allocation2 + $0x1a0] sm:$0xff]
    %v136 = vld [vmem:[#allocation2 + $0x1a8] sm:$0xff]
    %v137 = vld [vmem:[#allocation2 + $0x1b0] sm:$0xff]
    %v138 = vld [vmem:[#allocation2 + $0x1b8] sm:$0xff]
    %v139 = vld [vmem:[#allocation2 + $0x1c0] sm:$0xff]
    %v140 = vld [vmem:[#allocation2 + $0x1c8] sm:$0xff]
    %v141 = vld [vmem:[#allocation2 + $0x1d0] sm:$0xff]
    %v142 = vld [vmem:[#allocation2 + $0x1d8] sm:$0xff]
    %v143 = vld [vmem:[#allocation2 + $0x1e0] sm:$0xff]
    %v144 = vld [vmem:[#allocation2 + $0x1e8] sm:$0xff]
    %v145 = vld [vmem:[#allocation2 + $0x1f0] sm:$0xff]
    %v146 = vld [vmem:[#allocation2 + $0x1f8] sm:$0xff]
    %v147 = vld [vmem:[#allocation2 + $0x200] sm:$0xff]
    %v148 = vld [vmem:[#allocation2 + $0x208] sm:$0xff]
    %v149 = vld [vmem:[#allocation2 + $0x210] sm:$0xff]
    %v150 = vld [vmem:[#allocation2 + $0x218] sm:$0xff]
    %v151 = vld [vmem:[#allocation2 + $0x220] sm:$0xff]
    %v152 = vld [vmem:[#allocation2 + $0x228] sm:$0xff]
    %v153 = vld [vmem:[#allocation2 + $0x230] sm:$0xff]
    %v154 = vld [vmem:[#allocation2 + $0x238] sm:$0xff]
    %v155 = vld [vmem:[#allocation2 + $0x240] sm:$0xff]
    %v156 = vld [vmem:[#allocation2 + $0x248] sm:$0xff]
    %v157 = vld [vmem:[#allocation2 + $0x250] sm:$0xff]
    %v158 = vld [vmem:[#allocation2 + $0x258] sm:$0xff]
    %v159 = vld [vmem:[#allocation2 + $0x260] sm:$0xff]
    %v160 = vld [vmem:[#allocation2 + $0x268] sm:$0xff]
    %v161 = vld [vmem:[#allocation2 + $0x270] sm:$0xff]
    %v162 = vld [vmem:[#allocation2 + $0x278] sm:$0xff]
    %v163 = vld [vmem:[#allocation2 + $0x280] sm:$0xff]
    %v164 = vld [vmem:[#allocation2 + $0x288] sm:$0xff]
    %v165 = vld [vmem:[#allocation2 + $0x290] sm:$0xff]
    %v166 = vld [vmem:[#allocation2 + $0x298] sm:$0xff]
    %v167 = vld [vmem:[#allocation2 + $0x2a0] sm:$0xff]
    %v168 = vld [vmem:[#allocation2 + $0x2a8] sm:$0xff]
    %v169 = vld [vmem:[#allocation2 + $0x2b0] sm:$0xff]
    %v170 = vld [vmem:[#allocation2 + $0x2b8] sm:$0xff]
    %v171 = vld [vmem:[#allocation2 + $0x2c0] sm:$0xff]
    %v172 = vld [vmem:[#allocation2 + $0x2c8] sm:$0xff]
    %v173 = vld [vmem:[#allocation2 + $0x2d0] sm:$0xff]
    %v174 = vld [vmem:[#allocation2 + $0x2d8] sm:$0xff]
    %v175 = vld [vmem:[#allocation2 + $0x2e0] sm:$0xff]
    %v176 = vld [vmem:[#allocation2 + $0x2e8] sm:$0xff]
    %v177 = vld [vmem:[#allocation2 + $0x2f0] sm:$0xff]
    %v178 = vld [vmem:[#allocation2 + $0x2f8] sm:$0xff]
    %v179 = vld [vmem:[#allocation2 + $0x300] sm:$0xff]
    %v180 = vld [vmem:[#allocation2 + $0x308] sm:$0xff]
    %v181 = vld [vmem:[#allocation2 + $0x310] sm:$0xff]
    %v182 = vld [vmem:[#allocation2 + $0x318] sm:$0xff]
    %v183 = vld [vmem:[#allocation2 + $0x320] sm:$0xff]
    %v184 = vld [vmem:[#allocation2 + $0x328] sm:$0xff]
    %v185 = vld [vmem:[#allocation2 + $0x330] sm:$0xff]
    %v186 = vld [vmem:[#allocation2 + $0x338] sm:$0xff]
    %v187 = vld [vmem:[#allocation2 + $0x340] sm:$0xff]
    %v188 = vld [vmem:[#allocation2 + $0x348] sm:$0xff]
    %v189 = vld [vmem:[#allocation2 + $0x350] sm:$0xff]
    %v190 = vld [vmem:[#allocation2 + $0x358] sm:$0xff]
    %v191 = vld [vmem:[#allocation2 + $0x360] sm:$0xff]
    %v192 = vld [vmem:[#allocation2 + $0x368] sm:$0xff]
    %v193 = vld [vmem:[#allocation2 + $0x370] sm:$0xff]
    %v194 = vld [vmem:[#allocation2 + $0x378] sm:$0xff]
    %v195 = vld [vmem:[#allocation2 + $0x380] sm:$0xff]
    %v196 = vld [vmem:[#allocation2 + $0x388] sm:$0xff]
    %v197 = vld [vmem:[#allocation2 + $0x390] sm:$0xff]
    %v198 = vld [vmem:[#allocation2 + $0x398] sm:$0xff]
    %v199 = vld [vmem:[#allocation2 + $0x3a0] sm:$0xff]
    %v200 = vld [vmem:[#allocation2 + $0x3a8] sm:$0xff]
    %v201 = vld [vmem:[#allocation2 + $0x3b0] sm:$0xff]
    %v202 = vld [vmem:[#allocation2 + $0x3b8] sm:$0xff]
    %v203 = vld [vmem:[#allocation2 + $0x3c0] sm:$0xff]
    %v204 = vld [vmem:[#allocation2 + $0x3c8] sm:$0xff]
    %v205 = vld [vmem:[#allocation2 + $0x3d0] sm:$0xff]
    %v206 = vld [vmem:[#allocation2 + $0x3d8] sm:$0xff]
    %v207 = vld [vmem:[#allocation2 + $0x3e0] sm:$0xff]
    %v208 = vld [vmem:[#allocation2 + $0x3e8] sm:$0xff]
    %v209 = vld [vmem:[#allocation2 + $0x3f0] sm:$0xff]
    %v210 = vld [vmem:[#allocation2 + $0x3f8] sm:$0xff]
    %v211 = vld [vmem:[#allocation2 + $0x400] sm:$0xff]
    %v212 = vld [vmem:[#allocation2 + $0x408] sm:$0xff]
    %v213 = vld [vmem:[#allocation2 + $0x410] sm:$0xff]
    %v214 = vld [vmem:[#allocation2 + $0x418] sm:$0xff]
    %v215 = vld [vmem:[#allocation2 + $0x420] sm:$0xff]
    %v216 = vld [vmem:[#allocation2 + $0x428] sm:$0xff]
    %v217 = vld [vmem:[#allocation2 + $0x430] sm:$0xff]
    %v218 = vld [vmem:[#allocation2 + $0x438] sm:$0xff]
    %v219 = vld [vmem:[#allocation2 + $0x440] sm:$0xff]
    %v220 = vld [vmem:[#allocation2 + $0x448] sm:$0xff]
    %v221 = vld [vmem:[#allocation2 + $0x450] sm:$0xff]
    %v222 = vld [vmem:[#allocation2 + $0x458] sm:$0xff]
    %v223 = vld [vmem:[#allocation2 + $0x460] sm:$0xff]
    %v224 = vld [vmem:[#allocation2 + $0x468] sm:$0xff]
    %v225 = vld [vmem:[#allocation2 + $0x470] sm:$0xff]
    %v226 = vld [vmem:[#allocation2 + $0x478] sm:$0xff]
    %v227 = vld [vmem:[#allocation2 + $0x480] sm:$0xff]
    %v228 = vld [vmem:[#allocation2 + $0x488] sm:$0xff]
    %v229 = vld [vmem:[#allocation2 + $0x490] sm:$0xff]
    %v230 = vld [vmem:[#allocation2 + $0x498] sm:$0xff]
    %v231 = vld [vmem:[#allocation2 + $0x4a0] sm:$0xff]
    %v232 = vld [vmem:[#allocation2 + $0x4a8] sm:$0xff]
    %v233 = vld [vmem:[#allocation2 + $0x4b0] sm:$0xff]
    %v234 = vld [vmem:[#allocation2 + $0x4b8] sm:$0xff]
    %v235 = vld [vmem:[#allocation2 + $0x4c0] sm:$0xff]
    %v236 = vld [vmem:[#allocation2 + $0x4c8] sm:$0xff]
    %v237 = vld [vmem:[#allocation2 + $0x4d0] sm:$0xff]
    %v238 = vld [vmem:[#allocation2 + $0x4d8] sm:$0xff]
    %v239 = vld [vmem:[#allocation2 + $0x4e0] sm:$0xff]
    %v240 = vld [vmem:[#allocation2 + $0x4e8] sm:$0xff]
    %v241 = vld [vmem:[#allocation2 + $0x4f0] sm:$0xff]
    %v242 = vld [vmem:[#allocation2 + $0x4f8] sm:$0xff]
    %v243 = vld [vmem:[#allocation2 + $0x500] sm:$0xff]
    %v244 = vld [vmem:[#allocation2 + $0x508] sm:$0xff]
    %v245 = vld [vmem:[#allocation2 + $0x510] sm:$0xff]
    %v246 = vld [vmem:[#allocation2 + $0x518] sm:$0xff]
    %v247 = vld [vmem:[#allocation2 + $0x520] sm:$0xff]
    %v248 = vld [vmem:[#allocation2 + $0x528] sm:$0xff]
    %v249 = vld [vmem:[#allocation2 + $0x530] sm:$0xff]
    %v250 = vld [vmem:[#allocation2 + $0x538] sm:$0xff]
    %v251 = vld [vmem:[#allocation2 + $0x540] sm:$0xff]
    %v252 = vld [vmem:[#allocation2 + $0x548] sm:$0xff]
    %v253 = vld [vmem:[#allocation2 + $0x550] sm:$0xff]
    %v254 = vld [vmem:[#allocation2 + $0x558] sm:$0xff]
    %v255 = vld [vmem:[#allocation2 + $0x560] sm:$0xff]
    %v256 = vld [vmem:[#allocation2 + $0x568] sm:$0xff]
    %v257 = vld [vmem:[#allocation2 + $0x570] sm:$0xff]
    %v258 = vld [vmem:[#allocation2 + $0x578] sm:$0xff]
    %v259 = vld [vmem:[#allocation2 + $0x580] sm:$0xff]
    %v260 = vld [vmem:[#allocation2 + $0x588] sm:$0xff]
    %v261 = vld [vmem:[#allocation2 + $0x590] sm:$0xff]
    %v262 = vld [vmem:[#allocation2 + $0x598] sm:$0xff]
    %v263 = vld [vmem:[#allocation2 + $0x5a0] sm:$0xff]
    %v264 = vld [vmem:[#allocation2 + $0x5a8] sm:$0xff]
    %v265 = vld [vmem:[#allocation2 + $0x5b0] sm:$0xff]
    %v266 = vld [vmem:[#allocation2 + $0x5b8] sm:$0xff]
    %v267 = vld [vmem:[#allocation2 + $0x5c0] sm:$0xff]
    %v268 = vld [vmem:[#allocation2 + $0x5c8] sm:$0xff]
    %v269 = vld [vmem:[#allocation2 + $0x5d0] sm:$0xff]
    %v270 = vld [vmem:[#allocation2 + $0x5d8] sm:$0xff]
    %v271 = vld [vmem:[#allocation2 + $0x5e0] sm:$0xff]
    %v272 = vld [vmem:[#allocation2 + $0x5e8] sm:$0xff]
    %v273 = vld [vmem:[#allocation2 + $0x5f0] sm:$0xff]
    %v274 = vld [vmem:[#allocation2 + $0x5f8] sm:$0xff]
    %v275 = vld [vmem:[#allocation2 + $0x600] sm:$0xff]
    %v276 = vld [vmem:[#allocation2 + $0x608] sm:$0xff]
    %v277 = vld [vmem:[#allocation2 + $0x610] sm:$0xff]
    %v278 = vld [vmem:[#allocation2 + $0x618] sm:$0xff]
    %v279 = vld [vmem:[#allocation2 + $0x620] sm:$0xff]
    %v280 = vld [vmem:[#allocation2 + $0x628] sm:$0xff]
    %v281 = vld [vmem:[#allocation2 + $0x630] sm:$0xff]
    %v282 = vld [vmem:[#allocation2 + $0x638] sm:$0xff]
    %v283 = vld [vmem:[#allocation2 + $0x640] sm:$0xff]
    %v284 = vld [vmem:[#allocation2 + $0x648] sm:$0xff]
    %v285 = vld [vmem:[#allocation2 + $0x650] sm:$0xff]
    %v286 = vld [vmem:[#allocation2 + $0x658] sm:$0xff]
    %v287 = vld [vmem:[#allocation2 + $0x660] sm:$0xff]
    %v288 = vld [vmem:[#allocation2 + $0x668] sm:$0xff]
    %v289 = vld [vmem:[#allocation2 + $0x670] sm:$0xff]
    %v290 = vld [vmem:[#allocation2 + $0x678] sm:$0xff]
    %v291 = vld [vmem:[#allocation2 + $0x680] sm:$0xff]
    %v292 = vld [vmem:[#allocation2 + $0x688] sm:$0xff]
    %v293 = vld [vmem:[#allocation2 + $0x690] sm:$0xff]
    %v294 = vld [vmem:[#allocation2 + $0x698] sm:$0xff]
    %v295 = vld [vmem:[#allocation2 + $0x6a0] sm:$0xff]
    %v296 = vld [vmem:[#allocation2 + $0x6a8] sm:$0xff]
    %v297 = vld [vmem:[#allocation2 + $0x6b0] sm:$0xff]
    %v298 = vld [vmem:[#allocation2 + $0x6b8] sm:$0xff]
    %v299 = vld [vmem:[#allocation2 + $0x6c0] sm:$0xff]
    %v300 = vld [vmem:[#allocation2 + $0x6c8] sm:$0xff]
    %v301 = vld [vmem:[#allocation2 + $0x6d0] sm:$0xff]
    %v302 = vld [vmem:[#allocation2 + $0x6d8] sm:$0xff]
    %v303 = vld [vmem:[#allocation2 + $0x6e0] sm:$0xff]
    %v304 = vld [vmem:[#allocation2 + $0x6e8] sm:$0xff]
    %v305 = vld [vmem:[#allocation2 + $0x6f0] sm:$0xff]
    %v306 = vld [vmem:[#allocation2 + $0x6f8] sm:$0xff]
    %v307 = vld [vmem:[%s3] sm:$0xf]
    %v309 = vlaneseq
    %v310 = vshrl.u32 %v309, 7
    %v311 = vsub.s32 0, %v310
    %v312 = vrot.slane %v307, %v311
    %v313 = vlaneseq
    %v314 = vshrl.u32 %v313, 7
    %v315 = vsub.s32 1, %v314
    %v316 = vrot.slane %v307, %v315
    %v317 = vlaneseq
    %v318 = vshrl.u32 %v317, 7
    %v319 = vsub.s32 2, %v318
    %v320 = vrot.slane %v307, %v319
    %v321 = vlaneseq
    %v322 = vshrl.u32 %v321, 7
    %v323 = vsub.s32 3, %v322
    %v324 = vrot.slane %v307, %v323
    %v333 = vunpack.c.l.b16 %v79
    %v334 = vunpack.c.h.b16 %v79
    %v335 = vunpack.c.l.b16 %v80
    %v336 = vunpack.c.h.b16 %v80
    %v337 = vunpack.c.l.b16 %v81
    %v338 = vunpack.c.h.b16 %v81
    %v339 = vunpack.c.l.b16 %v82
    %v340 = vpack.c.b16 %v333, %v333
    %v341 = vpack.c.b16 %v334, %v334
    %v342 = vpack.c.b16 %v335, %v335
    %v343 = vpack.c.b16 %v336, %v336
    %v344 = vpack.c.b16 %v337, %v337
    %v345 = vpack.c.b16 %v338, %v338
    %v346 = vpack.c.b16 %v339, %v339
    %v578 = vunpack.c.l.b16 %v83
    %v579 = vunpack.c.h.b16 %v83
    %v580 = vunpack.c.l.b16 %v84
    %v581 = vunpack.c.h.b16 %v84
    %v582 = vunpack.c.l.b16 %v85
    %v583 = vunpack.c.h.b16 %v85
    %v584 = vunpack.c.l.b16 %v86
    %v585 = vunpack.c.h.b16 %v86
    %v586 = vunpack.c.l.b16 %v87
    %v587 = vunpack.c.h.b16 %v87
    %v588 = vunpack.c.l.b16 %v88
    %v589 = vunpack.c.h.b16 %v88
    %v590 = vunpack.c.l.b16 %v89
    %v591 = vunpack.c.h.b16 %v89
    %v592 = vunpack.c.l.b16 %v90
    %v593 = vunpack.c.h.b16 %v90
    %v594 = vunpack.c.l.b16 %v91
    %v595 = vunpack.c.h.b16 %v91
    %v596 = vunpack.c.l.b16 %v92
    %v597 = vunpack.c.h.b16 %v92
    %v598 = vunpack.c.l.b16 %v93
    %v599 = vunpack.c.h.b16 %v93
    %v600 = vunpack.c.l.b16 %v94
    %v601 = vunpack.c.h.b16 %v94
    %v602 = vunpack.c.l.b16 %v95
    %v603 = vunpack.c.h.b16 %v95
    %v604 = vunpack.c.l.b16 %v96
    %v605 = vunpack.c.h.b16 %v96
    %v606 = vunpack.c.l.b16 %v97
    %v607 = vunpack.c.h.b16 %v97
    %v608 = vunpack.c.l.b16 %v98
    %v609 = vunpack.c.h.b16 %v98
    %v610 = vunpack.c.l.b16 %v99
    %v611 = vunpack.c.h.b16 %v99
    %v612 = vunpack.c.l.b16 %v100
    %v613 = vunpack.c.h.b16 %v100
    %v614 = vunpack.c.l.b16 %v101
    %v615 = vunpack.c.h.b16 %v101
    %v616 = vunpack.c.l.b16 %v102
    %v617 = vunpack.c.h.b16 %v102
    %v618 = vunpack.c.l.b16 %v103
    %v619 = vunpack.c.h.b16 %v103
    %v620 = vunpack.c.l.b16 %v104
    %v621 = vunpack.c.h.b16 %v104
    %v622 = vunpack.c.l.b16 %v105
    %v623 = vunpack.c.h.b16 %v105
    %v624 = vunpack.c.l.b16 %v106
    %v625 = vunpack.c.h.b16 %v106
    %v626 = vunpack.c.l.b16 %v107
    %v627 = vunpack.c.h.b16 %v107
    %v628 = vunpack.c.l.b16 %v108
    %v629 = vunpack.c.h.b16 %v108
    %v630 = vunpack.c.l.b16 %v109
    %v631 = vunpack.c.h.b16 %v109
    %v632 = vunpack.c.l.b16 %v110
    %v633 = vunpack.c.h.b16 %v110
    %v634 = vunpack.c.l.b16 %v111
    %v635 = vunpack.c.h.b16 %v111
    %v636 = vunpack.c.l.b16 %v112
    %v637 = vunpack.c.h.b16 %v112
    %v638 = vunpack.c.l.b16 %v113
    %v639 = vunpack.c.h.b16 %v113
    %v640 = vunpack.c.l.b16 %v114
    %v641 = vunpack.c.h.b16 %v114
    %v642 = vunpack.c.l.b16 %v115
    %v643 = vunpack.c.h.b16 %v115
    %v644 = vunpack.c.l.b16 %v116
    %v645 = vunpack.c.h.b16 %v116
    %v646 = vunpack.c.l.b16 %v117
    %v647 = vunpack.c.h.b16 %v117
    %v648 = vunpack.c.l.b16 %v118
    %v649 = vunpack.c.h.b16 %v118
    %v650 = vunpack.c.l.b16 %v119
    %v651 = vunpack.c.h.b16 %v119
    %v652 = vunpack.c.l.b16 %v120
    %v653 = vunpack.c.h.b16 %v120
    %v654 = vunpack.c.l.b16 %v121
    %v655 = vunpack.c.h.b16 %v121
    %v656 = vunpack.c.l.b16 %v122
    %v657 = vunpack.c.h.b16 %v122
    %v658 = vunpack.c.l.b16 %v123
    %v659 = vunpack.c.h.b16 %v123
    %v660 = vunpack.c.l.b16 %v124
    %v661 = vunpack.c.h.b16 %v124
    %v662 = vunpack.c.l.b16 %v125
    %v663 = vunpack.c.h.b16 %v125
    %v664 = vunpack.c.l.b16 %v126
    %v665 = vunpack.c.h.b16 %v126
    %v666 = vunpack.c.l.b16 %v127
    %v667 = vunpack.c.h.b16 %v127
    %v668 = vunpack.c.l.b16 %v128
    %v669 = vunpack.c.h.b16 %v128
    %v670 = vunpack.c.l.b16 %v129
    %v671 = vunpack.c.h.b16 %v129
    %v672 = vunpack.c.l.b16 %v130
    %v673 = vunpack.c.h.b16 %v130
    %v674 = vunpack.c.l.b16 %v131
    %v675 = vunpack.c.h.b16 %v131
    %v676 = vunpack.c.l.b16 %v132
    %v677 = vunpack.c.h.b16 %v132
    %v678 = vunpack.c.l.b16 %v133
    %v679 = vunpack.c.h.b16 %v133
    %v680 = vunpack.c.l.b16 %v134
    %v681 = vunpack.c.h.b16 %v134
    %v682 = vunpack.c.l.b16 %v135
    %v683 = vunpack.c.h.b16 %v135
    %v684 = vunpack.c.l.b16 %v136
    %v685 = vunpack.c.h.b16 %v136
    %v686 = vunpack.c.l.b16 %v137
    %v687 = vunpack.c.h.b16 %v137
    %v688 = vunpack.c.l.b16 %v138
    %v689 = vunpack.c.h.b16 %v138
    %v690 = vunpack.c.l.b16 %v139
    %v691 = vunpack.c.h.b16 %v139
    %v692 = vunpack.c.l.b16 %v140
    %v693 = vunpack.c.h.b16 %v140
    %v694 = vunpack.c.l.b16 %v141
    %v695 = vunpack.c.h.b16 %v141
    %v696 = vunpack.c.l.b16 %v142
    %v697 = vunpack.c.h.b16 %v142
    %v698 = vunpack.c.l.b16 %v143
    %v699 = vunpack.c.h.b16 %v143
    %v700 = vunpack.c.l.b16 %v144
    %v701 = vunpack.c.h.b16 %v144
    %v702 = vunpack.c.l.b16 %v145
    %v703 = vunpack.c.h.b16 %v145
    %v704 = vunpack.c.l.b16 %v146
    %v705 = vunpack.c.h.b16 %v146
    %v706 = vunpack.c.l.b16 %v147
    %v707 = vunpack.c.h.b16 %v147
    %v708 = vunpack.c.l.b16 %v148
    %v709 = vunpack.c.h.b16 %v148
    %v710 = vunpack.c.l.b16 %v149
    %v711 = vunpack.c.h.b16 %v149
    %v712 = vunpack.c.l.b16 %v150
    %v713 = vunpack.c.h.b16 %v150
    %v714 = vunpack.c.l.b16 %v151
    %v715 = vunpack.c.h.b16 %v151
    %v716 = vunpack.c.l.b16 %v152
    %v717 = vunpack.c.h.b16 %v152
    %v718 = vunpack.c.l.b16 %v153
    %v719 = vunpack.c.h.b16 %v153
    %v720 = vunpack.c.l.b16 %v154
    %v721 = vunpack.c.h.b16 %v154
    %v722 = vunpack.c.l.b16 %v155
    %v723 = vunpack.c.h.b16 %v155
    %v724 = vunpack.c.l.b16 %v156
    %v725 = vunpack.c.h.b16 %v156
    %v726 = vunpack.c.l.b16 %v157
    %v727 = vunpack.c.h.b16 %v157
    %v728 = vunpack.c.l.b16 %v158
    %v729 = vunpack.c.h.b16 %v158
    %v730 = vunpack.c.l.b16 %v159
    %v731 = vunpack.c.h.b16 %v159
    %v732 = vunpack.c.l.b16 %v160
    %v733 = vunpack.c.h.b16 %v160
    %v734 = vunpack.c.l.b16 %v161
    %v735 = vunpack.c.h.b16 %v161
    %v736 = vunpack.c.l.b16 %v162
    %v737 = vunpack.c.h.b16 %v162
    %v738 = vunpack.c.l.b16 %v163
    %v739 = vunpack.c.h.b16 %v163
    %v740 = vunpack.c.l.b16 %v164
    %v741 = vunpack.c.h.b16 %v164
    %v742 = vunpack.c.l.b16 %v165
    %v743 = vunpack.c.h.b16 %v165
    %v744 = vunpack.c.l.b16 %v166
    %v745 = vunpack.c.h.b16 %v166
    %v746 = vunpack.c.l.b16 %v167
    %v747 = vunpack.c.h.b16 %v167
    %v748 = vunpack.c.l.b16 %v168
    %v749 = vunpack.c.h.b16 %v168
    %v750 = vunpack.c.l.b16 %v169
    %v751 = vunpack.c.h.b16 %v169
    %v752 = vunpack.c.l.b16 %v170
    %v753 = vunpack.c.h.b16 %v170
    %v754 = vunpack.c.l.b16 %v171
    %v755 = vunpack.c.h.b16 %v171
    %v756 = vunpack.c.l.b16 %v172
    %v757 = vunpack.c.h.b16 %v172
    %v758 = vunpack.c.l.b16 %v173
    %v759 = vunpack.c.h.b16 %v173
    %v760 = vunpack.c.l.b16 %v174
    %v761 = vunpack.c.h.b16 %v174
    %v762 = vunpack.c.l.b16 %v175
    %v763 = vunpack.c.h.b16 %v175
    %v764 = vunpack.c.l.b16 %v176
    %v765 = vunpack.c.h.b16 %v176
    %v766 = vunpack.c.l.b16 %v177
    %v767 = vunpack.c.h.b16 %v177
    %v768 = vunpack.c.l.b16 %v178
    %v769 = vunpack.c.h.b16 %v178
    %v770 = vunpack.c.l.b16 %v179
    %v771 = vunpack.c.h.b16 %v179
    %v772 = vunpack.c.l.b16 %v180
    %v773 = vunpack.c.h.b16 %v180
    %v774 = vunpack.c.l.b16 %v181
    %v775 = vunpack.c.h.b16 %v181
    %v776 = vunpack.c.l.b16 %v182
    %v777 = vunpack.c.h.b16 %v182
    %v778 = vunpack.c.l.b16 %v183
    %v779 = vunpack.c.h.b16 %v183
    %v780 = vunpack.c.l.b16 %v184
    %v781 = vunpack.c.h.b16 %v184
    %v782 = vunpack.c.l.b16 %v185
    %v783 = vunpack.c.h.b16 %v185
    %v784 = vunpack.c.l.b16 %v186
    %v785 = vunpack.c.h.b16 %v186
    %v786 = vunpack.c.l.b16 %v187
    %v787 = vunpack.c.h.b16 %v187
    %v788 = vunpack.c.l.b16 %v188
    %v789 = vunpack.c.h.b16 %v188
    %v790 = vunpack.c.l.b16 %v189
    %v791 = vunpack.c.h.b16 %v189
    %v792 = vunpack.c.l.b16 %v190
    %v793 = vunpack.c.h.b16 %v190
    %v794 = vunpack.c.l.b16 %v191
    %v795 = vunpack.c.h.b16 %v191
    %v796 = vunpack.c.l.b16 %v192
    %v797 = vunpack.c.h.b16 %v192
    %v798 = vunpack.c.l.b16 %v193
    %v799 = vunpack.c.h.b16 %v193
    %v800 = vunpack.c.l.b16 %v194
    %v801 = vunpack.c.h.b16 %v194
    %v802 = vunpack.c.l.b16 %v195
    %v803 = vunpack.c.h.b16 %v195
    %v804 = vunpack.c.l.b16 %v196
    %v805 = vunpack.c.h.b16 %v196
    %v806 = vunpack.c.l.b16 %v197
    %v807 = vunpack.c.h.b16 %v197
    %v808 = vunpack.c.l.b16 %v198
    %v809 = vunpack.c.h.b16 %v198
    %v810 = vunpack.c.l.b16 %v199
    %v811 = vunpack.c.h.b16 %v199
    %v812 = vunpack.c.l.b16 %v200
    %v813 = vunpack.c.h.b16 %v200
    %v814 = vunpack.c.l.b16 %v201
    %v815 = vunpack.c.h.b16 %v201
    %v816 = vunpack.c.l.b16 %v202
    %v817 = vunpack.c.h.b16 %v202
    %v818 = vunpack.c.l.b16 %v203
    %v819 = vunpack.c.h.b16 %v203
    %v820 = vunpack.c.l.b16 %v204
    %v821 = vunpack.c.h.b16 %v204
    %v822 = vunpack.c.l.b16 %v205
    %v823 = vunpack.c.h.b16 %v205
    %v824 = vunpack.c.l.b16 %v206
    %v825 = vunpack.c.h.b16 %v206
    %v826 = vunpack.c.l.b16 %v207
    %v827 = vunpack.c.h.b16 %v207
    %v828 = vunpack.c.l.b16 %v208
    %v829 = vunpack.c.h.b16 %v208
    %v830 = vunpack.c.l.b16 %v209
    %v831 = vunpack.c.h.b16 %v209
    %v832 = vunpack.c.l.b16 %v210
    %v833 = vunpack.c.h.b16 %v210
    %v834 = vunpack.c.l.b16 %v211
    %v835 = vunpack.c.h.b16 %v211
    %v836 = vunpack.c.l.b16 %v212
    %v837 = vunpack.c.h.b16 %v212
    %v838 = vunpack.c.l.b16 %v213
    %v839 = vunpack.c.h.b16 %v213
    %v840 = vunpack.c.l.b16 %v214
    %v841 = vunpack.c.h.b16 %v214
    %v842 = vunpack.c.l.b16 %v215
    %v843 = vunpack.c.h.b16 %v215
    %v844 = vunpack.c.l.b16 %v216
    %v845 = vunpack.c.h.b16 %v216
    %v846 = vunpack.c.l.b16 %v217
    %v847 = vunpack.c.h.b16 %v217
    %v848 = vunpack.c.l.b16 %v218
    %v849 = vunpack.c.h.b16 %v218
    %v850 = vunpack.c.l.b16 %v219
    %v851 = vunpack.c.h.b16 %v219
    %v852 = vunpack.c.l.b16 %v220
    %v853 = vunpack.c.h.b16 %v220
    %v854 = vunpack.c.l.b16 %v221
    %v855 = vunpack.c.h.b16 %v221
    %v856 = vunpack.c.l.b16 %v222
    %v857 = vunpack.c.h.b16 %v222
    %v858 = vunpack.c.l.b16 %v223
    %v859 = vunpack.c.h.b16 %v223
    %v860 = vunpack.c.l.b16 %v224
    %v861 = vunpack.c.h.b16 %v224
    %v862 = vunpack.c.l.b16 %v225
    %v863 = vunpack.c.h.b16 %v225
    %v864 = vunpack.c.l.b16 %v226
    %v865 = vunpack.c.h.b16 %v226
    %v866 = vunpack.c.l.b16 %v227
    %v867 = vunpack.c.h.b16 %v227
    %v868 = vunpack.c.l.b16 %v228
    %v869 = vunpack.c.h.b16 %v228
    %v870 = vunpack.c.l.b16 %v229
    %v871 = vunpack.c.h.b16 %v229
    %v872 = vunpack.c.l.b16 %v230
    %v873 = vunpack.c.h.b16 %v230
    %v874 = vunpack.c.l.b16 %v231
    %v875 = vunpack.c.h.b16 %v231
    %v876 = vunpack.c.l.b16 %v232
    %v877 = vunpack.c.h.b16 %v232
    %v878 = vunpack.c.l.b16 %v233
    %v879 = vunpack.c.h.b16 %v233
    %v880 = vunpack.c.l.b16 %v234
    %v881 = vunpack.c.h.b16 %v234
    %v882 = vunpack.c.l.b16 %v235
    %v883 = vunpack.c.h.b16 %v235
    %v884 = vunpack.c.l.b16 %v236
    %v885 = vunpack.c.h.b16 %v236
    %v886 = vunpack.c.l.b16 %v237
    %v887 = vunpack.c.h.b16 %v237
    %v888 = vunpack.c.l.b16 %v238
    %v889 = vunpack.c.h.b16 %v238
    %v890 = vunpack.c.l.b16 %v239
    %v891 = vunpack.c.h.b16 %v239
    %v892 = vunpack.c.l.b16 %v240
    %v893 = vunpack.c.h.b16 %v240
    %v894 = vunpack.c.l.b16 %v241
    %v895 = vunpack.c.h.b16 %v241
    %v896 = vunpack.c.l.b16 %v242
    %v897 = vunpack.c.h.b16 %v242
    %v898 = vunpack.c.l.b16 %v243
    %v899 = vunpack.c.h.b16 %v243
    %v900 = vunpack.c.l.b16 %v244
    %v901 = vunpack.c.h.b16 %v244
    %v902 = vunpack.c.l.b16 %v245
    %v903 = vunpack.c.h.b16 %v245
    %v904 = vunpack.c.l.b16 %v246
    %v905 = vunpack.c.h.b16 %v246
    %v906 = vunpack.c.l.b16 %v247
    %v907 = vunpack.c.h.b16 %v247
    %v908 = vunpack.c.l.b16 %v248
    %v909 = vunpack.c.h.b16 %v248
    %v910 = vunpack.c.l.b16 %v249
    %v911 = vunpack.c.h.b16 %v249
    %v912 = vunpack.c.l.b16 %v250
    %v913 = vunpack.c.h.b16 %v250
    %v914 = vunpack.c.l.b16 %v251
    %v915 = vunpack.c.h.b16 %v251
    %v916 = vunpack.c.l.b16 %v252
    %v917 = vunpack.c.h.b16 %v252
    %v918 = vunpack.c.l.b16 %v253
    %v919 = vunpack.c.h.b16 %v253
    %v920 = vunpack.c.l.b16 %v254
    %v921 = vunpack.c.h.b16 %v254
    %v922 = vunpack.c.l.b16 %v255
    %v923 = vunpack.c.h.b16 %v255
    %v924 = vunpack.c.l.b16 %v256
    %v925 = vunpack.c.h.b16 %v256
    %v926 = vunpack.c.l.b16 %v257
    %v927 = vunpack.c.h.b16 %v257
    %v928 = vunpack.c.l.b16 %v258
    %v929 = vunpack.c.h.b16 %v258
    %v930 = vunpack.c.l.b16 %v259
    %v931 = vunpack.c.h.b16 %v259
    %v932 = vunpack.c.l.b16 %v260
    %v933 = vunpack.c.h.b16 %v260
    %v934 = vunpack.c.l.b16 %v261
    %v935 = vunpack.c.h.b16 %v261
    %v936 = vunpack.c.l.b16 %v262
    %v937 = vunpack.c.h.b16 %v262
    %v938 = vunpack.c.l.b16 %v263
    %v939 = vunpack.c.h.b16 %v263
    %v940 = vunpack.c.l.b16 %v264
    %v941 = vunpack.c.h.b16 %v264
    %v942 = vunpack.c.l.b16 %v265
    %v943 = vunpack.c.h.b16 %v265
    %v944 = vunpack.c.l.b16 %v266
    %v945 = vunpack.c.h.b16 %v266
    %v946 = vunpack.c.l.b16 %v267
    %v947 = vunpack.c.h.b16 %v267
    %v948 = vunpack.c.l.b16 %v268
    %v949 = vunpack.c.h.b16 %v268
    %v950 = vunpack.c.l.b16 %v269
    %v951 = vunpack.c.h.b16 %v269
    %v952 = vunpack.c.l.b16 %v270
    %v953 = vunpack.c.h.b16 %v270
    %v954 = vunpack.c.l.b16 %v271
    %v955 = vunpack.c.h.b16 %v271
    %v956 = vunpack.c.l.b16 %v272
    %v957 = vunpack.c.h.b16 %v272
    %v958 = vunpack.c.l.b16 %v273
    %v959 = vunpack.c.h.b16 %v273
    %v960 = vunpack.c.l.b16 %v274
    %v961 = vunpack.c.h.b16 %v274
    %v962 = vunpack.c.l.b16 %v275
    %v963 = vunpack.c.h.b16 %v275
    %v964 = vunpack.c.l.b16 %v276
    %v965 = vunpack.c.h.b16 %v276
    %v966 = vunpack.c.l.b16 %v277
    %v967 = vunpack.c.h.b16 %v277
    %v968 = vunpack.c.l.b16 %v278
    %v969 = vunpack.c.h.b16 %v278
    %v970 = vunpack.c.l.b16 %v279
    %v971 = vunpack.c.h.b16 %v279
    %v972 = vunpack.c.l.b16 %v280
    %v973 = vunpack.c.h.b16 %v280
    %v974 = vunpack.c.l.b16 %v281
    %v975 = vunpack.c.h.b16 %v281
    %v976 = vunpack.c.l.b16 %v282
    %v977 = vunpack.c.h.b16 %v282
    %v978 = vunpack.c.l.b16 %v283
    %v979 = vunpack.c.h.b16 %v283
    %v980 = vunpack.c.l.b16 %v284
    %v981 = vunpack.c.h.b16 %v284
    %v982 = vunpack.c.l.b16 %v285
    %v983 = vunpack.c.h.b16 %v285
    %v984 = vunpack.c.l.b16 %v286
    %v985 = vunpack.c.h.b16 %v286
    %v986 = vunpack.c.l.b16 %v287
    %v987 = vunpack.c.h.b16 %v287
    %v988 = vunpack.c.l.b16 %v288
    %v989 = vunpack.c.h.b16 %v288
    %v990 = vunpack.c.l.b16 %v289
    %v991 = vunpack.c.h.b16 %v289
    %v992 = vunpack.c.l.b16 %v290
    %v993 = vunpack.c.h.b16 %v290
    %v994 = vunpack.c.l.b16 %v291
    %v995 = vunpack.c.h.b16 %v291
    %v996 = vunpack.c.l.b16 %v292
    %v997 = vunpack.c.h.b16 %v292
    %v998 = vunpack.c.l.b16 %v293
    %v999 = vunpack.c.h.b16 %v293
    %v1000 = vunpack.c.l.b16 %v294
    %v1001 = vunpack.c.h.b16 %v294
    %v1002 = vunpack.c.l.b16 %v295
    %v1003 = vunpack.c.h.b16 %v295
    %v1004 = vunpack.c.l.b16 %v296
    %v1005 = vunpack.c.h.b16 %v296
    %v1006 = vunpack.c.l.b16 %v297
    %v1007 = vunpack.c.h.b16 %v297
    %v1008 = vunpack.c.l.b16 %v298
    %v1009 = vunpack.c.h.b16 %v298
    %v1010 = vunpack.c.l.b16 %v299
    %v1011 = vunpack.c.h.b16 %v299
    %v1012 = vunpack.c.l.b16 %v300
    %v1013 = vunpack.c.h.b16 %v300
    %v1014 = vunpack.c.l.b16 %v301
    %v1015 = vunpack.c.h.b16 %v301
    %v1016 = vunpack.c.l.b16 %v302
    %v1017 = vunpack.c.h.b16 %v302
    %v1018 = vunpack.c.l.b16 %v303
    %v1019 = vunpack.c.h.b16 %v303
    %v1020 = vunpack.c.l.b16 %v304
    %v1021 = vunpack.c.h.b16 %v304
    %v1022 = vunpack.c.l.b16 %v305
    %v1023 = vunpack.c.h.b16 %v305
    %v1024 = vunpack.c.l.b16 %v306
    %v1025 = vunpack.c.h.b16 %v306
    %v1026 = vpack.c.b16 %v582, %v578
    %v1027 = vpack.c.b16 %v583, %v579
    %v1028 = vpack.c.b16 %v584, %v580
    %v1029 = vpack.c.b16 %v585, %v581
    %v1030 = vpack.c.b16 %v590, %v586
    %v1031 = vpack.c.b16 %v591, %v587
    %v1032 = vpack.c.b16 %v592, %v588
    %v1033 = vpack.c.b16 %v593, %v589
    %v1034 = vpack.c.b16 %v598, %v594
    %v1035 = vpack.c.b16 %v599, %v595
    %v1036 = vpack.c.b16 %v600, %v596
    %v1037 = vpack.c.b16 %v601, %v597
    %v1038 = vpack.c.b16 %v606, %v602
    %v1039 = vpack.c.b16 %v607, %v603
    %v1040 = vpack.c.b16 %v608, %v604
    %v1041 = vpack.c.b16 %v609, %v605
    %v1042 = vpack.c.b16 %v614, %v610
    %v1043 = vpack.c.b16 %v615, %v611
    %v1044 = vpack.c.b16 %v616, %v612
    %v1045 = vpack.c.b16 %v617, %v613
    %v1046 = vpack.c.b16 %v622, %v618
    %v1047 = vpack.c.b16 %v623, %v619
    %v1048 = vpack.c.b16 %v624, %v620
    %v1049 = vpack.c.b16 %v625, %v621
    %v1050 = vpack.c.b16 %v630, %v626
    %v1051 = vpack.c.b16 %v631, %v627
    %v1052 = vpack.c.b16 %v632, %v628
    %v1053 = vpack.c.b16 %v633, %v629
    %v1054 = vpack.c.b16 %v638, %v634
    %v1055 = vpack.c.b16 %v639, %v635
    %v1056 = vpack.c.b16 %v640, %v636
    %v1057 = vpack.c.b16 %v641, %v637
    %v1058 = vpack.c.b16 %v646, %v642
    %v1059 = vpack.c.b16 %v647, %v643
    %v1060 = vpack.c.b16 %v648, %v644
    %v1061 = vpack.c.b16 %v649, %v645
    %v1062 = vpack.c.b16 %v654, %v650
    %v1063 = vpack.c.b16 %v655, %v651
    %v1064 = vpack.c.b16 %v656, %v652
    %v1065 = vpack.c.b16 %v657, %v653
    %v1066 = vpack.c.b16 %v662, %v658
    %v1067 = vpack.c.b16 %v663, %v659
    %v1068 = vpack.c.b16 %v664, %v660
    %v1069 = vpack.c.b16 %v665, %v661
    %v1070 = vpack.c.b16 %v670, %v666
    %v1071 = vpack.c.b16 %v671, %v667
    %v1072 = vpack.c.b16 %v672, %v668
    %v1073 = vpack.c.b16 %v673, %v669
    %v1074 = vpack.c.b16 %v678, %v674
    %v1075 = vpack.c.b16 %v679, %v675
    %v1076 = vpack.c.b16 %v680, %v676
    %v1077 = vpack.c.b16 %v681, %v677
    %v1078 = vpack.c.b16 %v686, %v682
    %v1079 = vpack.c.b16 %v687, %v683
    %v1080 = vpack.c.b16 %v688, %v684
    %v1081 = vpack.c.b16 %v689, %v685
    %v1082 = vpack.c.b16 %v694, %v690
    %v1083 = vpack.c.b16 %v695, %v691
    %v1084 = vpack.c.b16 %v696, %v692
    %v1085 = vpack.c.b16 %v697, %v693
    %v1086 = vpack.c.b16 %v702, %v698
    %v1087 = vpack.c.b16 %v703, %v699
    %v1088 = vpack.c.b16 %v704, %v700
    %v1089 = vpack.c.b16 %v705, %v701
    %v1090 = vpack.c.b16 %v710, %v706
    %v1091 = vpack.c.b16 %v711, %v707
    %v1092 = vpack.c.b16 %v712, %v708
    %v1093 = vpack.c.b16 %v713, %v709
    %v1094 = vpack.c.b16 %v718, %v714
    %v1095 = vpack.c.b16 %v719, %v715
    %v1096 = vpack.c.b16 %v720, %v716
    %v1097 = vpack.c.b16 %v721, %v717
    %v1098 = vpack.c.b16 %v726, %v722
    %v1099 = vpack.c.b16 %v727, %v723
    %v1100 = vpack.c.b16 %v728, %v724
    %v1101 = vpack.c.b16 %v729, %v725
    %v1102 = vpack.c.b16 %v734, %v730
    %v1103 = vpack.c.b16 %v735, %v731
    %v1104 = vpack.c.b16 %v736, %v732
    %v1105 = vpack.c.b16 %v737, %v733
    %v1106 = vpack.c.b16 %v742, %v738
    %v1107 = vpack.c.b16 %v743, %v739
    %v1108 = vpack.c.b16 %v744, %v740
    %v1109 = vpack.c.b16 %v745, %v741
    %v1110 = vpack.c.b16 %v750, %v746
    %v1111 = vpack.c.b16 %v751, %v747
    %v1112 = vpack.c.b16 %v752, %v748
    %v1113 = vpack.c.b16 %v753, %v749
    %v1114 = vpack.c.b16 %v758, %v754
    %v1115 = vpack.c.b16 %v759, %v755
    %v1116 = vpack.c.b16 %v760, %v756
    %v1117 = vpack.c.b16 %v761, %v757
    %v1118 = vpack.c.b16 %v766, %v762
    %v1119 = vpack.c.b16 %v767, %v763
    %v1120 = vpack.c.b16 %v768, %v764
    %v1121 = vpack.c.b16 %v769, %v765
    %v1122 = vpack.c.b16 %v774, %v770
    %v1123 = vpack.c.b16 %v775, %v771
    %v1124 = vpack.c.b16 %v776, %v772
    %v1125 = vpack.c.b16 %v777, %v773
    %v1126 = vpack.c.b16 %v782, %v778
    %v1127 = vpack.c.b16 %v783, %v779
    %v1128 = vpack.c.b16 %v784, %v780
    %v1129 = vpack.c.b16 %v785, %v781
    %v1130 = vpack.c.b16 %v790, %v786
    %v1131 = vpack.c.b16 %v791, %v787
    %v1132 = vpack.c.b16 %v792, %v788
    %v1133 = vpack.c.b16 %v793, %v789
    %v1134 = vpack.c.b16 %v798, %v794
    %v1135 = vpack.c.b16 %v799, %v795
    %v1136 = vpack.c.b16 %v800, %v796
    %v1137 = vpack.c.b16 %v801, %v797
    %v1138 = vpack.c.b16 %v806, %v802
    %v1139 = vpack.c.b16 %v807, %v803
    %v1140 = vpack.c.b16 %v808, %v804
    %v1141 = vpack.c.b16 %v809, %v805
    %v1142 = vpack.c.b16 %v814, %v810
    %v1143 = vpack.c.b16 %v815, %v811
    %v1144 = vpack.c.b16 %v816, %v812
    %v1145 = vpack.c.b16 %v817, %v813
    %v1146 = vpack.c.b16 %v822, %v818
    %v1147 = vpack.c.b16 %v823, %v819
    %v1148 = vpack.c.b16 %v824, %v820
    %v1149 = vpack.c.b16 %v825, %v821
    %v1150 = vpack.c.b16 %v830, %v826
    %v1151 = vpack.c.b16 %v831, %v827
    %v1152 = vpack.c.b16 %v832, %v828
    %v1153 = vpack.c.b16 %v833, %v829
    %v1154 = vpack.c.b16 %v838, %v834
    %v1155 = vpack.c.b16 %v839, %v835
    %v1156 = vpack.c.b16 %v840, %v836
    %v1157 = vpack.c.b16 %v841, %v837
    %v1158 = vpack.c.b16 %v846, %v842
    %v1159 = vpack.c.b16 %v847, %v843
    %v1160 = vpack.c.b16 %v848, %v844
    %v1161 = vpack.c.b16 %v849, %v845
    %v1162 = vpack.c.b16 %v854, %v850
    %v1163 = vpack.c.b16 %v855, %v851
    %v1164 = vpack.c.b16 %v856, %v852
    %v1165 = vpack.c.b16 %v857, %v853
    %v1166 = vpack.c.b16 %v862, %v858
    %v1167 = vpack.c.b16 %v863, %v859
    %v1168 = vpack.c.b16 %v864, %v860
    %v1169 = vpack.c.b16 %v865, %v861
    %v1170 = vpack.c.b16 %v870, %v866
    %v1171 = vpack.c.b16 %v871, %v867
    %v1172 = vpack.c.b16 %v872, %v868
    %v1173 = vpack.c.b16 %v873, %v869
    %v1174 = vpack.c.b16 %v878, %v874
    %v1175 = vpack.c.b16 %v879, %v875
    %v1176 = vpack.c.b16 %v880, %v876
    %v1177 = vpack.c.b16 %v881, %v877
    %v1178 = vpack.c.b16 %v886, %v882
    %v1179 = vpack.c.b16 %v887, %v883
    %v1180 = vpack.c.b16 %v888, %v884
    %v1181 = vpack.c.b16 %v889, %v885
    %v1182 = vpack.c.b16 %v894, %v890
    %v1183 = vpack.c.b16 %v895, %v891
    %v1184 = vpack.c.b16 %v896, %v892
    %v1185 = vpack.c.b16 %v897, %v893
    %v1186 = vpack.c.b16 %v902, %v898
    %v1187 = vpack.c.b16 %v903, %v899
    %v1188 = vpack.c.b16 %v904, %v900
    %v1189 = vpack.c.b16 %v905, %v901
    %v1190 = vpack.c.b16 %v910, %v906
    %v1191 = vpack.c.b16 %v911, %v907
    %v1192 = vpack.c.b16 %v912, %v908
    %v1193 = vpack.c.b16 %v913, %v909
    %v1194 = vpack.c.b16 %v918, %v914
    %v1195 = vpack.c.b16 %v919, %v915
    %v1196 = vpack.c.b16 %v920, %v916
    %v1197 = vpack.c.b16 %v921, %v917
    %v1198 = vpack.c.b16 %v926, %v922
    %v1199 = vpack.c.b16 %v927, %v923
    %v1200 = vpack.c.b16 %v928, %v924
    %v1201 = vpack.c.b16 %v929, %v925
    %v1202 = vpack.c.b16 %v934, %v930
    %v1203 = vpack.c.b16 %v935, %v931
    %v1204 = vpack.c.b16 %v936, %v932
    %v1205 = vpack.c.b16 %v937, %v933
    %v1206 = vpack.c.b16 %v942, %v938
    %v1207 = vpack.c.b16 %v943, %v939
    %v1208 = vpack.c.b16 %v944, %v940
    %v1209 = vpack.c.b16 %v945, %v941
    %v1210 = vpack.c.b16 %v950, %v946
    %v1211 = vpack.c.b16 %v951, %v947
    %v1212 = vpack.c.b16 %v952, %v948
    %v1213 = vpack.c.b16 %v953, %v949
    %v1214 = vpack.c.b16 %v958, %v954
    %v1215 = vpack.c.b16 %v959, %v955
    %v1216 = vpack.c.b16 %v960, %v956
    %v1217 = vpack.c.b16 %v961, %v957
    %v1218 = vpack.c.b16 %v966, %v962
    %v1219 = vpack.c.b16 %v967, %v963
    %v1220 = vpack.c.b16 %v968, %v964
    %v1221 = vpack.c.b16 %v969, %v965
    %v1222 = vpack.c.b16 %v974, %v970
    %v1223 = vpack.c.b16 %v975, %v971
    %v1224 = vpack.c.b16 %v976, %v972
    %v1225 = vpack.c.b16 %v977, %v973
    %v1226 = vpack.c.b16 %v982, %v978
    %v1227 = vpack.c.b16 %v983, %v979
    %v1228 = vpack.c.b16 %v984, %v980
    %v1229 = vpack.c.b16 %v985, %v981
    %v1230 = vpack.c.b16 %v990, %v986
    %v1231 = vpack.c.b16 %v991, %v987
    %v1232 = vpack.c.b16 %v992, %v988
    %v1233 = vpack.c.b16 %v993, %v989
    %v1234 = vpack.c.b16 %v998, %v994
    %v1235 = vpack.c.b16 %v999, %v995
    %v1236 = vpack.c.b16 %v1000, %v996
    %v1237 = vpack.c.b16 %v1001, %v997
    %v1238 = vpack.c.b16 %v1006, %v1002
    %v1239 = vpack.c.b16 %v1007, %v1003
    %v1240 = vpack.c.b16 %v1008, %v1004
    %v1241 = vpack.c.b16 %v1009, %v1005
    %v1242 = vpack.c.b16 %v1014, %v1010
    %v1243 = vpack.c.b16 %v1015, %v1011
    %v1244 = vpack.c.b16 %v1016, %v1012
    %v1245 = vpack.c.b16 %v1017, %v1013
    %v1246 = vpack.c.b16 %v1022, %v1018
    %v1247 = vpack.c.b16 %v1023, %v1019
    %v1248 = vpack.c.b16 %v1024, %v1020
    %v1249 = vpack.c.b16 %v1025, %v1021
    %1474 = vmatprep.subr.bf16.mxu0 %v1055
    %1475 = vmatpush1.bf16.msra.mxu0 %v1054
    %1476 = vmatprep.subr.bf16.mxu0 %v1051
    %1477 = vmatpush1.bf16.msra.mxu0 %v1050
    %1478 = vmatprep.subr.bf16.mxu0 %v1047
    %1479 = vmatpush1.bf16.msra.mxu0 %v1046
    %1480 = vmatprep.subr.bf16.mxu0 %v1043
    %1481 = vmatpush1.bf16.msra.mxu0 %v1042
    %1482 = vmatprep.subr.bf16.mxu0 %v1039
    %1483 = vmatpush1.bf16.msra.mxu0 %v1038
    %1484 = vmatprep.subr.bf16.mxu0 %v1035
    %1485 = vmatpush1.bf16.msra.mxu0 %v1034
    %1486 = vmatprep.subr.bf16.mxu0 %v1031
    %1487 = vmatpush1.bf16.msra.mxu0 %v1030
    %1488 = vmatprep.subr.bf16.mxu0 %v1027
    %1489 = vmatpush1.bf16.msra.mxu0 %v1026
    %1490 = vmatprep.subr.bf16.mxu0 %v1087
    %1491 = vmatpush2.bf16.msra.mxu0 %v1086
    %1492 = vmatprep.subr.bf16.mxu0 %v1083
    %1493 = vmatpush2.bf16.msra.mxu0 %v1082
    %1494 = vmatprep.subr.bf16.mxu0 %v1079
    %1495 = vmatpush2.bf16.msra.mxu0 %v1078
    %1496 = vmatprep.subr.bf16.mxu0 %v1075
    %1497 = vmatpush2.bf16.msra.mxu0 %v1074
    %1498 = vmatprep.subr.bf16.mxu0 %v1071
    %1499 = vmatpush2.bf16.msra.mxu0 %v1070
    %1500 = vmatprep.subr.bf16.mxu0 %v1067
    %1501 = vmatpush2.bf16.msra.mxu0 %v1066
    %1502 = vmatprep.subr.bf16.mxu0 %v1063
    %1503 = vmatpush2.bf16.msra.mxu0 %v1062
    %1504 = vmatprep.subr.bf16.mxu0 %v1059
    %1505 = vmatpush2.bf16.msra.mxu0 %v1058
    %1506 = vmatprep.mubr.bf16.mxu0 %v341
    %1507 = vmatmul.mubr.bf16.gmra.mxu0 %v340
    %v1508 = vpop.f32.mrf.mxu0
    %v1509 = vadd.f32 %v312, %v1508
    %v1510 = vpop.f32.mrf.mxu0
    %v1511 = vadd.f32 %v316, %v1510
    %v1512 = vpop.f32.mrf.mxu0
    %v1513 = vpop.f32.mrf.mxu0
    %1514 = vdwg.mxu0
    %1515 = vmatprep.subr.bf16.mxu0 %v1119
    %1516 = vmatpush1.bf16.msra.mxu0 %v1118
    %1517 = vmatprep.subr.bf16.mxu0 %v1115
    %1518 = vmatpush1.bf16.msra.mxu0 %v1114
    %1519 = vmatprep.subr.bf16.mxu0 %v1111
    %1520 = vmatpush1.bf16.msra.mxu0 %v1110
    %1521 = vmatprep.subr.bf16.mxu0 %v1107
    %1522 = vmatpush1.bf16.msra.mxu0 %v1106
    %1523 = vmatprep.subr.bf16.mxu0 %v1103
    %1524 = vmatpush1.bf16.msra.mxu0 %v1102
    %1525 = vmatprep.subr.bf16.mxu0 %v1099
    %1526 = vmatpush1.bf16.msra.mxu0 %v1098
    %1527 = vmatprep.subr.bf16.mxu0 %v1095
    %1528 = vmatpush1.bf16.msra.mxu0 %v1094
    %1529 = vmatprep.subr.bf16.mxu0 %v1091
    %1530 = vmatpush1.bf16.msra.mxu0 %v1090
    %1531 = vmatprep.subr.bf16.mxu0 %v1151
    %1532 = vmatpush2.bf16.msra.mxu0 %v1150
    %1533 = vmatprep.subr.bf16.mxu0 %v1147
    %1534 = vmatpush2.bf16.msra.mxu0 %v1146
    %1535 = vmatprep.subr.bf16.mxu0 %v1143
    %1536 = vmatpush2.bf16.msra.mxu0 %v1142
    %1537 = vmatprep.subr.bf16.mxu0 %v1139
    %1538 = vmatpush2.bf16.msra.mxu0 %v1138
    %1539 = vmatprep.subr.bf16.mxu0 %v1135
    %1540 = vmatpush2.bf16.msra.mxu0 %v1134
    %1541 = vmatprep.subr.bf16.mxu0 %v1131
    %1542 = vmatpush2.bf16.msra.mxu0 %v1130
    %1543 = vmatprep.subr.bf16.mxu0 %v1127
    %1544 = vmatpush2.bf16.msra.mxu0 %v1126
    %1545 = vmatprep.subr.bf16.mxu0 %v1123
    %1546 = vmatpush2.bf16.msra.mxu0 %v1122
    %1547 = vmatprep.mubr.bf16.mxu0 %v343
    %1548 = vmatmul.mubr.bf16.gmra.mxu0 %v342
    %v1549 = vpop.f32.mrf.mxu0
    %v1550 = vadd.f32 %v1509, %v1549
    %v1551 = vpop.f32.mrf.mxu0
    %v1552 = vadd.f32 %v1511, %v1551
    %v1553 = vpop.f32.mrf.mxu0
    %v1554 = vpop.f32.mrf.mxu0
    %1555 = vdwg.mxu0
    %1556 = vmatprep.subr.bf16.mxu0 %v1183
    %1557 = vmatpush1.bf16.msra.mxu0 %v1182
    %1558 = vmatprep.subr.bf16.mxu0 %v1179
    %1559 = vmatpush1.bf16.msra.mxu0 %v1178
    %1560 = vmatprep.subr.bf16.mxu0 %v1175
    %1561 = vmatpush1.bf16.msra.mxu0 %v1174
    %1562 = vmatprep.subr.bf16.mxu0 %v1171
    %1563 = vmatpush1.bf16.msra.mxu0 %v1170
    %1564 = vmatprep.subr.bf16.mxu0 %v1167
    %1565 = vmatpush1.bf16.msra.mxu0 %v1166
    %1566 = vmatprep.subr.bf16.mxu0 %v1163
    %1567 = vmatpush1.bf16.msra.mxu0 %v1162
    %1568 = vmatprep.subr.bf16.mxu0 %v1159
    %1569 = vmatpush1.bf16.msra.mxu0 %v1158
    %1570 = vmatprep.subr.bf16.mxu0 %v1155
    %1571 = vmatpush1.bf16.msra.mxu0 %v1154
    %1572 = vmatprep.subr.bf16.mxu0 %v1215
    %1573 = vmatpush2.bf16.msra.mxu0 %v1214
    %1574 = vmatprep.subr.bf16.mxu0 %v1211
    %1575 = vmatpush2.bf16.msra.mxu0 %v1210
    %1576 = vmatprep.subr.bf16.mxu0 %v1207
    %1577 = vmatpush2.bf16.msra.mxu0 %v1206
    %1578 = vmatprep.subr.bf16.mxu0 %v1203
    %1579 = vmatpush2.bf16.msra.mxu0 %v1202
    %1580 = vmatprep.subr.bf16.mxu0 %v1199
    %1581 = vmatpush2.bf16.msra.mxu0 %v1198
    %1582 = vmatprep.subr.bf16.mxu0 %v1195
    %1583 = vmatpush2.bf16.msra.mxu0 %v1194
    %1584 = vmatprep.subr.bf16.mxu0 %v1191
    %1585 = vmatpush2.bf16.msra.mxu0 %v1190
    %1586 = vmatprep.subr.bf16.mxu0 %v1187
    %1587 = vmatpush2.bf16.msra.mxu0 %v1186
    %1588 = vmatprep.mubr.bf16.mxu0 %v345
    %1589 = vmatmul.mubr.bf16.gmra.mxu0 %v344
    %v1590 = vpop.f32.mrf.mxu0
    %v1591 = vadd.f32 %v1550, %v1590
    %v1592 = vpop.f32.mrf.mxu0
    %v1593 = vadd.f32 %v1552, %v1592
    %v1594 = vpop.f32.mrf.mxu0
    %v1595 = vpop.f32.mrf.mxu0
    %1596 = vdwg.mxu0
    %1597 = vmatprep.subr.bf16.mxu0 %v1247
    %1598 = vmatpush1.bf16.msra.mxu0 %v1246
    %1599 = vmatprep.subr.bf16.mxu0 %v1243
    %1600 = vmatpush1.bf16.msra.mxu0 %v1242
    %1601 = vmatprep.subr.bf16.mxu0 %v1239
    %1602 = vmatpush1.bf16.msra.mxu0 %v1238
    %1603 = vmatprep.subr.bf16.mxu0 %v1235
    %1604 = vmatpush1.bf16.msra.mxu0 %v1234
    %1605 = vmatprep.subr.bf16.mxu0 %v1231
    %1606 = vmatpush1.bf16.msra.mxu0 %v1230
    %1607 = vmatprep.subr.bf16.mxu0 %v1227
    %1608 = vmatpush1.bf16.msra.mxu0 %v1226
    %1609 = vmatprep.subr.bf16.mxu0 %v1223
    %1610 = vmatpush1.bf16.msra.mxu0 %v1222
    %1611 = vmatprep.subr.bf16.mxu0 %v1219
    %1612 = vmatpush1.bf16.msra.mxu0 %v1218
    %1613 = vmatprep.subr.bf16.mxu0 0
    %1614 = vmatpush2.bf16.msra.mxu0 0
    %1615 = vmatprep.subr.bf16.mxu0 0
    %1616 = vmatpush2.bf16.msra.mxu0 0
    %1617 = vmatprep.subr.bf16.mxu0 0
    %1618 = vmatpush2.bf16.msra.mxu0 0
    %1619 = vmatprep.subr.bf16.mxu0 0
    %1620 = vmatpush2.bf16.msra.mxu0 0
    %1621 = vmatprep.subr.bf16.mxu0 0
    %1622 = vmatpush2.bf16.msra.mxu0 0
    %1623 = vmatprep.subr.bf16.mxu0 0
    %1624 = vmatpush2.bf16.msra.mxu0 0
    %1625 = vmatprep.subr.bf16.mxu0 0
    %1626 = vmatpush2.bf16.msra.mxu0 0
    %1627 = vmatprep.subr.bf16.mxu0 0
    %1628 = vmatpush2.bf16.msra.mxu0 0
    %1629 = vmatprep.mubr.bf16.mxu0 0
    %1630 = vmatmul.mubr.bf16.gmra.mxu0 %v346
    %v1631 = vpop.f32.mrf.mxu0
    %v1632 = vadd.f32 %v1591, %v1631
    %v1633 = vpop.f32.mrf.mxu0
    %v1634 = vadd.f32 %v1593, %v1633
    %v1635 = vpop.f32.mrf.mxu0
    %v1636 = vpop.f32.mrf.mxu0
    %1637 = vdwg.mxu0
    %1638 = vmatprep.subr.bf16.mxu0 %v1057
    %1639 = vmatpush1.bf16.msra.mxu0 %v1056
    %1640 = vmatprep.subr.bf16.mxu0 %v1053
    %1641 = vmatpush1.bf16.msra.mxu0 %v1052
    %1642 = vmatprep.subr.bf16.mxu0 %v1049
    %1643 = vmatpush1.bf16.msra.mxu0 %v1048
    %1644 = vmatprep.subr.bf16.mxu0 %v1045
    %1645 = vmatpush1.bf16.msra.mxu0 %v1044
    %1646 = vmatprep.subr.bf16.mxu0 %v1041
    %1647 = vmatpush1.bf16.msra.mxu0 %v1040
    %1648 = vmatprep.subr.bf16.mxu0 %v1037
    %1649 = vmatpush1.bf16.msra.mxu0 %v1036
    %1650 = vmatprep.subr.bf16.mxu0 %v1033
    %1651 = vmatpush1.bf16.msra.mxu0 %v1032
    %1652 = vmatprep.subr.bf16.mxu0 %v1029
    %1653 = vmatpush1.bf16.msra.mxu0 %v1028
    %1654 = vmatprep.subr.bf16.mxu0 %v1089
    %1655 = vmatpush2.bf16.msra.mxu0 %v1088
    %1656 = vmatprep.subr.bf16.mxu0 %v1085
    %1657 = vmatpush2.bf16.msra.mxu0 %v1084
    %1658 = vmatprep.subr.bf16.mxu0 %v1081
    %1659 = vmatpush2.bf16.msra.mxu0 %v1080
    %1660 = vmatprep.subr.bf16.mxu0 %v1077
    %1661 = vmatpush2.bf16.msra.mxu0 %v1076
    %1662 = vmatprep.subr.bf16.mxu0 %v1073
    %1663 = vmatpush2.bf16.msra.mxu0 %v1072
    %1664 = vmatprep.subr.bf16.mxu0 %v1069
    %1665 = vmatpush2.bf16.msra.mxu0 %v1068
    %1666 = vmatprep.subr.bf16.mxu0 %v1065
    %1667 = vmatpush2.bf16.msra.mxu0 %v1064
    %1668 = vmatprep.subr.bf16.mxu0 %v1061
    %1669 = vmatpush2.bf16.msra.mxu0 %v1060
    %1670 = vmatprep.mubr.bf16.mxu0 %v341
    %1671 = vmatmul.mubr.bf16.gmra.mxu0 %v340
    %v1672 = vpop.f32.mrf.mxu0
    %v1673 = vadd.f32 %v320, %v1672
    %v1674 = vpop.f32.mrf.mxu0
    %v1675 = vadd.f32 %v324, %v1674
    %v1676 = vpop.f32.mrf.mxu0
    %v1677 = vpop.f32.mrf.mxu0
    %1678 = vdwg.mxu0
    %1679 = vmatprep.subr.bf16.mxu0 %v1121
    %1680 = vmatpush1.bf16.msra.mxu0 %v1120
    %1681 = vmatprep.subr.bf16.mxu0 %v1117
    %1682 = vmatpush1.bf16.msra.mxu0 %v1116
    %1683 = vmatprep.subr.bf16.mxu0 %v1113
    %1684 = vmatpush1.bf16.msra.mxu0 %v1112
    %1685 = vmatprep.subr.bf16.mxu0 %v1109
    %1686 = vmatpush1.bf16.msra.mxu0 %v1108
    %1687 = vmatprep.subr.bf16.mxu0 %v1105
    %1688 = vmatpush1.bf16.msra.mxu0 %v1104
    %1689 = vmatprep.subr.bf16.mxu0 %v1101
    %1690 = vmatpush1.bf16.msra.mxu0 %v1100
    %1691 = vmatprep.subr.bf16.mxu0 %v1097
    %1692 = vmatpush1.bf16.msra.mxu0 %v1096
    %1693 = vmatprep.subr.bf16.mxu0 %v1093
    %1694 = vmatpush1.bf16.msra.mxu0 %v1092
    %1695 = vmatprep.subr.bf16.mxu0 %v1153
    %1696 = vmatpush2.bf16.msra.mxu0 %v1152
    %1697 = vmatprep.subr.bf16.mxu0 %v1149
    %1698 = vmatpush2.bf16.msra.mxu0 %v1148
    %1699 = vmatprep.subr.bf16.mxu0 %v1145
    %1700 = vmatpush2.bf16.msra.mxu0 %v1144
    %1701 = vmatprep.subr.bf16.mxu0 %v1141
    %1702 = vmatpush2.bf16.msra.mxu0 %v1140
    %1703 = vmatprep.subr.bf16.mxu0 %v1137
    %1704 = vmatpush2.bf16.msra.mxu0 %v1136
    %1705 = vmatprep.subr.bf16.mxu0 %v1133
    %1706 = vmatpush2.bf16.msra.mxu0 %v1132
    %1707 = vmatprep.subr.bf16.mxu0 %v1129
    %1708 = vmatpush2.bf16.msra.mxu0 %v1128
    %1709 = vmatprep.subr.bf16.mxu0 %v1125
    %1710 = vmatpush2.bf16.msra.mxu0 %v1124
    %1711 = vmatprep.mubr.bf16.mxu0 %v343
    %1712 = vmatmul.mubr.bf16.gmra.mxu0 %v342
    %v1713 = vpop.f32.mrf.mxu0
    %v1714 = vadd.f32 %v1673, %v1713
    %v1715 = vpop.f32.mrf.mxu0
    %v1716 = vadd.f32 %v1675, %v1715
    %v1717 = vpop.f32.mrf.mxu0
    %v1718 = vpop.f32.mrf.mxu0
    %1719 = vdwg.mxu0
    %1720 = vmatprep.subr.bf16.mxu0 %v1185
    %1721 = vmatpush1.bf16.msra.mxu0 %v1184
    %1722 = vmatprep.subr.bf16.mxu0 %v1181
    %1723 = vmatpush1.bf16.msra.mxu0 %v1180
    %1724 = vmatprep.subr.bf16.mxu0 %v1177
    %1725 = vmatpush1.bf16.msra.mxu0 %v1176
    %1726 = vmatprep.subr.bf16.mxu0 %v1173
    %1727 = vmatpush1.bf16.msra.mxu0 %v1172
    %1728 = vmatprep.subr.bf16.mxu0 %v1169
    %1729 = vmatpush1.bf16.msra.mxu0 %v1168
    %1730 = vmatprep.subr.bf16.mxu0 %v1165
    %1731 = vmatpush1.bf16.msra.mxu0 %v1164
    %1732 = vmatprep.subr.bf16.mxu0 %v1161
    %1733 = vmatpush1.bf16.msra.mxu0 %v1160
    %1734 = vmatprep.subr.bf16.mxu0 %v1157
    %1735 = vmatpush1.bf16.msra.mxu0 %v1156
    %1736 = vmatprep.subr.bf16.mxu0 %v1217
    %1737 = vmatpush2.bf16.msra.mxu0 %v1216
    %1738 = vmatprep.subr.bf16.mxu0 %v1213
    %1739 = vmatpush2.bf16.msra.mxu0 %v1212
    %1740 = vmatprep.subr.bf16.mxu0 %v1209
    %1741 = vmatpush2.bf16.msra.mxu0 %v1208
    %1742 = vmatprep.subr.bf16.mxu0 %v1205
    %1743 = vmatpush2.bf16.msra.mxu0 %v1204
    %1744 = vmatprep.subr.bf16.mxu0 %v1201
    %1745 = vmatpush2.bf16.msra.mxu0 %v1200
    %1746 = vmatprep.subr.bf16.mxu0 %v1197
    %1747 = vmatpush2.bf16.msra.mxu0 %v1196
    %1748 = vmatprep.subr.bf16.mxu0 %v1193
    %1749 = vmatpush2.bf16.msra.mxu0 %v1192
    %1750 = vmatprep.subr.bf16.mxu0 %v1189
    %1751 = vmatpush2.bf16.msra.mxu0 %v1188
    %1752 = vmatprep.mubr.bf16.mxu0 %v345
    %1753 = vmatmul.mubr.bf16.gmra.mxu0 %v344
    %v1754 = vpop.f32.mrf.mxu0
    %v1755 = vadd.f32 %v1714, %v1754
    %v1756 = vpop.f32.mrf.mxu0
    %v1757 = vadd.f32 %v1716, %v1756
    %v1758 = vpop.f32.mrf.mxu0
    %v1759 = vpop.f32.mrf.mxu0
    %1760 = vdwg.mxu0
    %1761 = vmatprep.subr.bf16.mxu0 %v1249
    %1762 = vmatpush1.bf16.msra.mxu0 %v1248
    %1763 = vmatprep.subr.bf16.mxu0 %v1245
    %1764 = vmatpush1.bf16.msra.mxu0 %v1244
    %1765 = vmatprep.subr.bf16.mxu0 %v1241
    %1766 = vmatpush1.bf16.msra.mxu0 %v1240
    %1767 = vmatprep.subr.bf16.mxu0 %v1237
    %1768 = vmatpush1.bf16.msra.mxu0 %v1236
    %1769 = vmatprep.subr.bf16.mxu0 %v1233
    %1770 = vmatpush1.bf16.msra.mxu0 %v1232
    %1771 = vmatprep.subr.bf16.mxu0 %v1229
    %1772 = vmatpush1.bf16.msra.mxu0 %v1228
    %1773 = vmatprep.subr.bf16.mxu0 %v1225
    %1774 = vmatpush1.bf16.msra.mxu0 %v1224
    %1775 = vmatprep.subr.bf16.mxu0 %v1221
    %1776 = vmatpush1.bf16.msra.mxu0 %v1220
    %1777 = vmatprep.subr.bf16.mxu0 0
    %1778 = vmatpush2.bf16.msra.mxu0 0
    %1779 = vmatprep.subr.bf16.mxu0 0
    %1780 = vmatpush2.bf16.msra.mxu0 0
    %1781 = vmatprep.subr.bf16.mxu0 0
    %1782 = vmatpush2.bf16.msra.mxu0 0
    %1783 = vmatprep.subr.bf16.mxu0 0
    %1784 = vmatpush2.bf16.msra.mxu0 0
    %1785 = vmatprep.subr.bf16.mxu0 0
    %1786 = vmatpush2.bf16.msra.mxu0 0
    %1787 = vmatprep.subr.bf16.mxu0 0
    %1788 = vmatpush2.bf16.msra.mxu0 0
    %1789 = vmatprep.subr.bf16.mxu0 0
    %1790 = vmatpush2.bf16.msra.mxu0 0
    %1791 = vmatprep.subr.bf16.mxu0 0
    %1792 = vmatpush2.bf16.msra.mxu0 0
    %1793 = vmatprep.mubr.bf16.mxu0 0
    %1794 = vmatmul.mubr.bf16.gmra.mxu0 %v346
    %v1795 = vpop.f32.mrf.mxu0
    %v1796 = vadd.f32 %v1755, %v1795
    %v1797 = vpop.f32.mrf.mxu0
    %v1798 = vadd.f32 %v1757, %v1797
    %v1799 = vpop.f32.mrf.mxu0
    %v1800 = vpop.f32.mrf.mxu0
    %1801 = vdwg.mxu0
    %v1802 = vmax.f32 %v1632, 0.0
    %v1803 = vmax.f32 %v1634, 0.0
    %v1804 = vmax.f32 %v1796, 0.0
    %v1805 = vmax.f32 %v1798, 0.0
    %v1806 = vpack.c.bf16 %v1802, %v1802
    %v1807 = vpack.c.bf16 %v1803, %v1803
    %v1808 = vpack.c.bf16 %v1804, %v1804
    %v1809 = vpack.c.bf16 %v1805, %v1805
    %v1810 = vld [vmem:[#allocation4] sm:$0xff]
    %v1811 = vld [vmem:[#allocation4 + $0x8] sm:$0xff]
    %v1812 = vld [vmem:[#allocation4 + $0x10] sm:$0xff]
    %v1813 = vld [vmem:[#allocation4 + $0x18] sm:$0xff]
    %v1814 = vld [vmem:[#allocation4 + $0x20] sm:$0xff]
    %v1815 = vld [vmem:[#allocation4 + $0x28] sm:$0xff]
    %v1816 = vld [vmem:[#allocation4 + $0x30] sm:$0xff]
    %v1817 = vld [vmem:[#allocation4 + $0x38] sm:$0xff]
    %v1818 = vld [vmem:[#allocation4 + $0x40] sm:$0xff]
    %v1819 = vld [vmem:[#allocation4 + $0x48] sm:$0xff]
    %v1820 = vld [vmem:[#allocation4 + $0x50] sm:$0xff]
    %v1821 = vld [vmem:[#allocation4 + $0x58] sm:$0xff]
    %v1822 = vld [vmem:[#allocation4 + $0x60] sm:$0xff]
    %v1823 = vld [vmem:[#allocation4 + $0x68] sm:$0xff]
    %v1824 = vld [vmem:[#allocation4 + $0x70] sm:$0xff]
    %v1825 = vld [vmem:[#allocation4 + $0x78] sm:$0xff]
    %v1826 = vld [vmem:[#allocation4 + $0x80] sm:$0xff]
    %v1827 = vld [vmem:[#allocation4 + $0x88] sm:$0xff]
    %v1828 = vld [vmem:[#allocation4 + $0x90] sm:$0xff]
    %v1829 = vld [vmem:[#allocation4 + $0x98] sm:$0xff]
    %v1830 = vld [vmem:[#allocation4 + $0xa0] sm:$0xff]
    %v1831 = vld [vmem:[#allocation4 + $0xa8] sm:$0xff]
    %v1832 = vld [vmem:[#allocation4 + $0xb0] sm:$0xff]
    %v1833 = vld [vmem:[#allocation4 + $0xb8] sm:$0xff]
    %v1834 = vld [vmem:[#allocation4 + $0xc0] sm:$0xff]
    %v1835 = vld [vmem:[#allocation4 + $0xc8] sm:$0xff]
    %v1836 = vld [vmem:[#allocation4 + $0xd0] sm:$0xff]
    %v1837 = vld [vmem:[#allocation4 + $0xd8] sm:$0xff]
    %v1838 = vld [vmem:[#allocation4 + $0xe0] sm:$0xff]
    %v1839 = vld [vmem:[#allocation4 + $0xe8] sm:$0xff]
    %v1840 = vld [vmem:[#allocation4 + $0xf0] sm:$0xff]
    %v1841 = vld [vmem:[#allocation4 + $0xf8] sm:$0xff]
    %v1842 = vld [vmem:[#allocation4 + $0x100] sm:$0xff]
    %v1843 = vld [vmem:[#allocation4 + $0x108] sm:$0xff]
    %v1844 = vld [vmem:[#allocation4 + $0x110] sm:$0xff]
    %v1845 = vld [vmem:[#allocation4 + $0x118] sm:$0xff]
    %v1846 = vld [vmem:[#allocation4 + $0x120] sm:$0xff]
    %v1847 = vld [vmem:[#allocation4 + $0x128] sm:$0xff]
    %v1848 = vld [vmem:[#allocation4 + $0x130] sm:$0xff]
    %v1849 = vld [vmem:[#allocation4 + $0x138] sm:$0xff]
    %v1850 = vld [vmem:[#allocation4 + $0x140] sm:$0xff]
    %v1851 = vld [vmem:[#allocation4 + $0x148] sm:$0xff]
    %v1852 = vld [vmem:[#allocation4 + $0x150] sm:$0xff]
    %v1853 = vld [vmem:[#allocation4 + $0x158] sm:$0xff]
    %v1854 = vld [vmem:[#allocation4 + $0x160] sm:$0xff]
    %v1855 = vld [vmem:[#allocation4 + $0x168] sm:$0xff]
    %v1856 = vld [vmem:[#allocation4 + $0x170] sm:$0xff]
    %v1857 = vld [vmem:[#allocation4 + $0x178] sm:$0xff]
    %v1858 = vld [vmem:[#allocation4 + $0x180] sm:$0xff]
    %v1859 = vld [vmem:[#allocation4 + $0x188] sm:$0xff]
    %v1860 = vld [vmem:[#allocation4 + $0x190] sm:$0xff]
    %v1861 = vld [vmem:[#allocation4 + $0x198] sm:$0xff]
    %v1862 = vld [vmem:[#allocation4 + $0x1a0] sm:$0xff]
    %v1863 = vld [vmem:[#allocation4 + $0x1a8] sm:$0xff]
    %v1864 = vld [vmem:[#allocation4 + $0x1b0] sm:$0xff]
    %v1865 = vld [vmem:[#allocation4 + $0x1b8] sm:$0xff]
    %v1866 = vld [vmem:[#allocation4 + $0x1c0] sm:$0xff]
    %v1867 = vld [vmem:[#allocation4 + $0x1c8] sm:$0xff]
    %v1868 = vld [vmem:[#allocation4 + $0x1d0] sm:$0xff]
    %v1869 = vld [vmem:[#allocation4 + $0x1d8] sm:$0xff]
    %v1870 = vld [vmem:[#allocation4 + $0x1e0] sm:$0xff]
    %v1871 = vld [vmem:[#allocation4 + $0x1e8] sm:$0xff]
    %v1872 = vld [vmem:[#allocation4 + $0x1f0] sm:$0xff]
    %v1873 = vld [vmem:[#allocation4 + $0x1f8] sm:$0xff]
    %v1874 = vld [vmem:[%s5] sm:$0x3]
    %v1876 = vlaneseq
    %v1877 = vshrl.u32 %v1876, 7
    %v1878 = vsub.s32 0, %v1877
    %v1879 = vrot.slane %v1874, %v1878
    %v1880 = vlaneseq
    %v1881 = vshrl.u32 %v1880, 7
    %v1882 = vsub.s32 1, %v1881
    %v1883 = vrot.slane %v1874, %v1882
    %v1950 = vunpack.c.l.b16 %v1810
    %v1951 = vunpack.c.h.b16 %v1810
    %v1952 = vunpack.c.l.b16 %v1811
    %v1953 = vunpack.c.h.b16 %v1811
    %v1954 = vunpack.c.l.b16 %v1812
    %v1955 = vunpack.c.h.b16 %v1812
    %v1956 = vunpack.c.l.b16 %v1813
    %v1957 = vunpack.c.h.b16 %v1813
    %v1958 = vunpack.c.l.b16 %v1814
    %v1959 = vunpack.c.h.b16 %v1814
    %v1960 = vunpack.c.l.b16 %v1815
    %v1961 = vunpack.c.h.b16 %v1815
    %v1962 = vunpack.c.l.b16 %v1816
    %v1963 = vunpack.c.h.b16 %v1816
    %v1964 = vunpack.c.l.b16 %v1817
    %v1965 = vunpack.c.h.b16 %v1817
    %v1966 = vunpack.c.l.b16 %v1818
    %v1967 = vunpack.c.h.b16 %v1818
    %v1968 = vunpack.c.l.b16 %v1819
    %v1969 = vunpack.c.h.b16 %v1819
    %v1970 = vunpack.c.l.b16 %v1820
    %v1971 = vunpack.c.h.b16 %v1820
    %v1972 = vunpack.c.l.b16 %v1821
    %v1973 = vunpack.c.h.b16 %v1821
    %v1974 = vunpack.c.l.b16 %v1822
    %v1975 = vunpack.c.h.b16 %v1822
    %v1976 = vunpack.c.l.b16 %v1823
    %v1977 = vunpack.c.h.b16 %v1823
    %v1978 = vunpack.c.l.b16 %v1824
    %v1979 = vunpack.c.h.b16 %v1824
    %v1980 = vunpack.c.l.b16 %v1825
    %v1981 = vunpack.c.h.b16 %v1825
    %v1982 = vunpack.c.l.b16 %v1826
    %v1983 = vunpack.c.h.b16 %v1826
    %v1984 = vunpack.c.l.b16 %v1827
    %v1985 = vunpack.c.h.b16 %v1827
    %v1986 = vunpack.c.l.b16 %v1828
    %v1987 = vunpack.c.h.b16 %v1828
    %v1988 = vunpack.c.l.b16 %v1829
    %v1989 = vunpack.c.h.b16 %v1829
    %v1990 = vunpack.c.l.b16 %v1830
    %v1991 = vunpack.c.h.b16 %v1830
    %v1992 = vunpack.c.l.b16 %v1831
    %v1993 = vunpack.c.h.b16 %v1831
    %v1994 = vunpack.c.l.b16 %v1832
    %v1995 = vunpack.c.h.b16 %v1832
    %v1996 = vunpack.c.l.b16 %v1833
    %v1997 = vunpack.c.h.b16 %v1833
    %v1998 = vunpack.c.l.b16 %v1834
    %v1999 = vunpack.c.h.b16 %v1834
    %v2000 = vunpack.c.l.b16 %v1835
    %v2001 = vunpack.c.h.b16 %v1835
    %v2002 = vunpack.c.l.b16 %v1836
    %v2003 = vunpack.c.h.b16 %v1836
    %v2004 = vunpack.c.l.b16 %v1837
    %v2005 = vunpack.c.h.b16 %v1837
    %v2006 = vunpack.c.l.b16 %v1838
    %v2007 = vunpack.c.h.b16 %v1838
    %v2008 = vunpack.c.l.b16 %v1839
    %v2009 = vunpack.c.h.b16 %v1839
    %v2010 = vunpack.c.l.b16 %v1840
    %v2011 = vunpack.c.h.b16 %v1840
    %v2012 = vunpack.c.l.b16 %v1841
    %v2013 = vunpack.c.h.b16 %v1841
    %v2014 = vunpack.c.l.b16 %v1842
    %v2015 = vunpack.c.h.b16 %v1842
    %v2016 = vunpack.c.l.b16 %v1843
    %v2017 = vunpack.c.h.b16 %v1843
    %v2018 = vunpack.c.l.b16 %v1844
    %v2019 = vunpack.c.h.b16 %v1844
    %v2020 = vunpack.c.l.b16 %v1845
    %v2021 = vunpack.c.h.b16 %v1845
    %v2022 = vunpack.c.l.b16 %v1846
    %v2023 = vunpack.c.h.b16 %v1846
    %v2024 = vunpack.c.l.b16 %v1847
    %v2025 = vunpack.c.h.b16 %v1847
    %v2026 = vunpack.c.l.b16 %v1848
    %v2027 = vunpack.c.h.b16 %v1848
    %v2028 = vunpack.c.l.b16 %v1849
    %v2029 = vunpack.c.h.b16 %v1849
    %v2030 = vunpack.c.l.b16 %v1850
    %v2031 = vunpack.c.h.b16 %v1850
    %v2032 = vunpack.c.l.b16 %v1851
    %v2033 = vunpack.c.h.b16 %v1851
    %v2034 = vunpack.c.l.b16 %v1852
    %v2035 = vunpack.c.h.b16 %v1852
    %v2036 = vunpack.c.l.b16 %v1853
    %v2037 = vunpack.c.h.b16 %v1853
    %v2038 = vunpack.c.l.b16 %v1854
    %v2039 = vunpack.c.h.b16 %v1854
    %v2040 = vunpack.c.l.b16 %v1855
    %v2041 = vunpack.c.h.b16 %v1855
    %v2042 = vunpack.c.l.b16 %v1856
    %v2043 = vunpack.c.h.b16 %v1856
    %v2044 = vunpack.c.l.b16 %v1857
    %v2045 = vunpack.c.h.b16 %v1857
    %v2046 = vunpack.c.l.b16 %v1858
    %v2047 = vunpack.c.h.b16 %v1858
    %v2048 = vunpack.c.l.b16 %v1859
    %v2049 = vunpack.c.h.b16 %v1859
    %v2050 = vunpack.c.l.b16 %v1860
    %v2051 = vunpack.c.h.b16 %v1860
    %v2052 = vunpack.c.l.b16 %v1861
    %v2053 = vunpack.c.h.b16 %v1861
    %v2054 = vunpack.c.l.b16 %v1862
    %v2055 = vunpack.c.h.b16 %v1862
    %v2056 = vunpack.c.l.b16 %v1863
    %v2057 = vunpack.c.h.b16 %v1863
    %v2058 = vunpack.c.l.b16 %v1864
    %v2059 = vunpack.c.h.b16 %v1864
    %v2060 = vunpack.c.l.b16 %v1865
    %v2061 = vunpack.c.h.b16 %v1865
    %v2062 = vunpack.c.l.b16 %v1866
    %v2063 = vunpack.c.h.b16 %v1866
    %v2064 = vunpack.c.l.b16 %v1867
    %v2065 = vunpack.c.h.b16 %v1867
    %v2066 = vunpack.c.l.b16 %v1868
    %v2067 = vunpack.c.h.b16 %v1868
    %v2068 = vunpack.c.l.b16 %v1869
    %v2069 = vunpack.c.h.b16 %v1869
    %v2070 = vunpack.c.l.b16 %v1870
    %v2071 = vunpack.c.h.b16 %v1870
    %v2072 = vunpack.c.l.b16 %v1871
    %v2073 = vunpack.c.h.b16 %v1871
    %v2074 = vunpack.c.l.b16 %v1872
    %v2075 = vunpack.c.h.b16 %v1872
    %v2076 = vunpack.c.l.b16 %v1873
    %v2077 = vunpack.c.h.b16 %v1873
    %v2078 = vpack.c.b16 %v1952, %v1950
    %v2079 = vpack.c.b16 %v1953, %v1951
    %v2080 = vpack.c.b16 %v1956, %v1954
    %v2081 = vpack.c.b16 %v1957, %v1955
    %v2082 = vpack.c.b16 %v1960, %v1958
    %v2083 = vpack.c.b16 %v1961, %v1959
    %v2084 = vpack.c.b16 %v1964, %v1962
    %v2085 = vpack.c.b16 %v1965, %v1963
    %v2086 = vpack.c.b16 %v1968, %v1966
    %v2087 = vpack.c.b16 %v1969, %v1967
    %v2088 = vpack.c.b16 %v1972, %v1970
    %v2089 = vpack.c.b16 %v1973, %v1971
    %v2090 = vpack.c.b16 %v1976, %v1974
    %v2091 = vpack.c.b16 %v1977, %v1975
    %v2092 = vpack.c.b16 %v1980, %v1978
    %v2093 = vpack.c.b16 %v1981, %v1979
    %v2094 = vpack.c.b16 %v1984, %v1982
    %v2095 = vpack.c.b16 %v1985, %v1983
    %v2096 = vpack.c.b16 %v1988, %v1986
    %v2097 = vpack.c.b16 %v1989, %v1987
    %v2098 = vpack.c.b16 %v1992, %v1990
    %v2099 = vpack.c.b16 %v1993, %v1991
    %v2100 = vpack.c.b16 %v1996, %v1994
    %v2101 = vpack.c.b16 %v1997, %v1995
    %v2102 = vpack.c.b16 %v2000, %v1998
    %v2103 = vpack.c.b16 %v2001, %v1999
    %v2104 = vpack.c.b16 %v2004, %v2002
    %v2105 = vpack.c.b16 %v2005, %v2003
    %v2106 = vpack.c.b16 %v2008, %v2006
    %v2107 = vpack.c.b16 %v2009, %v2007
    %v2108 = vpack.c.b16 %v2012, %v2010
    %v2109 = vpack.c.b16 %v2013, %v2011
    %v2110 = vpack.c.b16 %v2016, %v2014
    %v2111 = vpack.c.b16 %v2017, %v2015
    %v2112 = vpack.c.b16 %v2020, %v2018
    %v2113 = vpack.c.b16 %v2021, %v2019
    %v2114 = vpack.c.b16 %v2024, %v2022
    %v2115 = vpack.c.b16 %v2025, %v2023
    %v2116 = vpack.c.b16 %v2028, %v2026
    %v2117 = vpack.c.b16 %v2029, %v2027
    %v2118 = vpack.c.b16 %v2032, %v2030
    %v2119 = vpack.c.b16 %v2033, %v2031
    %v2120 = vpack.c.b16 %v2036, %v2034
    %v2121 = vpack.c.b16 %v2037, %v2035
    %v2122 = vpack.c.b16 %v2040, %v2038
    %v2123 = vpack.c.b16 %v2041, %v2039
    %v2124 = vpack.c.b16 %v2044, %v2042
    %v2125 = vpack.c.b16 %v2045, %v2043
    %v2126 = vpack.c.b16 %v2048, %v2046
    %v2127 = vpack.c.b16 %v2049, %v2047
    %v2128 = vpack.c.b16 %v2052, %v2050
    %v2129 = vpack.c.b16 %v2053, %v2051
    %v2130 = vpack.c.b16 %v2056, %v2054
    %v2131 = vpack.c.b16 %v2057, %v2055
    %v2132 = vpack.c.b16 %v2060, %v2058
    %v2133 = vpack.c.b16 %v2061, %v2059
    %v2134 = vpack.c.b16 %v2064, %v2062
    %v2135 = vpack.c.b16 %v2065, %v2063
    %v2136 = vpack.c.b16 %v2068, %v2066
    %v2137 = vpack.c.b16 %v2069, %v2067
    %v2138 = vpack.c.b16 %v2072, %v2070
    %v2139 = vpack.c.b16 %v2073, %v2071
    %v2140 = vpack.c.b16 %v2076, %v2074
    %v2141 = vpack.c.b16 %v2077, %v2075
    %2206 = vmatprep.subr.bf16.mxu0 %v2093
    %2207 = vmatpush1.bf16.msra.mxu0 %v2092
    %2208 = vmatprep.subr.bf16.mxu0 %v2091
    %2209 = vmatpush1.bf16.msra.mxu0 %v2090
    %2210 = vmatprep.subr.bf16.mxu0 %v2089
    %2211 = vmatpush1.bf16.msra.mxu0 %v2088
    %2212 = vmatprep.subr.bf16.mxu0 %v2087
    %2213 = vmatpush1.bf16.msra.mxu0 %v2086
    %2214 = vmatprep.subr.bf16.mxu0 %v2085
    %2215 = vmatpush1.bf16.msra.mxu0 %v2084
    %2216 = vmatprep.subr.bf16.mxu0 %v2083
    %2217 = vmatpush1.bf16.msra.mxu0 %v2082
    %2218 = vmatprep.subr.bf16.mxu0 %v2081
    %2219 = vmatpush1.bf16.msra.mxu0 %v2080
    %2220 = vmatprep.subr.bf16.mxu0 %v2079
    %2221 = vmatpush1.bf16.msra.mxu0 %v2078
    %2222 = vmatprep.subr.bf16.mxu0 %v2109
    %2223 = vmatpush2.bf16.msra.mxu0 %v2108
    %2224 = vmatprep.subr.bf16.mxu0 %v2107
    %2225 = vmatpush2.bf16.msra.mxu0 %v2106
    %2226 = vmatprep.subr.bf16.mxu0 %v2105
    %2227 = vmatpush2.bf16.msra.mxu0 %v2104
    %2228 = vmatprep.subr.bf16.mxu0 %v2103
    %2229 = vmatpush2.bf16.msra.mxu0 %v2102
    %2230 = vmatprep.subr.bf16.mxu0 %v2101
    %2231 = vmatpush2.bf16.msra.mxu0 %v2100
    %2232 = vmatprep.subr.bf16.mxu0 %v2099
    %2233 = vmatpush2.bf16.msra.mxu0 %v2098
    %2234 = vmatprep.subr.bf16.mxu0 %v2097
    %2235 = vmatpush2.bf16.msra.mxu0 %v2096
    %2236 = vmatprep.subr.bf16.mxu0 %v2095
    %2237 = vmatpush2.bf16.msra.mxu0 %v2094
    %2238 = vmatprep.mubr.bf16.mxu0 %v1807
    %2239 = vmatmul.mubr.bf16.gmra.mxu0 %v1806
    %v2240 = vpop.f32.mrf.mxu0
    %v2241 = vadd.f32 %v1879, %v2240
    %v2242 = vpop.f32.mrf.mxu0
    %v2243 = vadd.f32 %v1883, %v2242
    %v2244 = vpop.f32.mrf.mxu0
    %v2245 = vpop.f32.mrf.mxu0
    %2246 = vdwg.mxu0
    %2247 = vmatprep.subr.bf16.mxu0 %v2125
    %2248 = vmatpush1.bf16.msra.mxu0 %v2124
    %2249 = vmatprep.subr.bf16.mxu0 %v2123
    %2250 = vmatpush1.bf16.msra.mxu0 %v2122
    %2251 = vmatprep.subr.bf16.mxu0 %v2121
    %2252 = vmatpush1.bf16.msra.mxu0 %v2120
    %2253 = vmatprep.subr.bf16.mxu0 %v2119
    %2254 = vmatpush1.bf16.msra.mxu0 %v2118
    %2255 = vmatprep.subr.bf16.mxu0 %v2117
    %2256 = vmatpush1.bf16.msra.mxu0 %v2116
    %2257 = vmatprep.subr.bf16.mxu0 %v2115
    %2258 = vmatpush1.bf16.msra.mxu0 %v2114
    %2259 = vmatprep.subr.bf16.mxu0 %v2113
    %2260 = vmatpush1.bf16.msra.mxu0 %v2112
    %2261 = vmatprep.subr.bf16.mxu0 %v2111
    %2262 = vmatpush1.bf16.msra.mxu0 %v2110
    %2263 = vmatprep.subr.bf16.mxu0 %v2141
    %2264 = vmatpush2.bf16.msra.mxu0 %v2140
    %2265 = vmatprep.subr.bf16.mxu0 %v2139
    %2266 = vmatpush2.bf16.msra.mxu0 %v2138
    %2267 = vmatprep.subr.bf16.mxu0 %v2137
    %2268 = vmatpush2.bf16.msra.mxu0 %v2136
    %2269 = vmatprep.subr.bf16.mxu0 %v2135
    %2270 = vmatpush2.bf16.msra.mxu0 %v2134
    %2271 = vmatprep.subr.bf16.mxu0 %v2133
    %2272 = vmatpush2.bf16.msra.mxu0 %v2132
    %2273 = vmatprep.subr.bf16.mxu0 %v2131
    %2274 = vmatpush2.bf16.msra.mxu0 %v2130
    %2275 = vmatprep.subr.bf16.mxu0 %v2129
    %2276 = vmatpush2.bf16.msra.mxu0 %v2128
    %2277 = vmatprep.subr.bf16.mxu0 %v2127
    %2278 = vmatpush2.bf16.msra.mxu0 %v2126
    %2279 = vmatprep.mubr.bf16.mxu0 %v1809
    %2280 = vmatmul.mubr.bf16.gmra.mxu0 %v1808
    %v2281 = vpop.f32.mrf.mxu0
    %v2282 = vadd.f32 %v2241, %v2281
    %v2283 = vpop.f32.mrf.mxu0
    %v2284 = vadd.f32 %v2243, %v2283
    %v2285 = vpop.f32.mrf.mxu0
    %v2286 = vpop.f32.mrf.mxu0
    %2287 = vdwg.mxu0
    %2288 = vst [vmem:[%s11] sm:$0xff] %v2282
    %2289 = vst [vmem:[%s11 + $0x8] sm:$0xff] %v2284
    %v2290 = vld [vmem:[%s1] sm:$0xf]
    %v2291 = vunpack.c.l.bf16 %v2290
    %v2292 = vmul.f32 %v2284, 0.5
    %v2293 = vmul.f32 %v2292, 1.442695
    %v2294 = vpow.pop %v2293
    %v2295 = vmul.f32 %v2291, %v2294
    %v2296 = vadd.f32 %v2282, %v2295
    %v2297 = vpack.c.bf16 %v2296, %v2296
    %v2298 = vld [vmem:[%s6] sm:$0xff]
    %v2299 = vld [vmem:[%s6 + $0x8] sm:$0xff]
    %v2300 = vld [vmem:[%s6 + $0x10] sm:$0xff]
    %v2301 = vld [vmem:[%s6 + $0x18] sm:$0xff]
    %v2302 = vld [vmem:[%s6 + $0x20] sm:$0xff]
    %v2303 = vld [vmem:[%s6 + $0x28] sm:$0xff]
    %v2304 = vld [vmem:[%s6 + $0x30] sm:$0xff]
    %v2305 = vld [vmem:[%s6 + $0x38] sm:$0xff]
    %v2306 = vld [vmem:[%s6 + $0x40] sm:$0xff]
    %v2307 = vld [vmem:[%s6 + $0x48] sm:$0xff]
    %v2308 = vld [vmem:[%s6 + $0x50] sm:$0xff]
    %v2309 = vld [vmem:[%s6 + $0x58] sm:$0xff]
    %v2310 = vld [vmem:[%s6 + $0x60] sm:$0xff]
    %v2311 = vld [vmem:[%s6 + $0x68] sm:$0xff]
    %v2312 = vld [vmem:[%s6 + $0x70] sm:$0xff]
    %v2313 = vld [vmem:[%s6 + $0x78] sm:$0xff]
    %v2314 = vld [vmem:[%s6 + $0x80] sm:$0xff]
    %v2315 = vld [vmem:[%s6 + $0x88] sm:$0xff]
    %v2316 = vld [vmem:[%s6 + $0x90] sm:$0xff]
    %v2317 = vld [vmem:[%s6 + $0x98] sm:$0xff]
    %v2318 = vld [vmem:[%s6 + $0xa0] sm:$0xff]
    %v2319 = vld [vmem:[%s6 + $0xa8] sm:$0xff]
    %v2320 = vld [vmem:[%s6 + $0xb0] sm:$0xff]
    %v2321 = vld [vmem:[%s6 + $0xb8] sm:$0xff]
    %v2322 = vld [vmem:[%s6 + $0xc0] sm:$0xff]
    %v2323 = vld [vmem:[%s6 + $0xc8] sm:$0xff]
    %v2324 = vld [vmem:[%s6 + $0xd0] sm:$0xff]
    %v2325 = vld [vmem:[%s6 + $0xd8] sm:$0xff]
    %v2326 = vld [vmem:[%s6 + $0xe0] sm:$0xff]
    %v2327 = vld [vmem:[%s6 + $0xe8] sm:$0xff]
    %v2328 = vld [vmem:[%s6 + $0xf0] sm:$0xff]
    %v2329 = vld [vmem:[%s6 + $0xf8] sm:$0xff]
    %v2330 = vld [vmem:[%s7] sm:$0xf]
    %v2332 = vlaneseq
    %v2333 = vshrl.u32 %v2332, 7
    %v2334 = vsub.s32 0, %v2333
    %v2335 = vrot.slane %v2330, %v2334
    %v2336 = vlaneseq
    %v2337 = vshrl.u32 %v2336, 7
    %v2338 = vsub.s32 1, %v2337
    %v2339 = vrot.slane %v2330, %v2338
    %v2340 = vlaneseq
    %v2341 = vshrl.u32 %v2340, 7
    %v2342 = vsub.s32 2, %v2341
    %v2343 = vrot.slane %v2330, %v2342
    %v2344 = vlaneseq
    %v2345 = vshrl.u32 %v2344, 7
    %v2346 = vsub.s32 3, %v2345
    %v2347 = vrot.slane %v2330, %v2346
    %v2384 = vunpack.c.l.b16 %v2298
    %v2385 = vunpack.c.h.b16 %v2298
    %v2386 = vunpack.c.l.b16 %v2299
    %v2387 = vunpack.c.h.b16 %v2299
    %v2388 = vunpack.c.l.b16 %v2300
    %v2389 = vunpack.c.h.b16 %v2300
    %v2390 = vunpack.c.l.b16 %v2301
    %v2391 = vunpack.c.h.b16 %v2301
    %v2392 = vunpack.c.l.b16 %v2302
    %v2393 = vunpack.c.h.b16 %v2302
    %v2394 = vunpack.c.l.b16 %v2303
    %v2395 = vunpack.c.h.b16 %v2303
    %v2396 = vunpack.c.l.b16 %v2304
    %v2397 = vunpack.c.h.b16 %v2304
    %v2398 = vunpack.c.l.b16 %v2305
    %v2399 = vunpack.c.h.b16 %v2305
    %v2400 = vunpack.c.l.b16 %v2306
    %v2401 = vunpack.c.h.b16 %v2306
    %v2402 = vunpack.c.l.b16 %v2307
    %v2403 = vunpack.c.h.b16 %v2307
    %v2404 = vunpack.c.l.b16 %v2308
    %v2405 = vunpack.c.h.b16 %v2308
    %v2406 = vunpack.c.l.b16 %v2309
    %v2407 = vunpack.c.h.b16 %v2309
    %v2408 = vunpack.c.l.b16 %v2310
    %v2409 = vunpack.c.h.b16 %v2310
    %v2410 = vunpack.c.l.b16 %v2311
    %v2411 = vunpack.c.h.b16 %v2311
    %v2412 = vunpack.c.l.b16 %v2312
    %v2413 = vunpack.c.h.b16 %v2312
    %v2414 = vunpack.c.l.b16 %v2313
    %v2415 = vunpack.c.h.b16 %v2313
    %v2416 = vunpack.c.l.b16 %v2314
    %v2417 = vunpack.c.h.b16 %v2314
    %v2418 = vunpack.c.l.b16 %v2315
    %v2419 = vunpack.c.h.b16 %v2315
    %v2420 = vunpack.c.l.b16 %v2316
    %v2421 = vunpack.c.h.b16 %v2316
    %v2422 = vunpack.c.l.b16 %v2317
    %v2423 = vunpack.c.h.b16 %v2317
    %v2424 = vunpack.c.l.b16 %v2318
    %v2425 = vunpack.c.h.b16 %v2318
    %v2426 = vunpack.c.l.b16 %v2319
    %v2427 = vunpack.c.h.b16 %v2319
    %v2428 = vunpack.c.l.b16 %v2320
    %v2429 = vunpack.c.h.b16 %v2320
    %v2430 = vunpack.c.l.b16 %v2321
    %v2431 = vunpack.c.h.b16 %v2321
    %v2432 = vunpack.c.l.b16 %v2322
    %v2433 = vunpack.c.h.b16 %v2322
    %v2434 = vunpack.c.l.b16 %v2323
    %v2435 = vunpack.c.h.b16 %v2323
    %v2436 = vunpack.c.l.b16 %v2324
    %v2437 = vunpack.c.h.b16 %v2324
    %v2438 = vunpack.c.l.b16 %v2325
    %v2439 = vunpack.c.h.b16 %v2325
    %v2440 = vunpack.c.l.b16 %v2326
    %v2441 = vunpack.c.h.b16 %v2326
    %v2442 = vunpack.c.l.b16 %v2327
    %v2443 = vunpack.c.h.b16 %v2327
    %v2444 = vunpack.c.l.b16 %v2328
    %v2445 = vunpack.c.h.b16 %v2328
    %v2446 = vunpack.c.l.b16 %v2329
    %v2447 = vunpack.c.h.b16 %v2329
    %v2448 = vpack.c.b16 %v2388, %v2384
    %v2449 = vpack.c.b16 %v2389, %v2385
    %v2450 = vpack.c.b16 %v2390, %v2386
    %v2451 = vpack.c.b16 %v2391, %v2387
    %v2452 = vpack.c.b16 %v2396, %v2392
    %v2453 = vpack.c.b16 %v2397, %v2393
    %v2454 = vpack.c.b16 %v2398, %v2394
    %v2455 = vpack.c.b16 %v2399, %v2395
    %v2456 = vpack.c.b16 %v2404, %v2400
    %v2457 = vpack.c.b16 %v2405, %v2401
    %v2458 = vpack.c.b16 %v2406, %v2402
    %v2459 = vpack.c.b16 %v2407, %v2403
    %v2460 = vpack.c.b16 %v2412, %v2408
    %v2461 = vpack.c.b16 %v2413, %v2409
    %v2462 = vpack.c.b16 %v2414, %v2410
    %v2463 = vpack.c.b16 %v2415, %v2411
    %v2464 = vpack.c.b16 %v2420, %v2416
    %v2465 = vpack.c.b16 %v2421, %v2417
    %v2466 = vpack.c.b16 %v2422, %v2418
    %v2467 = vpack.c.b16 %v2423, %v2419
    %v2468 = vpack.c.b16 %v2428, %v2424
    %v2469 = vpack.c.b16 %v2429, %v2425
    %v2470 = vpack.c.b16 %v2430, %v2426
    %v2471 = vpack.c.b16 %v2431, %v2427
    %v2472 = vpack.c.b16 %v2436, %v2432
    %v2473 = vpack.c.b16 %v2437, %v2433
    %v2474 = vpack.c.b16 %v2438, %v2434
    %v2475 = vpack.c.b16 %v2439, %v2435
    %v2476 = vpack.c.b16 %v2444, %v2440
    %v2477 = vpack.c.b16 %v2445, %v2441
    %v2478 = vpack.c.b16 %v2446, %v2442
    %v2479 = vpack.c.b16 %v2447, %v2443
    %2512 = vmatprep.subr.bf16.mxu0 %v2477
    %2513 = vmatpush1.bf16.msra.mxu0 %v2476
    %2514 = vmatprep.subr.bf16.mxu0 %v2473
    %2515 = vmatpush1.bf16.msra.mxu0 %v2472
    %2516 = vmatprep.subr.bf16.mxu0 %v2469
    %2517 = vmatpush1.bf16.msra.mxu0 %v2468
    %2518 = vmatprep.subr.bf16.mxu0 %v2465
    %2519 = vmatpush1.bf16.msra.mxu0 %v2464
    %2520 = vmatprep.subr.bf16.mxu0 %v2461
    %2521 = vmatpush1.bf16.msra.mxu0 %v2460
    %2522 = vmatprep.subr.bf16.mxu0 %v2457
    %2523 = vmatpush1.bf16.msra.mxu0 %v2456
    %2524 = vmatprep.subr.bf16.mxu0 %v2453
    %2525 = vmatpush1.bf16.msra.mxu0 %v2452
    %2526 = vmatprep.subr.bf16.mxu0 %v2449
    %2527 = vmatpush1.bf16.msra.mxu0 %v2448
    %2528 = vmatprep.subr.bf16.mxu0 0
    %2529 = vmatpush2.bf16.msra.mxu0 0
    %2530 = vmatprep.subr.bf16.mxu0 0
    %2531 = vmatpush2.bf16.msra.mxu0 0
    %2532 = vmatprep.subr.bf16.mxu0 0
    %2533 = vmatpush2.bf16.msra.mxu0 0
    %2534 = vmatprep.subr.bf16.mxu0 0
    %2535 = vmatpush2.bf16.msra.mxu0 0
    %2536 = vmatprep.subr.bf16.mxu0 0
    %2537 = vmatpush2.bf16.msra.mxu0 0
    %2538 = vmatprep.subr.bf16.mxu0 0
    %2539 = vmatpush2.bf16.msra.mxu0 0
    %2540 = vmatprep.subr.bf16.mxu0 0
    %2541 = vmatpush2.bf16.msra.mxu0 0
    %2542 = vmatprep.subr.bf16.mxu0 0
    %2543 = vmatpush2.bf16.msra.mxu0 0
    %2544 = vmatprep.mubr.bf16.mxu0 0
    %2545 = vmatmul.mubr.bf16.gmra.mxu0 %v2297
    %v2546 = vpop.f32.mrf.mxu0
    %v2547 = vadd.f32 %v2335, %v2546
    %v2548 = vpop.f32.mrf.mxu0
    %v2549 = vadd.f32 %v2339, %v2548
    %v2550 = vpop.f32.mrf.mxu0
    %v2551 = vpop.f32.mrf.mxu0
    %2552 = vdwg.mxu0
    %2553 = vmatprep.subr.bf16.mxu0 %v2479
    %2554 = vmatpush1.bf16.msra.mxu0 %v2478
    %2555 = vmatprep.subr.bf16.mxu0 %v2475
    %2556 = vmatpush1.bf16.msra.mxu0 %v2474
    %2557 = vmatprep.subr.bf16.mxu0 %v2471
    %2558 = vmatpush1.bf16.msra.mxu0 %v2470
    %2559 = vmatprep.subr.bf16.mxu0 %v2467
    %2560 = vmatpush1.bf16.msra.mxu0 %v2466
    %2561 = vmatprep.subr.bf16.mxu0 %v2463
    %2562 = vmatpush1.bf16.msra.mxu0 %v2462
    %2563 = vmatprep.subr.bf16.mxu0 %v2459
    %2564 = vmatpush1.bf16.msra.mxu0 %v2458
    %2565 = vmatprep.subr.bf16.mxu0 %v2455
    %2566 = vmatpush1.bf16.msra.mxu0 %v2454
    %2567 = vmatprep.subr.bf16.mxu0 %v2451
    %2568 = vmatpush1.bf16.msra.mxu0 %v2450
    %2569 = vmatprep.subr.bf16.mxu0 0
    %2570 = vmatpush2.bf16.msra.mxu0 0
    %2571 = vmatprep.subr.bf16.mxu0 0
    %2572 = vmatpush2.bf16.msra.mxu0 0
    %2573 = vmatprep.subr.bf16.mxu0 0
    %2574 = vmatpush2.bf16.msra.mxu0 0
    %2575 = vmatprep.subr.bf16.mxu0 0
    %2576 = vmatpush2.bf16.msra.mxu0 0
    %2577 = vmatprep.subr.bf16.mxu0 0
    %2578 = vmatpush2.bf16.msra.mxu0 0
    %2579 = vmatprep.subr.bf16.mxu0 0
    %2580 = vmatpush2.bf16.msra.mxu0 0
    %2581 = vmatprep.subr.bf16.mxu0 0
    %2582 = vmatpush2.bf16.msra.mxu0 0
    %2583 = vmatprep.subr.bf16.mxu0 0
    %2584 = vmatpush2.bf16.msra.mxu0 0
    %2585 = vmatprep.mubr.bf16.mxu0 0
    %2586 = vmatmul.mubr.bf16.gmra.mxu0 %v2297
    %v2587 = vpop.f32.mrf.mxu0
    %v2588 = vadd.f32 %v2343, %v2587
    %v2589 = vpop.f32.mrf.mxu0
    %v2590 = vadd.f32 %v2347, %v2589
    %v2591 = vpop.f32.mrf.mxu0
    %v2592 = vpop.f32.mrf.mxu0
    %2593 = vdwg.mxu0
    %v2594 = vmax.f32 %v2547, 0.0
    %v2595 = vmax.f32 %v2549, 0.0
    %v2596 = vmax.f32 %v2588, 0.0
    %v2597 = vmax.f32 %v2590, 0.0
    %v2598 = vpack.c.bf16 %v2594, %v2594
    %v2599 = vpack.c.bf16 %v2595, %v2595
    %v2600 = vpack.c.bf16 %v2596, %v2596
    %v2601 = vpack.c.bf16 %v2597, %v2597
    %v2602 = vld [vmem:[#allocation6] sm:$0xff]
    %v2603 = vld [vmem:[#allocation6 + $0x8] sm:$0xff]
    %v2604 = vld [vmem:[#allocation6 + $0x10] sm:$0xff]
    %v2605 = vld [vmem:[#allocation6 + $0x18] sm:$0xf]
    %v2606 = vld [vmem:[#allocation6 + $0x1c] sm:$0xff]
    %v2607 = vld [vmem:[#allocation6 + $0x24] sm:$0xff]
    %v2608 = vld [vmem:[#allocation6 + $0x2c] sm:$0xff]
    %v2609 = vld [vmem:[#allocation6 + $0x34] sm:$0xf]
    %v2610 = vld [vmem:[#allocation6 + $0x38] sm:$0xff]
    %v2611 = vld [vmem:[#allocation6 + $0x40] sm:$0xff]
    %v2612 = vld [vmem:[#allocation6 + $0x48] sm:$0xff]
    %v2613 = vld [vmem:[#allocation6 + $0x50] sm:$0xf]
    %v2614 = vld [vmem:[#allocation6 + $0x54] sm:$0xff]
    %v2615 = vld [vmem:[#allocation6 + $0x5c] sm:$0xff]
    %v2616 = vld [vmem:[#allocation6 + $0x64] sm:$0xff]
    %v2617 = vld [vmem:[#allocation6 + $0x6c] sm:$0xf]
    %v2618 = vld [vmem:[#allocation6 + $0x70] sm:$0xff]
    %v2619 = vld [vmem:[#allocation6 + $0x78] sm:$0xff]
    %v2620 = vld [vmem:[#allocation6 + $0x80] sm:$0xff]
    %v2621 = vld [vmem:[#allocation6 + $0x88] sm:$0xf]
    %v2622 = vld [vmem:[#allocation6 + $0x8c] sm:$0xff]
    %v2623 = vld [vmem:[#allocation6 + $0x94] sm:$0xff]
    %v2624 = vld [vmem:[#allocation6 + $0x9c] sm:$0xff]
    %v2625 = vld [vmem:[#allocation6 + $0xa4] sm:$0xf]
    %v2626 = vld [vmem:[#allocation6 + $0xa8] sm:$0xff]
    %v2627 = vld [vmem:[#allocation6 + $0xb0] sm:$0xff]
    %v2628 = vld [vmem:[#allocation6 + $0xb8] sm:$0xff]
    %v2629 = vld [vmem:[#allocation6 + $0xc0] sm:$0xf]
    %v2630 = vld [vmem:[#allocation6 + $0xc4] sm:$0xff]
    %v2631 = vld [vmem:[#allocation6 + $0xcc] sm:$0xff]
    %v2632 = vld [vmem:[#allocation6 + $0xd4] sm:$0xff]
    %v2633 = vld [vmem:[#allocation6 + $0xdc] sm:$0xf]
    %v2634 = vld [vmem:[#allocation6 + $0xe0] sm:$0xff]
    %v2635 = vld [vmem:[#allocation6 + $0xe8] sm:$0xff]
    %v2636 = vld [vmem:[#allocation6 + $0xf0] sm:$0xff]
    %v2637 = vld [vmem:[#allocation6 + $0xf8] sm:$0xf]
    %v2638 = vld [vmem:[#allocation6 + $0xfc] sm:$0xff]
    %v2639 = vld [vmem:[#allocation6 + $0x104] sm:$0xff]
    %v2640 = vld [vmem:[#allocation6 + $0x10c] sm:$0xff]
    %v2641 = vld [vmem:[#allocation6 + $0x114] sm:$0xf]
    %v2642 = vld [vmem:[#allocation6 + $0x118] sm:$0xff]
    %v2643 = vld [vmem:[#allocation6 + $0x120] sm:$0xff]
    %v2644 = vld [vmem:[#allocation6 + $0x128] sm:$0xff]
    %v2645 = vld [vmem:[#allocation6 + $0x130] sm:$0xf]
    %v2646 = vld [vmem:[#allocation6 + $0x134] sm:$0xff]
    %v2647 = vld [vmem:[#allocation6 + $0x13c] sm:$0xff]
    %v2648 = vld [vmem:[#allocation6 + $0x144] sm:$0xff]
    %v2649 = vld [vmem:[#allocation6 + $0x14c] sm:$0xf]
    %v2650 = vld [vmem:[#allocation6 + $0x150] sm:$0xff]
    %v2651 = vld [vmem:[#allocation6 + $0x158] sm:$0xff]
    %v2652 = vld [vmem:[#allocation6 + $0x160] sm:$0xff]
    %v2653 = vld [vmem:[#allocation6 + $0x168] sm:$0xf]
    %v2654 = vld [vmem:[#allocation6 + $0x16c] sm:$0xff]
    %v2655 = vld [vmem:[#allocation6 + $0x174] sm:$0xff]
    %v2656 = vld [vmem:[#allocation6 + $0x17c] sm:$0xff]
    %v2657 = vld [vmem:[#allocation6 + $0x184] sm:$0xf]
    %v2658 = vld [vmem:[#allocation6 + $0x188] sm:$0xff]
    %v2659 = vld [vmem:[#allocation6 + $0x190] sm:$0xff]
    %v2660 = vld [vmem:[#allocation6 + $0x198] sm:$0xff]
    %v2661 = vld [vmem:[#allocation6 + $0x1a0] sm:$0xf]
    %v2662 = vld [vmem:[#allocation6 + $0x1a4] sm:$0xff]
    %v2663 = vld [vmem:[#allocation6 + $0x1ac] sm:$0xff]
    %v2664 = vld [vmem:[#allocation6 + $0x1b4] sm:$0xff]
    %v2665 = vld [vmem:[#allocation6 + $0x1bc] sm:$0xf]
    %v2666 = vld [vmem:[#allocation6 + $0x1c0] sm:$0xff]
    %v2667 = vld [vmem:[#allocation6 + $0x1c8] sm:$0xff]
    %v2668 = vld [vmem:[#allocation6 + $0x1d0] sm:$0xff]
    %v2669 = vld [vmem:[#allocation6 + $0x1d8] sm:$0xf]
    %v2670 = vld [vmem:[#allocation6 + $0x1dc] sm:$0xff]
    %v2671 = vld [vmem:[#allocation6 + $0x1e4] sm:$0xff]
    %v2672 = vld [vmem:[#allocation6 + $0x1ec] sm:$0xff]
    %v2673 = vld [vmem:[#allocation6 + $0x1f4] sm:$0xf]
    %v2674 = vld [vmem:[#allocation6 + $0x1f8] sm:$0xff]
    %v2675 = vld [vmem:[#allocation6 + $0x200] sm:$0xff]
    %v2676 = vld [vmem:[#allocation6 + $0x208] sm:$0xff]
    %v2677 = vld [vmem:[#allocation6 + $0x210] sm:$0xf]
    %v2678 = vld [vmem:[#allocation6 + $0x214] sm:$0xff]
    %v2679 = vld [vmem:[#allocation6 + $0x21c] sm:$0xff]
    %v2680 = vld [vmem:[#allocation6 + $0x224] sm:$0xff]
    %v2681 = vld [vmem:[#allocation6 + $0x22c] sm:$0xf]
    %v2682 = vld [vmem:[#allocation6 + $0x230] sm:$0xff]
    %v2683 = vld [vmem:[#allocation6 + $0x238] sm:$0xff]
    %v2684 = vld [vmem:[#allocation6 + $0x240] sm:$0xff]
    %v2685 = vld [vmem:[#allocation6 + $0x248] sm:$0xf]
    %v2686 = vld [vmem:[#allocation6 + $0x24c] sm:$0xff]
    %v2687 = vld [vmem:[#allocation6 + $0x254] sm:$0xff]
    %v2688 = vld [vmem:[#allocation6 + $0x25c] sm:$0xff]
    %v2689 = vld [vmem:[#allocation6 + $0x264] sm:$0xf]
    %v2690 = vld [vmem:[#allocation6 + $0x268] sm:$0xff]
    %v2691 = vld [vmem:[#allocation6 + $0x270] sm:$0xff]
    %v2692 = vld [vmem:[#allocation6 + $0x278] sm:$0xff]
    %v2693 = vld [vmem:[#allocation6 + $0x280] sm:$0xf]
    %v2694 = vld [vmem:[#allocation6 + $0x284] sm:$0xff]
    %v2695 = vld [vmem:[#allocation6 + $0x28c] sm:$0xff]
    %v2696 = vld [vmem:[#allocation6 + $0x294] sm:$0xff]
    %v2697 = vld [vmem:[#allocation6 + $0x29c] sm:$0xf]
    %v2698 = vld [vmem:[#allocation6 + $0x2a0] sm:$0xff]
    %v2699 = vld [vmem:[#allocation6 + $0x2a8] sm:$0xff]
    %v2700 = vld [vmem:[#allocation6 + $0x2b0] sm:$0xff]
    %v2701 = vld [vmem:[#allocation6 + $0x2b8] sm:$0xf]
    %v2702 = vld [vmem:[#allocation6 + $0x2bc] sm:$0xff]
    %v2703 = vld [vmem:[#allocation6 + $0x2c4] sm:$0xff]
    %v2704 = vld [vmem:[#allocation6 + $0x2cc] sm:$0xff]
    %v2705 = vld [vmem:[#allocation6 + $0x2d4] sm:$0xf]
    %v2706 = vld [vmem:[#allocation6 + $0x2d8] sm:$0xff]
    %v2707 = vld [vmem:[#allocation6 + $0x2e0] sm:$0xff]
    %v2708 = vld [vmem:[#allocation6 + $0x2e8] sm:$0xff]
    %v2709 = vld [vmem:[#allocation6 + $0x2f0] sm:$0xf]
    %v2710 = vld [vmem:[#allocation6 + $0x2f4] sm:$0xff]
    %v2711 = vld [vmem:[#allocation6 + $0x2fc] sm:$0xff]
    %v2712 = vld [vmem:[#allocation6 + $0x304] sm:$0xff]
    %v2713 = vld [vmem:[#allocation6 + $0x30c] sm:$0xf]
    %v2714 = vld [vmem:[#allocation6 + $0x310] sm:$0xff]
    %v2715 = vld [vmem:[#allocation6 + $0x318] sm:$0xff]
    %v2716 = vld [vmem:[#allocation6 + $0x320] sm:$0xff]
    %v2717 = vld [vmem:[#allocation6 + $0x328] sm:$0xf]
    %v2718 = vld [vmem:[#allocation6 + $0x32c] sm:$0xff]
    %v2719 = vld [vmem:[#allocation6 + $0x334] sm:$0xff]
    %v2720 = vld [vmem:[#allocation6 + $0x33c] sm:$0xff]
    %v2721 = vld [vmem:[#allocation6 + $0x344] sm:$0xf]
    %v2722 = vld [vmem:[#allocation6 + $0x348] sm:$0xff]
    %v2723 = vld [vmem:[#allocation6 + $0x350] sm:$0xff]
    %v2724 = vld [vmem:[#allocation6 + $0x358] sm:$0xff]
    %v2725 = vld [vmem:[#allocation6 + $0x360] sm:$0xf]
    %v2726 = vld [vmem:[#allocation6 + $0x364] sm:$0xff]
    %v2727 = vld [vmem:[#allocation6 + $0x36c] sm:$0xff]
    %v2728 = vld [vmem:[#allocation6 + $0x374] sm:$0xff]
    %v2729 = vld [vmem:[#allocation6 + $0x37c] sm:$0xf]
    %v2730 = vld [vmem:[#allocation6 + $0x380] sm:$0xff]
    %v2731 = vld [vmem:[#allocation6 + $0x388] sm:$0xff]
    %v2732 = vld [vmem:[#allocation6 + $0x390] sm:$0xff]
    %v2733 = vld [vmem:[#allocation6 + $0x398] sm:$0xf]
    %v2734 = vld [vmem:[#allocation6 + $0x39c] sm:$0xff]
    %v2735 = vld [vmem:[#allocation6 + $0x3a4] sm:$0xff]
    %v2736 = vld [vmem:[#allocation6 + $0x3ac] sm:$0xff]
    %v2737 = vld [vmem:[#allocation6 + $0x3b4] sm:$0xf]
    %v2738 = vld [vmem:[#allocation6 + $0x3b8] sm:$0xff]
    %v2739 = vld [vmem:[#allocation6 + $0x3c0] sm:$0xff]
    %v2740 = vld [vmem:[#allocation6 + $0x3c8] sm:$0xff]
    %v2741 = vld [vmem:[#allocation6 + $0x3d0] sm:$0xf]
    %v2742 = vld [vmem:[#allocation6 + $0x3d4] sm:$0xff]
    %v2743 = vld [vmem:[#allocation6 + $0x3dc] sm:$0xff]
    %v2744 = vld [vmem:[#allocation6 + $0x3e4] sm:$0xff]
    %v2745 = vld [vmem:[#allocation6 + $0x3ec] sm:$0xf]
    %v2746 = vld [vmem:[#allocation6 + $0x3f0] sm:$0xff]
    %v2747 = vld [vmem:[#allocation6 + $0x3f8] sm:$0xff]
    %v2748 = vld [vmem:[#allocation6 + $0x400] sm:$0xff]
    %v2749 = vld [vmem:[#allocation6 + $0x408] sm:$0xf]
    %v2750 = vld [vmem:[#allocation6 + $0x40c] sm:$0xff]
    %v2751 = vld [vmem:[#allocation6 + $0x414] sm:$0xff]
    %v2752 = vld [vmem:[#allocation6 + $0x41c] sm:$0xff]
    %v2753 = vld [vmem:[#allocation6 + $0x424] sm:$0xf]
    %v2754 = vld [vmem:[#allocation6 + $0x428] sm:$0xff]
    %v2755 = vld [vmem:[#allocation6 + $0x430] sm:$0xff]
    %v2756 = vld [vmem:[#allocation6 + $0x438] sm:$0xff]
    %v2757 = vld [vmem:[#allocation6 + $0x440] sm:$0xf]
    %v2758 = vld [vmem:[#allocation6 + $0x444] sm:$0xff]
    %v2759 = vld [vmem:[#allocation6 + $0x44c] sm:$0xff]
    %v2760 = vld [vmem:[#allocation6 + $0x454] sm:$0xff]
    %v2761 = vld [vmem:[#allocation6 + $0x45c] sm:$0xf]
    %v2762 = vld [vmem:[#allocation6 + $0x460] sm:$0xff]
    %v2763 = vld [vmem:[#allocation6 + $0x468] sm:$0xff]
    %v2764 = vld [vmem:[#allocation6 + $0x470] sm:$0xff]
    %v2765 = vld [vmem:[#allocation6 + $0x478] sm:$0xf]
    %v2766 = vld [vmem:[#allocation6 + $0x47c] sm:$0xff]
    %v2767 = vld [vmem:[#allocation6 + $0x484] sm:$0xff]
    %v2768 = vld [vmem:[#allocation6 + $0x48c] sm:$0xff]
    %v2769 = vld [vmem:[#allocation6 + $0x494] sm:$0xf]
    %v2770 = vld [vmem:[#allocation6 + $0x498] sm:$0xff]
    %v2771 = vld [vmem:[#allocation6 + $0x4a0] sm:$0xff]
    %v2772 = vld [vmem:[#allocation6 + $0x4a8] sm:$0xff]
    %v2773 = vld [vmem:[#allocation6 + $0x4b0] sm:$0xf]
    %v2774 = vld [vmem:[#allocation6 + $0x4b4] sm:$0xff]
    %v2775 = vld [vmem:[#allocation6 + $0x4bc] sm:$0xff]
    %v2776 = vld [vmem:[#allocation6 + $0x4c4] sm:$0xff]
    %v2777 = vld [vmem:[#allocation6 + $0x4cc] sm:$0xf]
    %v2778 = vld [vmem:[#allocation6 + $0x4d0] sm:$0xff]
    %v2779 = vld [vmem:[#allocation6 + $0x4d8] sm:$0xff]
    %v2780 = vld [vmem:[#allocation6 + $0x4e0] sm:$0xff]
    %v2781 = vld [vmem:[#allocation6 + $0x4e8] sm:$0xf]
    %v2782 = vld [vmem:[#allocation6 + $0x4ec] sm:$0xff]
    %v2783 = vld [vmem:[#allocation6 + $0x4f4] sm:$0xff]
    %v2784 = vld [vmem:[#allocation6 + $0x4fc] sm:$0xff]
    %v2785 = vld [vmem:[#allocation6 + $0x504] sm:$0xf]
    %v2786 = vld [vmem:[#allocation6 + $0x508] sm:$0xff]
    %v2787 = vld [vmem:[#allocation6 + $0x510] sm:$0xff]
    %v2788 = vld [vmem:[#allocation6 + $0x518] sm:$0xff]
    %v2789 = vld [vmem:[#allocation6 + $0x520] sm:$0xf]
    %v2790 = vld [vmem:[#allocation6 + $0x524] sm:$0xff]
    %v2791 = vld [vmem:[#allocation6 + $0x52c] sm:$0xff]
    %v2792 = vld [vmem:[#allocation6 + $0x534] sm:$0xff]
    %v2793 = vld [vmem:[#allocation6 + $0x53c] sm:$0xf]
    %v2794 = vld [vmem:[#allocation6 + $0x540] sm:$0xff]
    %v2795 = vld [vmem:[#allocation6 + $0x548] sm:$0xff]
    %v2796 = vld [vmem:[#allocation6 + $0x550] sm:$0xff]
    %v2797 = vld [vmem:[#allocation6 + $0x558] sm:$0xf]
    %v2798 = vld [vmem:[#allocation6 + $0x55c] sm:$0xff]
    %v2799 = vld [vmem:[#allocation6 + $0x564] sm:$0xff]
    %v2800 = vld [vmem:[#allocation6 + $0x56c] sm:$0xff]
    %v2801 = vld [vmem:[#allocation6 + $0x574] sm:$0xf]
    %v2802 = vld [vmem:[#allocation6 + $0x578] sm:$0xff]
    %v2803 = vld [vmem:[#allocation6 + $0x580] sm:$0xff]
    %v2804 = vld [vmem:[#allocation6 + $0x588] sm:$0xff]
    %v2805 = vld [vmem:[#allocation6 + $0x590] sm:$0xf]
    %v2806 = vld [vmem:[#allocation6 + $0x594] sm:$0xff]
    %v2807 = vld [vmem:[#allocation6 + $0x59c] sm:$0xff]
    %v2808 = vld [vmem:[#allocation6 + $0x5a4] sm:$0xff]
    %v2809 = vld [vmem:[#allocation6 + $0x5ac] sm:$0xf]
    %v2810 = vld [vmem:[#allocation6 + $0x5b0] sm:$0xff]
    %v2811 = vld [vmem:[#allocation6 + $0x5b8] sm:$0xff]
    %v2812 = vld [vmem:[#allocation6 + $0x5c0] sm:$0xff]
    %v2813 = vld [vmem:[#allocation6 + $0x5c8] sm:$0xf]
    %v2814 = vld [vmem:[#allocation6 + $0x5cc] sm:$0xff]
    %v2815 = vld [vmem:[#allocation6 + $0x5d4] sm:$0xff]
    %v2816 = vld [vmem:[#allocation6 + $0x5dc] sm:$0xff]
    %v2817 = vld [vmem:[#allocation6 + $0x5e4] sm:$0xf]
    %v2818 = vld [vmem:[#allocation6 + $0x5e8] sm:$0xff]
    %v2819 = vld [vmem:[#allocation6 + $0x5f0] sm:$0xff]
    %v2820 = vld [vmem:[#allocation6 + $0x5f8] sm:$0xff]
    %v2821 = vld [vmem:[#allocation6 + $0x600] sm:$0xf]
    %v2822 = vld [vmem:[#allocation6 + $0x604] sm:$0xff]
    %v2823 = vld [vmem:[#allocation6 + $0x60c] sm:$0xff]
    %v2824 = vld [vmem:[#allocation6 + $0x614] sm:$0xff]
    %v2825 = vld [vmem:[#allocation6 + $0x61c] sm:$0xf]
    %v2826 = vld [vmem:[#allocation6 + $0x620] sm:$0xff]
    %v2827 = vld [vmem:[#allocation6 + $0x628] sm:$0xff]
    %v2828 = vld [vmem:[#allocation6 + $0x630] sm:$0xff]
    %v2829 = vld [vmem:[#allocation6 + $0x638] sm:$0xf]
    %v2830 = vld [vmem:[#allocation6 + $0x63c] sm:$0xff]
    %v2831 = vld [vmem:[#allocation6 + $0x644] sm:$0xff]
    %v2832 = vld [vmem:[#allocation6 + $0x64c] sm:$0xff]
    %v2833 = vld [vmem:[#allocation6 + $0x654] sm:$0xf]
    %v2834 = vld [vmem:[#allocation6 + $0x658] sm:$0xff]
    %v2835 = vld [vmem:[#allocation6 + $0x660] sm:$0xff]
    %v2836 = vld [vmem:[#allocation6 + $0x668] sm:$0xff]
    %v2837 = vld [vmem:[#allocation6 + $0x670] sm:$0xf]
    %v2838 = vld [vmem:[#allocation6 + $0x674] sm:$0xff]
    %v2839 = vld [vmem:[#allocation6 + $0x67c] sm:$0xff]
    %v2840 = vld [vmem:[#allocation6 + $0x684] sm:$0xff]
    %v2841 = vld [vmem:[#allocation6 + $0x68c] sm:$0xf]
    %v2842 = vld [vmem:[#allocation6 + $0x690] sm:$0xff]
    %v2843 = vld [vmem:[#allocation6 + $0x698] sm:$0xff]
    %v2844 = vld [vmem:[#allocation6 + $0x6a0] sm:$0xff]
    %v2845 = vld [vmem:[#allocation6 + $0x6a8] sm:$0xf]
    %v2846 = vld [vmem:[#allocation6 + $0x6ac] sm:$0xff]
    %v2847 = vld [vmem:[#allocation6 + $0x6b4] sm:$0xff]
    %v2848 = vld [vmem:[#allocation6 + $0x6bc] sm:$0xff]
    %v2849 = vld [vmem:[#allocation6 + $0x6c4] sm:$0xf]
    %v2850 = vld [vmem:[#allocation6 + $0x6c8] sm:$0xff]
    %v2851 = vld [vmem:[#allocation6 + $0x6d0] sm:$0xff]
    %v2852 = vld [vmem:[#allocation6 + $0x6d8] sm:$0xff]
    %v2853 = vld [vmem:[#allocation6 + $0x6e0] sm:$0xf]
    %v2854 = vld [vmem:[#allocation6 + $0x6e4] sm:$0xff]
    %v2855 = vld [vmem:[#allocation6 + $0x6ec] sm:$0xff]
    %v2856 = vld [vmem:[#allocation6 + $0x6f4] sm:$0xff]
    %v2857 = vld [vmem:[#allocation6 + $0x6fc] sm:$0xf]
    %v2858 = vld [vmem:[%s9] sm:$0xff]
    %v2860 = vlaneseq
    %v2861 = vshrl.u32 %v2860, 7
    %v2862 = vsub.s32 0, %v2861
    %v2863 = vrot.slane %v2858, %v2862
    %v2864 = vlaneseq
    %v2865 = vshrl.u32 %v2864, 7
    %v2866 = vsub.s32 1, %v2865
    %v2867 = vrot.slane %v2858, %v2866
    %v2868 = vlaneseq
    %v2869 = vshrl.u32 %v2868, 7
    %v2870 = vsub.s32 2, %v2869
    %v2871 = vrot.slane %v2858, %v2870
    %v2872 = vlaneseq
    %v2873 = vshrl.u32 %v2872, 7
    %v2874 = vsub.s32 3, %v2873
    %v2875 = vrot.slane %v2858, %v2874
    %v2876 = vlaneseq
    %v2877 = vshrl.u32 %v2876, 7
    %v2878 = vsub.s32 4, %v2877
    %v2879 = vrot.slane %v2858, %v2878
    %v2880 = vlaneseq
    %v2881 = vshrl.u32 %v2880, 7
    %v2882 = vsub.s32 5, %v2881
    %v2883 = vrot.slane %v2858, %v2882
    %v2884 = vlaneseq
    %v2885 = vshrl.u32 %v2884, 7
    %v2886 = vsub.s32 6, %v2885
    %v2887 = vrot.slane %v2858, %v2886
    %v3151 = vunpack.c.l.b16 %v2602
    %v3152 = vunpack.c.h.b16 %v2602
    %v3153 = vunpack.c.l.b16 %v2603
    %v3154 = vunpack.c.h.b16 %v2603
    %v3155 = vunpack.c.l.b16 %v2604
    %v3156 = vunpack.c.h.b16 %v2604
    %v3157 = vunpack.c.l.b16 %v2605
    %v3158 = vunpack.c.l.b16 %v2606
    %v3159 = vunpack.c.h.b16 %v2606
    %v3160 = vunpack.c.l.b16 %v2607
    %v3161 = vunpack.c.h.b16 %v2607
    %v3162 = vunpack.c.l.b16 %v2608
    %v3163 = vunpack.c.h.b16 %v2608
    %v3164 = vunpack.c.l.b16 %v2609
    %v3165 = vunpack.c.l.b16 %v2610
    %v3166 = vunpack.c.h.b16 %v2610
    %v3167 = vunpack.c.l.b16 %v2611
    %v3168 = vunpack.c.h.b16 %v2611
    %v3169 = vunpack.c.l.b16 %v2612
    %v3170 = vunpack.c.h.b16 %v2612
    %v3171 = vunpack.c.l.b16 %v2613
    %v3172 = vunpack.c.l.b16 %v2614
    %v3173 = vunpack.c.h.b16 %v2614
    %v3174 = vunpack.c.l.b16 %v2615
    %v3175 = vunpack.c.h.b16 %v2615
    %v3176 = vunpack.c.l.b16 %v2616
    %v3177 = vunpack.c.h.b16 %v2616
    %v3178 = vunpack.c.l.b16 %v2617
    %v3179 = vunpack.c.l.b16 %v2618
    %v3180 = vunpack.c.h.b16 %v2618
    %v3181 = vunpack.c.l.b16 %v2619
    %v3182 = vunpack.c.h.b16 %v2619
    %v3183 = vunpack.c.l.b16 %v2620
    %v3184 = vunpack.c.h.b16 %v2620
    %v3185 = vunpack.c.l.b16 %v2621
    %v3186 = vunpack.c.l.b16 %v2622
    %v3187 = vunpack.c.h.b16 %v2622
    %v3188 = vunpack.c.l.b16 %v2623
    %v3189 = vunpack.c.h.b16 %v2623
    %v3190 = vunpack.c.l.b16 %v2624
    %v3191 = vunpack.c.h.b16 %v2624
    %v3192 = vunpack.c.l.b16 %v2625
    %v3193 = vunpack.c.l.b16 %v2626
    %v3194 = vunpack.c.h.b16 %v2626
    %v3195 = vunpack.c.l.b16 %v2627
    %v3196 = vunpack.c.h.b16 %v2627
    %v3197 = vunpack.c.l.b16 %v2628
    %v3198 = vunpack.c.h.b16 %v2628
    %v3199 = vunpack.c.l.b16 %v2629
    %v3200 = vunpack.c.l.b16 %v2630
    %v3201 = vunpack.c.h.b16 %v2630
    %v3202 = vunpack.c.l.b16 %v2631
    %v3203 = vunpack.c.h.b16 %v2631
    %v3204 = vunpack.c.l.b16 %v2632
    %v3205 = vunpack.c.h.b16 %v2632
    %v3206 = vunpack.c.l.b16 %v2633
    %v3207 = vunpack.c.l.b16 %v2634
    %v3208 = vunpack.c.h.b16 %v2634
    %v3209 = vunpack.c.l.b16 %v2635
    %v3210 = vunpack.c.h.b16 %v2635
    %v3211 = vunpack.c.l.b16 %v2636
    %v3212 = vunpack.c.h.b16 %v2636
    %v3213 = vunpack.c.l.b16 %v2637
    %v3214 = vunpack.c.l.b16 %v2638
    %v3215 = vunpack.c.h.b16 %v2638
    %v3216 = vunpack.c.l.b16 %v2639
    %v3217 = vunpack.c.h.b16 %v2639
    %v3218 = vunpack.c.l.b16 %v2640
    %v3219 = vunpack.c.h.b16 %v2640
    %v3220 = vunpack.c.l.b16 %v2641
    %v3221 = vunpack.c.l.b16 %v2642
    %v3222 = vunpack.c.h.b16 %v2642
    %v3223 = vunpack.c.l.b16 %v2643
    %v3224 = vunpack.c.h.b16 %v2643
    %v3225 = vunpack.c.l.b16 %v2644
    %v3226 = vunpack.c.h.b16 %v2644
    %v3227 = vunpack.c.l.b16 %v2645
    %v3228 = vunpack.c.l.b16 %v2646
    %v3229 = vunpack.c.h.b16 %v2646
    %v3230 = vunpack.c.l.b16 %v2647
    %v3231 = vunpack.c.h.b16 %v2647
    %v3232 = vunpack.c.l.b16 %v2648
    %v3233 = vunpack.c.h.b16 %v2648
    %v3234 = vunpack.c.l.b16 %v2649
    %v3235 = vunpack.c.l.b16 %v2650
    %v3236 = vunpack.c.h.b16 %v2650
    %v3237 = vunpack.c.l.b16 %v2651
    %v3238 = vunpack.c.h.b16 %v2651
    %v3239 = vunpack.c.l.b16 %v2652
    %v3240 = vunpack.c.h.b16 %v2652
    %v3241 = vunpack.c.l.b16 %v2653
    %v3242 = vunpack.c.l.b16 %v2654
    %v3243 = vunpack.c.h.b16 %v2654
    %v3244 = vunpack.c.l.b16 %v2655
    %v3245 = vunpack.c.h.b16 %v2655
    %v3246 = vunpack.c.l.b16 %v2656
    %v3247 = vunpack.c.h.b16 %v2656
    %v3248 = vunpack.c.l.b16 %v2657
    %v3249 = vunpack.c.l.b16 %v2658
    %v3250 = vunpack.c.h.b16 %v2658
    %v3251 = vunpack.c.l.b16 %v2659
    %v3252 = vunpack.c.h.b16 %v2659
    %v3253 = vunpack.c.l.b16 %v2660
    %v3254 = vunpack.c.h.b16 %v2660
    %v3255 = vunpack.c.l.b16 %v2661
    %v3256 = vunpack.c.l.b16 %v2662
    %v3257 = vunpack.c.h.b16 %v2662
    %v3258 = vunpack.c.l.b16 %v2663
    %v3259 = vunpack.c.h.b16 %v2663
    %v3260 = vunpack.c.l.b16 %v2664
    %v3261 = vunpack.c.h.b16 %v2664
    %v3262 = vunpack.c.l.b16 %v2665
    %v3263 = vunpack.c.l.b16 %v2666
    %v3264 = vunpack.c.h.b16 %v2666
    %v3265 = vunpack.c.l.b16 %v2667
    %v3266 = vunpack.c.h.b16 %v2667
    %v3267 = vunpack.c.l.b16 %v2668
    %v3268 = vunpack.c.h.b16 %v2668
    %v3269 = vunpack.c.l.b16 %v2669
    %v3270 = vunpack.c.l.b16 %v2670
    %v3271 = vunpack.c.h.b16 %v2670
    %v3272 = vunpack.c.l.b16 %v2671
    %v3273 = vunpack.c.h.b16 %v2671
    %v3274 = vunpack.c.l.b16 %v2672
    %v3275 = vunpack.c.h.b16 %v2672
    %v3276 = vunpack.c.l.b16 %v2673
    %v3277 = vunpack.c.l.b16 %v2674
    %v3278 = vunpack.c.h.b16 %v2674
    %v3279 = vunpack.c.l.b16 %v2675
    %v3280 = vunpack.c.h.b16 %v2675
    %v3281 = vunpack.c.l.b16 %v2676
    %v3282 = vunpack.c.h.b16 %v2676
    %v3283 = vunpack.c.l.b16 %v2677
    %v3284 = vunpack.c.l.b16 %v2678
    %v3285 = vunpack.c.h.b16 %v2678
    %v3286 = vunpack.c.l.b16 %v2679
    %v3287 = vunpack.c.h.b16 %v2679
    %v3288 = vunpack.c.l.b16 %v2680
    %v3289 = vunpack.c.h.b16 %v2680
    %v3290 = vunpack.c.l.b16 %v2681
    %v3291 = vunpack.c.l.b16 %v2682
    %v3292 = vunpack.c.h.b16 %v2682
    %v3293 = vunpack.c.l.b16 %v2683
    %v3294 = vunpack.c.h.b16 %v2683
    %v3295 = vunpack.c.l.b16 %v2684
    %v3296 = vunpack.c.h.b16 %v2684
    %v3297 = vunpack.c.l.b16 %v2685
    %v3298 = vunpack.c.l.b16 %v2686
    %v3299 = vunpack.c.h.b16 %v2686
    %v3300 = vunpack.c.l.b16 %v2687
    %v3301 = vunpack.c.h.b16 %v2687
    %v3302 = vunpack.c.l.b16 %v2688
    %v3303 = vunpack.c.h.b16 %v2688
    %v3304 = vunpack.c.l.b16 %v2689
    %v3305 = vunpack.c.l.b16 %v2690
    %v3306 = vunpack.c.h.b16 %v2690
    %v3307 = vunpack.c.l.b16 %v2691
    %v3308 = vunpack.c.h.b16 %v2691
    %v3309 = vunpack.c.l.b16 %v2692
    %v3310 = vunpack.c.h.b16 %v2692
    %v3311 = vunpack.c.l.b16 %v2693
    %v3312 = vunpack.c.l.b16 %v2694
    %v3313 = vunpack.c.h.b16 %v2694
    %v3314 = vunpack.c.l.b16 %v2695
    %v3315 = vunpack.c.h.b16 %v2695
    %v3316 = vunpack.c.l.b16 %v2696
    %v3317 = vunpack.c.h.b16 %v2696
    %v3318 = vunpack.c.l.b16 %v2697
    %v3319 = vunpack.c.l.b16 %v2698
    %v3320 = vunpack.c.h.b16 %v2698
    %v3321 = vunpack.c.l.b16 %v2699
    %v3322 = vunpack.c.h.b16 %v2699
    %v3323 = vunpack.c.l.b16 %v2700
    %v3324 = vunpack.c.h.b16 %v2700
    %v3325 = vunpack.c.l.b16 %v2701
    %v3326 = vunpack.c.l.b16 %v2702
    %v3327 = vunpack.c.h.b16 %v2702
    %v3328 = vunpack.c.l.b16 %v2703
    %v3329 = vunpack.c.h.b16 %v2703
    %v3330 = vunpack.c.l.b16 %v2704
    %v3331 = vunpack.c.h.b16 %v2704
    %v3332 = vunpack.c.l.b16 %v2705
    %v3333 = vunpack.c.l.b16 %v2706
    %v3334 = vunpack.c.h.b16 %v2706
    %v3335 = vunpack.c.l.b16 %v2707
    %v3336 = vunpack.c.h.b16 %v2707
    %v3337 = vunpack.c.l.b16 %v2708
    %v3338 = vunpack.c.h.b16 %v2708
    %v3339 = vunpack.c.l.b16 %v2709
    %v3340 = vunpack.c.l.b16 %v2710
    %v3341 = vunpack.c.h.b16 %v2710
    %v3342 = vunpack.c.l.b16 %v2711
    %v3343 = vunpack.c.h.b16 %v2711
    %v3344 = vunpack.c.l.b16 %v2712
    %v3345 = vunpack.c.h.b16 %v2712
    %v3346 = vunpack.c.l.b16 %v2713
    %v3347 = vunpack.c.l.b16 %v2714
    %v3348 = vunpack.c.h.b16 %v2714
    %v3349 = vunpack.c.l.b16 %v2715
    %v3350 = vunpack.c.h.b16 %v2715
    %v3351 = vunpack.c.l.b16 %v2716
    %v3352 = vunpack.c.h.b16 %v2716
    %v3353 = vunpack.c.l.b16 %v2717
    %v3354 = vunpack.c.l.b16 %v2718
    %v3355 = vunpack.c.h.b16 %v2718
    %v3356 = vunpack.c.l.b16 %v2719
    %v3357 = vunpack.c.h.b16 %v2719
    %v3358 = vunpack.c.l.b16 %v2720
    %v3359 = vunpack.c.h.b16 %v2720
    %v3360 = vunpack.c.l.b16 %v2721
    %v3361 = vunpack.c.l.b16 %v2722
    %v3362 = vunpack.c.h.b16 %v2722
    %v3363 = vunpack.c.l.b16 %v2723
    %v3364 = vunpack.c.h.b16 %v2723
    %v3365 = vunpack.c.l.b16 %v2724
    %v3366 = vunpack.c.h.b16 %v2724
    %v3367 = vunpack.c.l.b16 %v2725
    %v3368 = vunpack.c.l.b16 %v2726
    %v3369 = vunpack.c.h.b16 %v2726
    %v3370 = vunpack.c.l.b16 %v2727
    %v3371 = vunpack.c.h.b16 %v2727
    %v3372 = vunpack.c.l.b16 %v2728
    %v3373 = vunpack.c.h.b16 %v2728
    %v3374 = vunpack.c.l.b16 %v2729
    %v3375 = vunpack.c.l.b16 %v2730
    %v3376 = vunpack.c.h.b16 %v2730
    %v3377 = vunpack.c.l.b16 %v2731
    %v3378 = vunpack.c.h.b16 %v2731
    %v3379 = vunpack.c.l.b16 %v2732
    %v3380 = vunpack.c.h.b16 %v2732
    %v3381 = vunpack.c.l.b16 %v2733
    %v3382 = vunpack.c.l.b16 %v2734
    %v3383 = vunpack.c.h.b16 %v2734
    %v3384 = vunpack.c.l.b16 %v2735
    %v3385 = vunpack.c.h.b16 %v2735
    %v3386 = vunpack.c.l.b16 %v2736
    %v3387 = vunpack.c.h.b16 %v2736
    %v3388 = vunpack.c.l.b16 %v2737
    %v3389 = vunpack.c.l.b16 %v2738
    %v3390 = vunpack.c.h.b16 %v2738
    %v3391 = vunpack.c.l.b16 %v2739
    %v3392 = vunpack.c.h.b16 %v2739
    %v3393 = vunpack.c.l.b16 %v2740
    %v3394 = vunpack.c.h.b16 %v2740
    %v3395 = vunpack.c.l.b16 %v2741
    %v3396 = vunpack.c.l.b16 %v2742
    %v3397 = vunpack.c.h.b16 %v2742
    %v3398 = vunpack.c.l.b16 %v2743
    %v3399 = vunpack.c.h.b16 %v2743
    %v3400 = vunpack.c.l.b16 %v2744
    %v3401 = vunpack.c.h.b16 %v2744
    %v3402 = vunpack.c.l.b16 %v2745
    %v3403 = vunpack.c.l.b16 %v2746
    %v3404 = vunpack.c.h.b16 %v2746
    %v3405 = vunpack.c.l.b16 %v2747
    %v3406 = vunpack.c.h.b16 %v2747
    %v3407 = vunpack.c.l.b16 %v2748
    %v3408 = vunpack.c.h.b16 %v2748
    %v3409 = vunpack.c.l.b16 %v2749
    %v3410 = vunpack.c.l.b16 %v2750
    %v3411 = vunpack.c.h.b16 %v2750
    %v3412 = vunpack.c.l.b16 %v2751
    %v3413 = vunpack.c.h.b16 %v2751
    %v3414 = vunpack.c.l.b16 %v2752
    %v3415 = vunpack.c.h.b16 %v2752
    %v3416 = vunpack.c.l.b16 %v2753
    %v3417 = vunpack.c.l.b16 %v2754
    %v3418 = vunpack.c.h.b16 %v2754
    %v3419 = vunpack.c.l.b16 %v2755
    %v3420 = vunpack.c.h.b16 %v2755
    %v3421 = vunpack.c.l.b16 %v2756
    %v3422 = vunpack.c.h.b16 %v2756
    %v3423 = vunpack.c.l.b16 %v2757
    %v3424 = vunpack.c.l.b16 %v2758
    %v3425 = vunpack.c.h.b16 %v2758
    %v3426 = vunpack.c.l.b16 %v2759
    %v3427 = vunpack.c.h.b16 %v2759
    %v3428 = vunpack.c.l.b16 %v2760
    %v3429 = vunpack.c.h.b16 %v2760
    %v3430 = vunpack.c.l.b16 %v2761
    %v3431 = vunpack.c.l.b16 %v2762
    %v3432 = vunpack.c.h.b16 %v2762
    %v3433 = vunpack.c.l.b16 %v2763
    %v3434 = vunpack.c.h.b16 %v2763
    %v3435 = vunpack.c.l.b16 %v2764
    %v3436 = vunpack.c.h.b16 %v2764
    %v3437 = vunpack.c.l.b16 %v2765
    %v3438 = vunpack.c.l.b16 %v2766
    %v3439 = vunpack.c.h.b16 %v2766
    %v3440 = vunpack.c.l.b16 %v2767
    %v3441 = vunpack.c.h.b16 %v2767
    %v3442 = vunpack.c.l.b16 %v2768
    %v3443 = vunpack.c.h.b16 %v2768
    %v3444 = vunpack.c.l.b16 %v2769
    %v3445 = vunpack.c.l.b16 %v2770
    %v3446 = vunpack.c.h.b16 %v2770
    %v3447 = vunpack.c.l.b16 %v2771
    %v3448 = vunpack.c.h.b16 %v2771
    %v3449 = vunpack.c.l.b16 %v2772
    %v3450 = vunpack.c.h.b16 %v2772
    %v3451 = vunpack.c.l.b16 %v2773
    %v3452 = vunpack.c.l.b16 %v2774
    %v3453 = vunpack.c.h.b16 %v2774
    %v3454 = vunpack.c.l.b16 %v2775
    %v3455 = vunpack.c.h.b16 %v2775
    %v3456 = vunpack.c.l.b16 %v2776
    %v3457 = vunpack.c.h.b16 %v2776
    %v3458 = vunpack.c.l.b16 %v2777
    %v3459 = vunpack.c.l.b16 %v2778
    %v3460 = vunpack.c.h.b16 %v2778
    %v3461 = vunpack.c.l.b16 %v2779
    %v3462 = vunpack.c.h.b16 %v2779
    %v3463 = vunpack.c.l.b16 %v2780
    %v3464 = vunpack.c.h.b16 %v2780
    %v3465 = vunpack.c.l.b16 %v2781
    %v3466 = vunpack.c.l.b16 %v2782
    %v3467 = vunpack.c.h.b16 %v2782
    %v3468 = vunpack.c.l.b16 %v2783
    %v3469 = vunpack.c.h.b16 %v2783
    %v3470 = vunpack.c.l.b16 %v2784
    %v3471 = vunpack.c.h.b16 %v2784
    %v3472 = vunpack.c.l.b16 %v2785
    %v3473 = vunpack.c.l.b16 %v2786
    %v3474 = vunpack.c.h.b16 %v2786
    %v3475 = vunpack.c.l.b16 %v2787
    %v3476 = vunpack.c.h.b16 %v2787
    %v3477 = vunpack.c.l.b16 %v2788
    %v3478 = vunpack.c.h.b16 %v2788
    %v3479 = vunpack.c.l.b16 %v2789
    %v3480 = vunpack.c.l.b16 %v2790
    %v3481 = vunpack.c.h.b16 %v2790
    %v3482 = vunpack.c.l.b16 %v2791
    %v3483 = vunpack.c.h.b16 %v2791
    %v3484 = vunpack.c.l.b16 %v2792
    %v3485 = vunpack.c.h.b16 %v2792
    %v3486 = vunpack.c.l.b16 %v2793
    %v3487 = vunpack.c.l.b16 %v2794
    %v3488 = vunpack.c.h.b16 %v2794
    %v3489 = vunpack.c.l.b16 %v2795
    %v3490 = vunpack.c.h.b16 %v2795
    %v3491 = vunpack.c.l.b16 %v2796
    %v3492 = vunpack.c.h.b16 %v2796
    %v3493 = vunpack.c.l.b16 %v2797
    %v3494 = vunpack.c.l.b16 %v2798
    %v3495 = vunpack.c.h.b16 %v2798
    %v3496 = vunpack.c.l.b16 %v2799
    %v3497 = vunpack.c.h.b16 %v2799
    %v3498 = vunpack.c.l.b16 %v2800
    %v3499 = vunpack.c.h.b16 %v2800
    %v3500 = vunpack.c.l.b16 %v2801
    %v3501 = vunpack.c.l.b16 %v2802
    %v3502 = vunpack.c.h.b16 %v2802
    %v3503 = vunpack.c.l.b16 %v2803
    %v3504 = vunpack.c.h.b16 %v2803
    %v3505 = vunpack.c.l.b16 %v2804
    %v3506 = vunpack.c.h.b16 %v2804
    %v3507 = vunpack.c.l.b16 %v2805
    %v3508 = vunpack.c.l.b16 %v2806
    %v3509 = vunpack.c.h.b16 %v2806
    %v3510 = vunpack.c.l.b16 %v2807
    %v3511 = vunpack.c.h.b16 %v2807
    %v3512 = vunpack.c.l.b16 %v2808
    %v3513 = vunpack.c.h.b16 %v2808
    %v3514 = vunpack.c.l.b16 %v2809
    %v3515 = vunpack.c.l.b16 %v2810
    %v3516 = vunpack.c.h.b16 %v2810
    %v3517 = vunpack.c.l.b16 %v2811
    %v3518 = vunpack.c.h.b16 %v2811
    %v3519 = vunpack.c.l.b16 %v2812
    %v3520 = vunpack.c.h.b16 %v2812
    %v3521 = vunpack.c.l.b16 %v2813
    %v3522 = vunpack.c.l.b16 %v2814
    %v3523 = vunpack.c.h.b16 %v2814
    %v3524 = vunpack.c.l.b16 %v2815
    %v3525 = vunpack.c.h.b16 %v2815
    %v3526 = vunpack.c.l.b16 %v2816
    %v3527 = vunpack.c.h.b16 %v2816
    %v3528 = vunpack.c.l.b16 %v2817
    %v3529 = vunpack.c.l.b16 %v2818
    %v3530 = vunpack.c.h.b16 %v2818
    %v3531 = vunpack.c.l.b16 %v2819
    %v3532 = vunpack.c.h.b16 %v2819
    %v3533 = vunpack.c.l.b16 %v2820
    %v3534 = vunpack.c.h.b16 %v2820
    %v3535 = vunpack.c.l.b16 %v2821
    %v3536 = vunpack.c.l.b16 %v2822
    %v3537 = vunpack.c.h.b16 %v2822
    %v3538 = vunpack.c.l.b16 %v2823
    %v3539 = vunpack.c.h.b16 %v2823
    %v3540 = vunpack.c.l.b16 %v2824
    %v3541 = vunpack.c.h.b16 %v2824
    %v3542 = vunpack.c.l.b16 %v2825
    %v3543 = vunpack.c.l.b16 %v2826
    %v3544 = vunpack.c.h.b16 %v2826
    %v3545 = vunpack.c.l.b16 %v2827
    %v3546 = vunpack.c.h.b16 %v2827
    %v3547 = vunpack.c.l.b16 %v2828
    %v3548 = vunpack.c.h.b16 %v2828
    %v3549 = vunpack.c.l.b16 %v2829
    %v3550 = vunpack.c.l.b16 %v2830
    %v3551 = vunpack.c.h.b16 %v2830
    %v3552 = vunpack.c.l.b16 %v2831
    %v3553 = vunpack.c.h.b16 %v2831
    %v3554 = vunpack.c.l.b16 %v2832
    %v3555 = vunpack.c.h.b16 %v2832
    %v3556 = vunpack.c.l.b16 %v2833
    %v3557 = vunpack.c.l.b16 %v2834
    %v3558 = vunpack.c.h.b16 %v2834
    %v3559 = vunpack.c.l.b16 %v2835
    %v3560 = vunpack.c.h.b16 %v2835
    %v3561 = vunpack.c.l.b16 %v2836
    %v3562 = vunpack.c.h.b16 %v2836
    %v3563 = vunpack.c.l.b16 %v2837
    %v3564 = vunpack.c.l.b16 %v2838
    %v3565 = vunpack.c.h.b16 %v2838
    %v3566 = vunpack.c.l.b16 %v2839
    %v3567 = vunpack.c.h.b16 %v2839
    %v3568 = vunpack.c.l.b16 %v2840
    %v3569 = vunpack.c.h.b16 %v2840
    %v3570 = vunpack.c.l.b16 %v2841
    %v3571 = vunpack.c.l.b16 %v2842
    %v3572 = vunpack.c.h.b16 %v2842
    %v3573 = vunpack.c.l.b16 %v2843
    %v3574 = vunpack.c.h.b16 %v2843
    %v3575 = vunpack.c.l.b16 %v2844
    %v3576 = vunpack.c.h.b16 %v2844
    %v3577 = vunpack.c.l.b16 %v2845
    %v3578 = vunpack.c.l.b16 %v2846
    %v3579 = vunpack.c.h.b16 %v2846
    %v3580 = vunpack.c.l.b16 %v2847
    %v3581 = vunpack.c.h.b16 %v2847
    %v3582 = vunpack.c.l.b16 %v2848
    %v3583 = vunpack.c.h.b16 %v2848
    %v3584 = vunpack.c.l.b16 %v2849
    %v3585 = vunpack.c.l.b16 %v2850
    %v3586 = vunpack.c.h.b16 %v2850
    %v3587 = vunpack.c.l.b16 %v2851
    %v3588 = vunpack.c.h.b16 %v2851
    %v3589 = vunpack.c.l.b16 %v2852
    %v3590 = vunpack.c.h.b16 %v2852
    %v3591 = vunpack.c.l.b16 %v2853
    %v3592 = vunpack.c.l.b16 %v2854
    %v3593 = vunpack.c.h.b16 %v2854
    %v3594 = vunpack.c.l.b16 %v2855
    %v3595 = vunpack.c.h.b16 %v2855
    %v3596 = vunpack.c.l.b16 %v2856
    %v3597 = vunpack.c.h.b16 %v2856
    %v3598 = vunpack.c.l.b16 %v2857
    %v3599 = vpack.c.b16 %v3158, %v3151
    %v3600 = vpack.c.b16 %v3159, %v3152
    %v3601 = vpack.c.b16 %v3160, %v3153
    %v3602 = vpack.c.b16 %v3161, %v3154
    %v3603 = vpack.c.b16 %v3162, %v3155
    %v3604 = vpack.c.b16 %v3163, %v3156
    %v3605 = vpack.c.b16 %v3164, %v3157
    %v3606 = vpack.c.b16 %v3172, %v3165
    %v3607 = vpack.c.b16 %v3173, %v3166
    %v3608 = vpack.c.b16 %v3174, %v3167
    %v3609 = vpack.c.b16 %v3175, %v3168
    %v3610 = vpack.c.b16 %v3176, %v3169
    %v3611 = vpack.c.b16 %v3177, %v3170
    %v3612 = vpack.c.b16 %v3178, %v3171
    %v3613 = vpack.c.b16 %v3186, %v3179
    %v3614 = vpack.c.b16 %v3187, %v3180
    %v3615 = vpack.c.b16 %v3188, %v3181
    %v3616 = vpack.c.b16 %v3189, %v3182
    %v3617 = vpack.c.b16 %v3190, %v3183
    %v3618 = vpack.c.b16 %v3191, %v3184
    %v3619 = vpack.c.b16 %v3192, %v3185
    %v3620 = vpack.c.b16 %v3200, %v3193
    %v3621 = vpack.c.b16 %v3201, %v3194
    %v3622 = vpack.c.b16 %v3202, %v3195
    %v3623 = vpack.c.b16 %v3203, %v3196
    %v3624 = vpack.c.b16 %v3204, %v3197
    %v3625 = vpack.c.b16 %v3205, %v3198
    %v3626 = vpack.c.b16 %v3206, %v3199
    %v3627 = vpack.c.b16 %v3214, %v3207
    %v3628 = vpack.c.b16 %v3215, %v3208
    %v3629 = vpack.c.b16 %v3216, %v3209
    %v3630 = vpack.c.b16 %v3217, %v3210
    %v3631 = vpack.c.b16 %v3218, %v3211
    %v3632 = vpack.c.b16 %v3219, %v3212
    %v3633 = vpack.c.b16 %v3220, %v3213
    %v3634 = vpack.c.b16 %v3228, %v3221
    %v3635 = vpack.c.b16 %v3229, %v3222
    %v3636 = vpack.c.b16 %v3230, %v3223
    %v3637 = vpack.c.b16 %v3231, %v3224
    %v3638 = vpack.c.b16 %v3232, %v3225
    %v3639 = vpack.c.b16 %v3233, %v3226
    %v3640 = vpack.c.b16 %v3234, %v3227
    %v3641 = vpack.c.b16 %v3242, %v3235
    %v3642 = vpack.c.b16 %v3243, %v3236
    %v3643 = vpack.c.b16 %v3244, %v3237
    %v3644 = vpack.c.b16 %v3245, %v3238
    %v3645 = vpack.c.b16 %v3246, %v3239
    %v3646 = vpack.c.b16 %v3247, %v3240
    %v3647 = vpack.c.b16 %v3248, %v3241
    %v3648 = vpack.c.b16 %v3256, %v3249
    %v3649 = vpack.c.b16 %v3257, %v3250
    %v3650 = vpack.c.b16 %v3258, %v3251
    %v3651 = vpack.c.b16 %v3259, %v3252
    %v3652 = vpack.c.b16 %v3260, %v3253
    %v3653 = vpack.c.b16 %v3261, %v3254
    %v3654 = vpack.c.b16 %v3262, %v3255
    %v3655 = vpack.c.b16 %v3270, %v3263
    %v3656 = vpack.c.b16 %v3271, %v3264
    %v3657 = vpack.c.b16 %v3272, %v3265
    %v3658 = vpack.c.b16 %v3273, %v3266
    %v3659 = vpack.c.b16 %v3274, %v3267
    %v3660 = vpack.c.b16 %v3275, %v3268
    %v3661 = vpack.c.b16 %v3276, %v3269
    %v3662 = vpack.c.b16 %v3284, %v3277
    %v3663 = vpack.c.b16 %v3285, %v3278
    %v3664 = vpack.c.b16 %v3286, %v3279
    %v3665 = vpack.c.b16 %v3287, %v3280
    %v3666 = vpack.c.b16 %v3288, %v3281
    %v3667 = vpack.c.b16 %v3289, %v3282
    %v3668 = vpack.c.b16 %v3290, %v3283
    %v3669 = vpack.c.b16 %v3298, %v3291
    %v3670 = vpack.c.b16 %v3299, %v3292
    %v3671 = vpack.c.b16 %v3300, %v3293
    %v3672 = vpack.c.b16 %v3301, %v3294
    %v3673 = vpack.c.b16 %v3302, %v3295
    %v3674 = vpack.c.b16 %v3303, %v3296
    %v3675 = vpack.c.b16 %v3304, %v3297
    %v3676 = vpack.c.b16 %v3312, %v3305
    %v3677 = vpack.c.b16 %v3313, %v3306
    %v3678 = vpack.c.b16 %v3314, %v3307
    %v3679 = vpack.c.b16 %v3315, %v3308
    %v3680 = vpack.c.b16 %v3316, %v3309
    %v3681 = vpack.c.b16 %v3317, %v3310
    %v3682 = vpack.c.b16 %v3318, %v3311
    %v3683 = vpack.c.b16 %v3326, %v3319
    %v3684 = vpack.c.b16 %v3327, %v3320
    %v3685 = vpack.c.b16 %v3328, %v3321
    %v3686 = vpack.c.b16 %v3329, %v3322
    %v3687 = vpack.c.b16 %v3330, %v3323
    %v3688 = vpack.c.b16 %v3331, %v3324
    %v3689 = vpack.c.b16 %v3332, %v3325
    %v3690 = vpack.c.b16 %v3340, %v3333
    %v3691 = vpack.c.b16 %v3341, %v3334
    %v3692 = vpack.c.b16 %v3342, %v3335
    %v3693 = vpack.c.b16 %v3343, %v3336
    %v3694 = vpack.c.b16 %v3344, %v3337
    %v3695 = vpack.c.b16 %v3345, %v3338
    %v3696 = vpack.c.b16 %v3346, %v3339
    %v3697 = vpack.c.b16 %v3354, %v3347
    %v3698 = vpack.c.b16 %v3355, %v3348
    %v3699 = vpack.c.b16 %v3356, %v3349
    %v3700 = vpack.c.b16 %v3357, %v3350
    %v3701 = vpack.c.b16 %v3358, %v3351
    %v3702 = vpack.c.b16 %v3359, %v3352
    %v3703 = vpack.c.b16 %v3360, %v3353
    %v3704 = vpack.c.b16 %v3368, %v3361
    %v3705 = vpack.c.b16 %v3369, %v3362
    %v3706 = vpack.c.b16 %v3370, %v3363
    %v3707 = vpack.c.b16 %v3371, %v3364
    %v3708 = vpack.c.b16 %v3372, %v3365
    %v3709 = vpack.c.b16 %v3373, %v3366
    %v3710 = vpack.c.b16 %v3374, %v3367
    %v3711 = vpack.c.b16 %v3382, %v3375
    %v3712 = vpack.c.b16 %v3383, %v3376
    %v3713 = vpack.c.b16 %v3384, %v3377
    %v3714 = vpack.c.b16 %v3385, %v3378
    %v3715 = vpack.c.b16 %v3386, %v3379
    %v3716 = vpack.c.b16 %v3387, %v3380
    %v3717 = vpack.c.b16 %v3388, %v3381
    %v3718 = vpack.c.b16 %v3396, %v3389
    %v3719 = vpack.c.b16 %v3397, %v3390
    %v3720 = vpack.c.b16 %v3398, %v3391
    %v3721 = vpack.c.b16 %v3399, %v3392
    %v3722 = vpack.c.b16 %v3400, %v3393
    %v3723 = vpack.c.b16 %v3401, %v3394
    %v3724 = vpack.c.b16 %v3402, %v3395
    %v3725 = vpack.c.b16 %v3410, %v3403
    %v3726 = vpack.c.b16 %v3411, %v3404
    %v3727 = vpack.c.b16 %v3412, %v3405
    %v3728 = vpack.c.b16 %v3413, %v3406
    %v3729 = vpack.c.b16 %v3414, %v3407
    %v3730 = vpack.c.b16 %v3415, %v3408
    %v3731 = vpack.c.b16 %v3416, %v3409
    %v3732 = vpack.c.b16 %v3424, %v3417
    %v3733 = vpack.c.b16 %v3425, %v3418
    %v3734 = vpack.c.b16 %v3426, %v3419
    %v3735 = vpack.c.b16 %v3427, %v3420
    %v3736 = vpack.c.b16 %v3428, %v3421
    %v3737 = vpack.c.b16 %v3429, %v3422
    %v3738 = vpack.c.b16 %v3430, %v3423
    %v3739 = vpack.c.b16 %v3438, %v3431
    %v3740 = vpack.c.b16 %v3439, %v3432
    %v3741 = vpack.c.b16 %v3440, %v3433
    %v3742 = vpack.c.b16 %v3441, %v3434
    %v3743 = vpack.c.b16 %v3442, %v3435
    %v3744 = vpack.c.b16 %v3443, %v3436
    %v3745 = vpack.c.b16 %v3444, %v3437
    %v3746 = vpack.c.b16 %v3452, %v3445
    %v3747 = vpack.c.b16 %v3453, %v3446
    %v3748 = vpack.c.b16 %v3454, %v3447
    %v3749 = vpack.c.b16 %v3455, %v3448
    %v3750 = vpack.c.b16 %v3456, %v3449
    %v3751 = vpack.c.b16 %v3457, %v3450
    %v3752 = vpack.c.b16 %v3458, %v3451
    %v3753 = vpack.c.b16 %v3466, %v3459
    %v3754 = vpack.c.b16 %v3467, %v3460
    %v3755 = vpack.c.b16 %v3468, %v3461
    %v3756 = vpack.c.b16 %v3469, %v3462
    %v3757 = vpack.c.b16 %v3470, %v3463
    %v3758 = vpack.c.b16 %v3471, %v3464
    %v3759 = vpack.c.b16 %v3472, %v3465
    %v3760 = vpack.c.b16 %v3480, %v3473
    %v3761 = vpack.c.b16 %v3481, %v3474
    %v3762 = vpack.c.b16 %v3482, %v3475
    %v3763 = vpack.c.b16 %v3483, %v3476
    %v3764 = vpack.c.b16 %v3484, %v3477
    %v3765 = vpack.c.b16 %v3485, %v3478
    %v3766 = vpack.c.b16 %v3486, %v3479
    %v3767 = vpack.c.b16 %v3494, %v3487
    %v3768 = vpack.c.b16 %v3495, %v3488
    %v3769 = vpack.c.b16 %v3496, %v3489
    %v3770 = vpack.c.b16 %v3497, %v3490
    %v3771 = vpack.c.b16 %v3498, %v3491
    %v3772 = vpack.c.b16 %v3499, %v3492
    %v3773 = vpack.c.b16 %v3500, %v3493
    %v3774 = vpack.c.b16 %v3508, %v3501
    %v3775 = vpack.c.b16 %v3509, %v3502
    %v3776 = vpack.c.b16 %v3510, %v3503
    %v3777 = vpack.c.b16 %v3511, %v3504
    %v3778 = vpack.c.b16 %v3512, %v3505
    %v3779 = vpack.c.b16 %v3513, %v3506
    %v3780 = vpack.c.b16 %v3514, %v3507
    %v3781 = vpack.c.b16 %v3522, %v3515
    %v3782 = vpack.c.b16 %v3523, %v3516
    %v3783 = vpack.c.b16 %v3524, %v3517
    %v3784 = vpack.c.b16 %v3525, %v3518
    %v3785 = vpack.c.b16 %v3526, %v3519
    %v3786 = vpack.c.b16 %v3527, %v3520
    %v3787 = vpack.c.b16 %v3528, %v3521
    %v3788 = vpack.c.b16 %v3536, %v3529
    %v3789 = vpack.c.b16 %v3537, %v3530
    %v3790 = vpack.c.b16 %v3538, %v3531
    %v3791 = vpack.c.b16 %v3539, %v3532
    %v3792 = vpack.c.b16 %v3540, %v3533
    %v3793 = vpack.c.b16 %v3541, %v3534
    %v3794 = vpack.c.b16 %v3542, %v3535
    %v3795 = vpack.c.b16 %v3550, %v3543
    %v3796 = vpack.c.b16 %v3551, %v3544
    %v3797 = vpack.c.b16 %v3552, %v3545
    %v3798 = vpack.c.b16 %v3553, %v3546
    %v3799 = vpack.c.b16 %v3554, %v3547
    %v3800 = vpack.c.b16 %v3555, %v3548
    %v3801 = vpack.c.b16 %v3556, %v3549
    %v3802 = vpack.c.b16 %v3564, %v3557
    %v3803 = vpack.c.b16 %v3565, %v3558
    %v3804 = vpack.c.b16 %v3566, %v3559
    %v3805 = vpack.c.b16 %v3567, %v3560
    %v3806 = vpack.c.b16 %v3568, %v3561
    %v3807 = vpack.c.b16 %v3569, %v3562
    %v3808 = vpack.c.b16 %v3570, %v3563
    %v3809 = vpack.c.b16 %v3578, %v3571
    %v3810 = vpack.c.b16 %v3579, %v3572
    %v3811 = vpack.c.b16 %v3580, %v3573
    %v3812 = vpack.c.b16 %v3581, %v3574
    %v3813 = vpack.c.b16 %v3582, %v3575
    %v3814 = vpack.c.b16 %v3583, %v3576
    %v3815 = vpack.c.b16 %v3584, %v3577
    %v3816 = vpack.c.b16 %v3592, %v3585
    %v3817 = vpack.c.b16 %v3593, %v3586
    %v3818 = vpack.c.b16 %v3594, %v3587
    %v3819 = vpack.c.b16 %v3595, %v3588
    %v3820 = vpack.c.b16 %v3596, %v3589
    %v3821 = vpack.c.b16 %v3597, %v3590
    %v3822 = vpack.c.b16 %v3598, %v3591
    %4047 = vmatprep.subr.bf16.mxu0 %v3649
    %4048 = vmatpush1.bf16.msra.mxu0 %v3648
    %4049 = vmatprep.subr.bf16.mxu0 %v3642
    %4050 = vmatpush1.bf16.msra.mxu0 %v3641
    %4051 = vmatprep.subr.bf16.mxu0 %v3635
    %4052 = vmatpush1.bf16.msra.mxu0 %v3634
    %4053 = vmatprep.subr.bf16.mxu0 %v3628
    %4054 = vmatpush1.bf16.msra.mxu0 %v3627
    %4055 = vmatprep.subr.bf16.mxu0 %v3621
    %4056 = vmatpush1.bf16.msra.mxu0 %v3620
    %4057 = vmatprep.subr.bf16.mxu0 %v3614
    %4058 = vmatpush1.bf16.msra.mxu0 %v3613
    %4059 = vmatprep.subr.bf16.mxu0 %v3607
    %4060 = vmatpush1.bf16.msra.mxu0 %v3606
    %4061 = vmatprep.subr.bf16.mxu0 %v3600
    %4062 = vmatpush1.bf16.msra.mxu0 %v3599
    %4063 = vmatprep.subr.bf16.mxu0 %v3705
    %4064 = vmatpush2.bf16.msra.mxu0 %v3704
    %4065 = vmatprep.subr.bf16.mxu0 %v3698
    %4066 = vmatpush2.bf16.msra.mxu0 %v3697
    %4067 = vmatprep.subr.bf16.mxu0 %v3691
    %4068 = vmatpush2.bf16.msra.mxu0 %v3690
    %4069 = vmatprep.subr.bf16.mxu0 %v3684
    %4070 = vmatpush2.bf16.msra.mxu0 %v3683
    %4071 = vmatprep.subr.bf16.mxu0 %v3677
    %4072 = vmatpush2.bf16.msra.mxu0 %v3676
    %4073 = vmatprep.subr.bf16.mxu0 %v3670
    %4074 = vmatpush2.bf16.msra.mxu0 %v3669
    %4075 = vmatprep.subr.bf16.mxu0 %v3663
    %4076 = vmatpush2.bf16.msra.mxu0 %v3662
    %4077 = vmatprep.subr.bf16.mxu0 %v3656
    %4078 = vmatpush2.bf16.msra.mxu0 %v3655
    %4079 = vmatprep.mubr.bf16.mxu0 %v2599
    %4080 = vmatmul.mubr.bf16.gmra.mxu0 %v2598
    %v4081 = vpop.f32.mrf.mxu0
    %v4082 = vadd.f32 %v2863, %v4081
    %v4083 = vpop.f32.mrf.mxu0
    %v4084 = vadd.f32 %v2867, %v4083
    %v4085 = vpop.f32.mrf.mxu0
    %v4086 = vpop.f32.mrf.mxu0
    %4087 = vdwg.mxu0
    %4088 = vmatprep.subr.bf16.mxu0 %v3761
    %4089 = vmatpush1.bf16.msra.mxu0 %v3760
    %4090 = vmatprep.subr.bf16.mxu0 %v3754
    %4091 = vmatpush1.bf16.msra.mxu0 %v3753
    %4092 = vmatprep.subr.bf16.mxu0 %v3747
    %4093 = vmatpush1.bf16.msra.mxu0 %v3746
    %4094 = vmatprep.subr.bf16.mxu0 %v3740
    %4095 = vmatpush1.bf16.msra.mxu0 %v3739
    %4096 = vmatprep.subr.bf16.mxu0 %v3733
    %4097 = vmatpush1.bf16.msra.mxu0 %v3732
    %4098 = vmatprep.subr.bf16.mxu0 %v3726
    %4099 = vmatpush1.bf16.msra.mxu0 %v3725
    %4100 = vmatprep.subr.bf16.mxu0 %v3719
    %4101 = vmatpush1.bf16.msra.mxu0 %v3718
    %4102 = vmatprep.subr.bf16.mxu0 %v3712
    %4103 = vmatpush1.bf16.msra.mxu0 %v3711
    %4104 = vmatprep.subr.bf16.mxu0 %v3817
    %4105 = vmatpush2.bf16.msra.mxu0 %v3816
    %4106 = vmatprep.subr.bf16.mxu0 %v3810
    %4107 = vmatpush2.bf16.msra.mxu0 %v3809
    %4108 = vmatprep.subr.bf16.mxu0 %v3803
    %4109 = vmatpush2.bf16.msra.mxu0 %v3802
    %4110 = vmatprep.subr.bf16.mxu0 %v3796
    %4111 = vmatpush2.bf16.msra.mxu0 %v3795
    %4112 = vmatprep.subr.bf16.mxu0 %v3789
    %4113 = vmatpush2.bf16.msra.mxu0 %v3788
    %4114 = vmatprep.subr.bf16.mxu0 %v3782
    %4115 = vmatpush2.bf16.msra.mxu0 %v3781
    %4116 = vmatprep.subr.bf16.mxu0 %v3775
    %4117 = vmatpush2.bf16.msra.mxu0 %v3774
    %4118 = vmatprep.subr.bf16.mxu0 %v3768
    %4119 = vmatpush2.bf16.msra.mxu0 %v3767
    %4120 = vmatprep.mubr.bf16.mxu0 %v2601
    %4121 = vmatmul.mubr.bf16.gmra.mxu0 %v2600
    %v4122 = vpop.f32.mrf.mxu0
    %v4123 = vadd.f32 %v4082, %v4122
    %v4124 = vpop.f32.mrf.mxu0
    %v4125 = vadd.f32 %v4084, %v4124
    %v4126 = vpop.f32.mrf.mxu0
    %v4127 = vpop.f32.mrf.mxu0
    %4128 = vdwg.mxu0
    %4129 = vmatprep.subr.bf16.mxu0 %v3651
    %4130 = vmatpush1.bf16.msra.mxu0 %v3650
    %4131 = vmatprep.subr.bf16.mxu0 %v3644
    %4132 = vmatpush1.bf16.msra.mxu0 %v3643
    %4133 = vmatprep.subr.bf16.mxu0 %v3637
    %4134 = vmatpush1.bf16.msra.mxu0 %v3636
    %4135 = vmatprep.subr.bf16.mxu0 %v3630
    %4136 = vmatpush1.bf16.msra.mxu0 %v3629
    %4137 = vmatprep.subr.bf16.mxu0 %v3623
    %4138 = vmatpush1.bf16.msra.mxu0 %v3622
    %4139 = vmatprep.subr.bf16.mxu0 %v3616
    %4140 = vmatpush1.bf16.msra.mxu0 %v3615
    %4141 = vmatprep.subr.bf16.mxu0 %v3609
    %4142 = vmatpush1.bf16.msra.mxu0 %v3608
    %4143 = vmatprep.subr.bf16.mxu0 %v3602
    %4144 = vmatpush1.bf16.msra.mxu0 %v3601
    %4145 = vmatprep.subr.bf16.mxu0 %v3707
    %4146 = vmatpush2.bf16.msra.mxu0 %v3706
    %4147 = vmatprep.subr.bf16.mxu0 %v3700
    %4148 = vmatpush2.bf16.msra.mxu0 %v3699
    %4149 = vmatprep.subr.bf16.mxu0 %v3693
    %4150 = vmatpush2.bf16.msra.mxu0 %v3692
    %4151 = vmatprep.subr.bf16.mxu0 %v3686
    %4152 = vmatpush2.bf16.msra.mxu0 %v3685
    %4153 = vmatprep.subr.bf16.mxu0 %v3679
    %4154 = vmatpush2.bf16.msra.mxu0 %v3678
    %4155 = vmatprep.subr.bf16.mxu0 %v3672
    %4156 = vmatpush2.bf16.msra.mxu0 %v3671
    %4157 = vmatprep.subr.bf16.mxu0 %v3665
    %4158 = vmatpush2.bf16.msra.mxu0 %v3664
    %4159 = vmatprep.subr.bf16.mxu0 %v3658
    %4160 = vmatpush2.bf16.msra.mxu0 %v3657
    %4161 = vmatprep.mubr.bf16.mxu0 %v2599
    %4162 = vmatmul.mubr.bf16.gmra.mxu0 %v2598
    %v4163 = vpop.f32.mrf.mxu0
    %v4164 = vadd.f32 %v2871, %v4163
    %v4165 = vpop.f32.mrf.mxu0
    %v4166 = vadd.f32 %v2875, %v4165
    %v4167 = vpop.f32.mrf.mxu0
    %v4168 = vpop.f32.mrf.mxu0
    %4169 = vdwg.mxu0
    %4170 = vmatprep.subr.bf16.mxu0 %v3763
    %4171 = vmatpush1.bf16.msra.mxu0 %v3762
    %4172 = vmatprep.subr.bf16.mxu0 %v3756
    %4173 = vmatpush1.bf16.msra.mxu0 %v3755
    %4174 = vmatprep.subr.bf16.mxu0 %v3749
    %4175 = vmatpush1.bf16.msra.mxu0 %v3748
    %4176 = vmatprep.subr.bf16.mxu0 %v3742
    %4177 = vmatpush1.bf16.msra.mxu0 %v3741
    %4178 = vmatprep.subr.bf16.mxu0 %v3735
    %4179 = vmatpush1.bf16.msra.mxu0 %v3734
    %4180 = vmatprep.subr.bf16.mxu0 %v3728
    %4181 = vmatpush1.bf16.msra.mxu0 %v3727
    %4182 = vmatprep.subr.bf16.mxu0 %v3721
    %4183 = vmatpush1.bf16.msra.mxu0 %v3720
    %4184 = vmatprep.subr.bf16.mxu0 %v3714
    %4185 = vmatpush1.bf16.msra.mxu0 %v3713
    %4186 = vmatprep.subr.bf16.mxu0 %v3819
    %4187 = vmatpush2.bf16.msra.mxu0 %v3818
    %4188 = vmatprep.subr.bf16.mxu0 %v3812
    %4189 = vmatpush2.bf16.msra.mxu0 %v3811
    %4190 = vmatprep.subr.bf16.mxu0 %v3805
    %4191 = vmatpush2.bf16.msra.mxu0 %v3804
    %4192 = vmatprep.subr.bf16.mxu0 %v3798
    %4193 = vmatpush2.bf16.msra.mxu0 %v3797
    %4194 = vmatprep.subr.bf16.mxu0 %v3791
    %4195 = vmatpush2.bf16.msra.mxu0 %v3790
    %4196 = vmatprep.subr.bf16.mxu0 %v3784
    %4197 = vmatpush2.bf16.msra.mxu0 %v3783
    %4198 = vmatprep.subr.bf16.mxu0 %v3777
    %4199 = vmatpush2.bf16.msra.mxu0 %v3776
    %4200 = vmatprep.subr.bf16.mxu0 %v3770
    %4201 = vmatpush2.bf16.msra.mxu0 %v3769
    %4202 = vmatprep.mubr.bf16.mxu0 %v2601
    %4203 = vmatmul.mubr.bf16.gmra.mxu0 %v2600
    %v4204 = vpop.f32.mrf.mxu0
    %v4205 = vadd.f32 %v4164, %v4204
    %v4206 = vpop.f32.mrf.mxu0
    %v4207 = vadd.f32 %v4166, %v4206
    %v4208 = vpop.f32.mrf.mxu0
    %v4209 = vpop.f32.mrf.mxu0
    %4210 = vdwg.mxu0
    %4211 = vmatprep.subr.bf16.mxu0 %v3653
    %4212 = vmatpush1.bf16.msra.mxu0 %v3652
    %4213 = vmatprep.subr.bf16.mxu0 %v3646
    %4214 = vmatpush1.bf16.msra.mxu0 %v3645
    %4215 = vmatprep.subr.bf16.mxu0 %v3639
    %4216 = vmatpush1.bf16.msra.mxu0 %v3638
    %4217 = vmatprep.subr.bf16.mxu0 %v3632
    %4218 = vmatpush1.bf16.msra.mxu0 %v3631
    %4219 = vmatprep.subr.bf16.mxu0 %v3625
    %4220 = vmatpush1.bf16.msra.mxu0 %v3624
    %4221 = vmatprep.subr.bf16.mxu0 %v3618
    %4222 = vmatpush1.bf16.msra.mxu0 %v3617
    %4223 = vmatprep.subr.bf16.mxu0 %v3611
    %4224 = vmatpush1.bf16.msra.mxu0 %v3610
    %4225 = vmatprep.subr.bf16.mxu0 %v3604
    %4226 = vmatpush1.bf16.msra.mxu0 %v3603
    %4227 = vmatprep.subr.bf16.mxu0 %v3709
    %4228 = vmatpush2.bf16.msra.mxu0 %v3708
    %4229 = vmatprep.subr.bf16.mxu0 %v3702
    %4230 = vmatpush2.bf16.msra.mxu0 %v3701
    %4231 = vmatprep.subr.bf16.mxu0 %v3695
    %4232 = vmatpush2.bf16.msra.mxu0 %v3694
    %4233 = vmatprep.subr.bf16.mxu0 %v3688
    %4234 = vmatpush2.bf16.msra.mxu0 %v3687
    %4235 = vmatprep.subr.bf16.mxu0 %v3681
    %4236 = vmatpush2.bf16.msra.mxu0 %v3680
    %4237 = vmatprep.subr.bf16.mxu0 %v3674
    %4238 = vmatpush2.bf16.msra.mxu0 %v3673
    %4239 = vmatprep.subr.bf16.mxu0 %v3667
    %4240 = vmatpush2.bf16.msra.mxu0 %v3666
    %4241 = vmatprep.subr.bf16.mxu0 %v3660
    %4242 = vmatpush2.bf16.msra.mxu0 %v3659
    %4243 = vmatprep.mubr.bf16.mxu0 %v2599
    %4244 = vmatmul.mubr.bf16.gmra.mxu0 %v2598
    %v4245 = vpop.f32.mrf.mxu0
    %v4246 = vadd.f32 %v2879, %v4245
    %v4247 = vpop.f32.mrf.mxu0
    %v4248 = vadd.f32 %v2883, %v4247
    %v4249 = vpop.f32.mrf.mxu0
    %v4250 = vpop.f32.mrf.mxu0
    %4251 = vdwg.mxu0
    %4252 = vmatprep.subr.bf16.mxu0 %v3765
    %4253 = vmatpush1.bf16.msra.mxu0 %v3764
    %4254 = vmatprep.subr.bf16.mxu0 %v3758
    %4255 = vmatpush1.bf16.msra.mxu0 %v3757
    %4256 = vmatprep.subr.bf16.mxu0 %v3751
    %4257 = vmatpush1.bf16.msra.mxu0 %v3750
    %4258 = vmatprep.subr.bf16.mxu0 %v3744
    %4259 = vmatpush1.bf16.msra.mxu0 %v3743
    %4260 = vmatprep.subr.bf16.mxu0 %v3737
    %4261 = vmatpush1.bf16.msra.mxu0 %v3736
    %4262 = vmatprep.subr.bf16.mxu0 %v3730
    %4263 = vmatpush1.bf16.msra.mxu0 %v3729
    %4264 = vmatprep.subr.bf16.mxu0 %v3723
    %4265 = vmatpush1.bf16.msra.mxu0 %v3722
    %4266 = vmatprep.subr.bf16.mxu0 %v3716
    %4267 = vmatpush1.bf16.msra.mxu0 %v3715
    %4268 = vmatprep.subr.bf16.mxu0 %v3821
    %4269 = vmatpush2.bf16.msra.mxu0 %v3820
    %4270 = vmatprep.subr.bf16.mxu0 %v3814
    %4271 = vmatpush2.bf16.msra.mxu0 %v3813
    %4272 = vmatprep.subr.bf16.mxu0 %v3807
    %4273 = vmatpush2.bf16.msra.mxu0 %v3806
    %4274 = vmatprep.subr.bf16.mxu0 %v3800
    %4275 = vmatpush2.bf16.msra.mxu0 %v3799
    %4276 = vmatprep.subr.bf16.mxu0 %v3793
    %4277 = vmatpush2.bf16.msra.mxu0 %v3792
    %4278 = vmatprep.subr.bf16.mxu0 %v3786
    %4279 = vmatpush2.bf16.msra.mxu0 %v3785
    %4280 = vmatprep.subr.bf16.mxu0 %v3779
    %4281 = vmatpush2.bf16.msra.mxu0 %v3778
    %4282 = vmatprep.subr.bf16.mxu0 %v3772
    %4283 = vmatpush2.bf16.msra.mxu0 %v3771
    %4284 = vmatprep.mubr.bf16.mxu0 %v2601
    %4285 = vmatmul.mubr.bf16.gmra.mxu0 %v2600
    %v4286 = vpop.f32.mrf.mxu0
    %v4287 = vadd.f32 %v4246, %v4286
    %v4288 = vpop.f32.mrf.mxu0
    %v4289 = vadd.f32 %v4248, %v4288
    %v4290 = vpop.f32.mrf.mxu0
    %v4291 = vpop.f32.mrf.mxu0
    %4292 = vdwg.mxu0
    %4293 = vmatprep.subr.bf16.mxu0 0
    %4294 = vmatpush1.bf16.msra.mxu0 %v3654
    %4295 = vmatprep.subr.bf16.mxu0 0
    %4296 = vmatpush1.bf16.msra.mxu0 %v3647
    %4297 = vmatprep.subr.bf16.mxu0 0
    %4298 = vmatpush1.bf16.msra.mxu0 %v3640
    %4299 = vmatprep.subr.bf16.mxu0 0
    %4300 = vmatpush1.bf16.msra.mxu0 %v3633
    %4301 = vmatprep.subr.bf16.mxu0 0
    %4302 = vmatpush1.bf16.msra.mxu0 %v3626
    %4303 = vmatprep.subr.bf16.mxu0 0
    %4304 = vmatpush1.bf16.msra.mxu0 %v3619
    %4305 = vmatprep.subr.bf16.mxu0 0
    %4306 = vmatpush1.bf16.msra.mxu0 %v3612
    %4307 = vmatprep.subr.bf16.mxu0 0
    %4308 = vmatpush1.bf16.msra.mxu0 %v3605
    %4309 = vmatprep.subr.bf16.mxu0 0
    %4310 = vmatpush2.bf16.msra.mxu0 %v3710
    %4311 = vmatprep.subr.bf16.mxu0 0
    %4312 = vmatpush2.bf16.msra.mxu0 %v3703
    %4313 = vmatprep.subr.bf16.mxu0 0
    %4314 = vmatpush2.bf16.msra.mxu0 %v3696
    %4315 = vmatprep.subr.bf16.mxu0 0
    %4316 = vmatpush2.bf16.msra.mxu0 %v3689
    %4317 = vmatprep.subr.bf16.mxu0 0
    %4318 = vmatpush2.bf16.msra.mxu0 %v3682
    %4319 = vmatprep.subr.bf16.mxu0 0
    %4320 = vmatpush2.bf16.msra.mxu0 %v3675
    %4321 = vmatprep.subr.bf16.mxu0 0
    %4322 = vmatpush2.bf16.msra.mxu0 %v3668
    %4323 = vmatprep.subr.bf16.mxu0 0
    %4324 = vmatpush2.bf16.msra.mxu0 %v3661
    %4325 = vmatprep.mubr.bf16.mxu0 %v2599
    %4326 = vmatmul.mubr.bf16.gmra.mxu0 %v2598
    %v4327 = vpop.f32.mrf.mxu0
    %v4328 = vadd.f32 %v2887, %v4327
    %v4329 = vpop.f32.mrf.mxu0
    %v4330 = vpop.f32.mrf.mxu0
    %v4331 = vpop.f32.mrf.mxu0
    %4332 = vdwg.mxu0
    %4333 = vmatprep.subr.bf16.mxu0 0
    %4334 = vmatpush1.bf16.msra.mxu0 %v3766
    %4335 = vmatprep.subr.bf16.mxu0 0
    %4336 = vmatpush1.bf16.msra.mxu0 %v3759
    %4337 = vmatprep.subr.bf16.mxu0 0
    %4338 = vmatpush1.bf16.msra.mxu0 %v3752
    %4339 = vmatprep.subr.bf16.mxu0 0
    %4340 = vmatpush1.bf16.msra.mxu0 %v3745
    %4341 = vmatprep.subr.bf16.mxu0 0
    %4342 = vmatpush1.bf16.msra.mxu0 %v3738
    %4343 = vmatprep.subr.bf16.mxu0 0
    %4344 = vmatpush1.bf16.msra.mxu0 %v3731
    %4345 = vmatprep.subr.bf16.mxu0 0
    %4346 = vmatpush1.bf16.msra.mxu0 %v3724
    %4347 = vmatprep.subr.bf16.mxu0 0
    %4348 = vmatpush1.bf16.msra.mxu0 %v3717
    %4349 = vmatprep.subr.bf16.mxu0 0
    %4350 = vmatpush2.bf16.msra.mxu0 %v3822
    %4351 = vmatprep.subr.bf16.mxu0 0
    %4352 = vmatpush2.bf16.msra.mxu0 %v3815
    %4353 = vmatprep.subr.bf16.mxu0 0
    %4354 = vmatpush2.bf16.msra.mxu0 %v3808
    %4355 = vmatprep.subr.bf16.mxu0 0
    %4356 = vmatpush2.bf16.msra.mxu0 %v3801
    %4357 = vmatprep.subr.bf16.mxu0 0
    %4358 = vmatpush2.bf16.msra.mxu0 %v3794
    %4359 = vmatprep.subr.bf16.mxu0 0
    %4360 = vmatpush2.bf16.msra.mxu0 %v3787
    %4361 = vmatprep.subr.bf16.mxu0 0
    %4362 = vmatpush2.bf16.msra.mxu0 %v3780
    %4363 = vmatprep.subr.bf16.mxu0 0
    %4364 = vmatpush2.bf16.msra.mxu0 %v3773
    %4365 = vmatprep.mubr.bf16.mxu0 %v2601
    %4366 = vmatmul.mubr.bf16.gmra.mxu0 %v2600
    %v4367 = vpop.f32.mrf.mxu0
    %v4368 = vadd.f32 %v4328, %v4367
    %v4369 = vpop.f32.mrf.mxu0
    %v4370 = vpop.f32.mrf.mxu0
    %v4371 = vpop.f32.mrf.mxu0
    %4372 = vdwg.mxu0
    %v4373 = vxor.u32 %v4123, 2147483648
    %v4374 = vxor.u32 %v4125, 2147483648
    %v4375 = vxor.u32 %v4205, 2147483648
    %v4376 = vxor.u32 %v4207, 2147483648
    %v4377 = vxor.u32 %v4287, 2147483648
    %v4378 = vxor.u32 %v4289, 2147483648
    %v4379 = vxor.u32 %v4368, 2147483648
    %v4380 = vmul.f32 %v4373, 1.442695
    %v4381 = vpow.pop %v4380
    %v4382 = vmul.f32 %v4374, 1.442695
    %v4383 = vpow.pop %v4382
    %v4384 = vmul.f32 %v4375, 1.442695
    %v4385 = vpow.pop %v4384
    %v4386 = vmul.f32 %v4376, 1.442695
    %v4387 = vpow.pop %v4386
    %v4388 = vmul.f32 %v4377, 1.442695
    %v4389 = vpow.pop %v4388
    %v4390 = vmul.f32 %v4378, 1.442695
    %v4391 = vpow.pop %v4390
    %v4392 = vmul.f32 %v4379, 1.442695
    %v4393 = vpow.pop %v4392
    %v4394 = vadd.f32 %v4381, 1.0
    %v4395 = vadd.f32 %v4383, 1.0
    %v4396 = vadd.f32 %v4385, 1.0
    %v4397 = vadd.f32 %v4387, 1.0
    %v4398 = vadd.f32 %v4389, 1.0
    %v4399 = vadd.f32 %v4391, 1.0
    %v4400 = vadd.f32 %v4393, 1.0
    %v4401 = vrcp.pop %v4394
    %v4402 = vmul.f32 1.0, %v4401
    %v4403 = vrcp.pop %v4395
    %v4404 = vmul.f32 1.0, %v4403
    %v4405 = vrcp.pop %v4396
    %v4406 = vmul.f32 1.0, %v4405
    %v4407 = vrcp.pop %v4397
    %v4408 = vmul.f32 1.0, %v4407
    %v4409 = vrcp.pop %v4398
    %v4410 = vmul.f32 1.0, %v4409
    %v4411 = vrcp.pop %v4399
    %v4412 = vmul.f32 1.0, %v4411
    %v4413 = vrcp.pop %v4400
    %v4414 = vmul.f32 1.0, %v4413
    %v4415 = vpack.c.bf16 %v4402, %v4402
    %v4416 = vpack.c.bf16 %v4404, %v4404
    %v4417 = vpack.c.bf16 %v4406, %v4406
    %v4418 = vpack.c.bf16 %v4408, %v4408
    %v4419 = vpack.c.bf16 %v4410, %v4410
    %v4420 = vpack.c.bf16 %v4412, %v4412
    %v4421 = vpack.c.bf16 %v4414, %v4414
    %v4429 = vunpack.c.l.b16 %v4415
    %v4430 = vunpack.c.l.b16 %v4416
    %v4431 = vunpack.c.l.b16 %v4417
    %v4432 = vunpack.c.l.b16 %v4418
    %v4433 = vunpack.c.l.b16 %v4419
    %v4434 = vunpack.c.l.b16 %v4420
    %v4435 = vunpack.c.l.b16 %v4421
    %v4436 = vpack.c.b16 %v4430, %v4429
    %v4437 = vpack.c.b16 %v4432, %v4431
    %v4438 = vpack.c.b16 %v4434, %v4433
    %v4439 = vpack.c.b16 %v4435, %v4435
    %4444 = vst [vmem:[%s10] sm:$0xff] %v4436
    %4445 = vst [vmem:[%s10 + $0x8] sm:$0xff] %v4437
    %4446 = vst [vmem:[%s10 + $0x10] sm:$0xff] %v4438
    %4447 = vst [vmem:[%s10 + $0x18] sm:$0xf] %v4439
    // Predicated region
    $region54: #{cvae_forward.1} parent=1 // pred_check
      _
    $region55: #{cvae_forward.1} parent=1 // pred_check_branch
      %4449 = sbr.rel (0) target = $region57
    $region56: #{cvae_forward.1} parent=1 // pred_region
      _
    $region57: #{cvae_forward.1} parent=1 // pred_fallthru
      _
    // Predicated region
    $region58: #{cvae_forward.1} parent=1 // pred_check
      _
    $region59: #{cvae_forward.1} parent=1 // pred_check_branch
      %4451 = sbr.rel (0) target = $region61
    $region60: #{cvae_forward.1} parent=1 // pred_region
      _
    $region61: #{cvae_forward.1} parent=1 // pred_fallthru
      _
    // Predicated region
    $region62: #{cvae_forward.1} parent=1 // pred_check
      _
    $region63: #{cvae_forward.1} parent=1 // pred_check_branch
      %4453 = sbr.rel (0) target = $region65
    $region64: #{cvae_forward.1} parent=1 // pred_region
      _
    $region65: #{cvae_forward.1} parent=1 // pred_fallthru
      _
    // Predicated region
    $region66: #{cvae_forward.1} parent=1 // pred_check
      _
    $region67: #{cvae_forward.1} parent=1 // pred_check_branch
      %4455 = sbr.rel (0) target = $region69
    $region68: #{cvae_forward.1} parent=1 // pred_region
      _
    $region69: #{cvae_forward.1} parent=1 // pred_fallthru
      _
    %4456 = vsyncpa [#allocation3], 1
    %4457 = vsyncpa [#allocation5], 1

</llo_original>
